<compile_context>
chip_gen: v7x
topology: tpu7x:2x2x1
jax: 0.10.0
libtpu: 0.0.40
codegen_flags: <defaults>
</compile_context>

<pallas_src>
import jax
import jax.numpy as jnp
from jax import lax
from jax.experimental import pallas as pl
from jax.experimental.pallas import tpu as pltpu


# ----------------------------------------------------------------------------
# Fused Pallas kernel: n_layers x (bi-LSTM) + last-step linear classifier
# ----------------------------------------------------------------------------
def make_fused_kernel(T, Bp, H, n_layers):

    def lstm_cell(gates, c_prev):
        # Gate layout [i | f | o | g]: sigmoid over a contiguous 3H slab,
        # tanh only on the g-gate (1/4 of the previous transcendental work).
        sg = jax.nn.sigmoid(gates[:, 0:3 * H])
        g_g = jnp.tanh(gates[:, 3 * H:4 * H])
        i_g = sg[:, 0:H]
        f_g = sg[:, H:2 * H]
        o_g = sg[:, 2 * H:3 * H]
        c_new = f_g * c_prev + i_g * g_g
        h_new = o_g * jnp.tanh(c_new)
        return h_new, c_new

    def kernel(*refs):
        # Unpack: x, n_layers * (wih_f, b_f, whh_f, wih_b, b_b, whh_b),
        #         cls_w, cls_b, out, 3 VMEM scratches.
        x_ref = refs[0]
        p = 1
        layer_refs = []
        for _ in range(n_layers):
            layer_refs.append(tuple(refs[p:p + 6]))
            p += 6
        cls_w_ref = refs[p]
        cls_b_ref = refs[p + 1]
        out_ref = refs[p + 2]
        gx_f_sc, gx_b_sc, seq_sc = refs[p + 3:p + 6]

        last_f = None
        last_b = None

        for layer_idx, (wih_f_ref, b_f_ref, whh_f_ref,
                        wih_b_ref, b_b_ref, whh_b_ref) in enumerate(layer_refs):
            is_last = layer_idx == n_layers - 1

            # ---- hoisted input projection (off the serial critical path) ----
            # bf16 MXU operands, f32 accumulation, f32 bias folded in once.
            if layer_idx == 0:
                inp = x_ref[...]                                   # (T*Bp, E) bf16
            else:
                inp = seq_sc[...].astype(jnp.bfloat16)             # (T*Bp, 2H)

            gx_f_sc[...] = jnp.dot(
                inp, wih_f_ref[...],
                preferred_element_type=jnp.float32) + b_f_ref[...]

            if not is_last:
                gx_b_sc[...] = jnp.dot(
                    inp, wih_b_ref[...],
                    preferred_element_type=jnp.float32) + b_b_ref[...]

                # ---- recurrence: fwd + bwd fused, two dense h@W_hh per step ----
                def step(s, carry):
                    h_f, c_f, h_b, c_b = carry
                    g_hh_f = jnp.dot(h_f.astype(jnp.bfloat16), whh_f_ref[...],
                                     preferred_element_type=jnp.float32)
                    g_hh_b = jnp.dot(h_b.astype(jnp.bfloat16), whh_b_ref[...],
                                     preferred_element_type=jnp.float32)
                    rf = pl.multiple_of(s * Bp, Bp)                # time s (fwd)
                    rb = pl.multiple_of((T - 1 - s) * Bp, Bp)      # time T-1-s (bwd)
                    gates_f = gx_f_sc[pl.ds(rf, Bp), :] + g_hh_f
                    gates_b = gx_b_sc[pl.ds(rb, Bp), :] + g_hh_b
                    h_f, c_f = lstm_cell(gates_f, c_f)
                    h_b, c_b = lstm_cell(gates_b, c_b)
                    seq_sc[pl.ds(rf, Bp), 0:H] = h_f
                    seq_sc[pl.ds(rb, Bp), H:2 * H] = h_b
                    return h_f, c_f, h_b, c_b

                z = jnp.zeros((Bp, H), jnp.float32)
                lax.fori_loop(0, T, step, (z, z, z, z), unroll=min(8, T))
            else:
                # Last layer: the classifier only needs output[:, -1, :]:
                #   * fwd half  = final fwd carry (run recurrence, NO seq stores)
                #   * bwd half at t=T-1 is the bwd direction's FIRST step from a zero
                #     state -> one cell evaluation on one time block (skip the rest).
                def step_f(s, carry):
                    h_f, c_f = carry
                    g_hh_f = jnp.dot(h_f.astype(jnp.bfloat16), whh_f_ref[...],
                                     preferred_element_type=jnp.float32)
                    rf = pl.multiple_of(s * Bp, Bp)
                    gates_f = gx_f_sc[pl.ds(rf, Bp), :] + g_hh_f
                    return lstm_cell(gates_f, c_f)

                z = jnp.zeros((Bp, H), jnp.float32)
                last_f, _ = lax.fori_loop(0, T, step_f, (z, z), unroll=min(8, T))

                gates_b_last = jnp.dot(
                    inp[(T - 1) * Bp:T * Bp, :], wih_b_ref[...],
                    preferred_element_type=jnp.float32) + b_b_ref[...]
                last_b, _ = lstm_cell(gates_b_last, jnp.zeros((Bp, H), jnp.float32))

        # ---- classifier on output[:, -1, :] = [fwd h_{T-1} | bwd h_{T-1}] ----
        # TODO(synk): nn.Dropout before the classifier is identity (eval mode).
        logits = (jnp.dot(last_f, cls_w_ref[0:H, :], preferred_element_type=jnp.float32)
                  + jnp.dot(last_b, cls_w_ref[H:2 * H, :], preferred_element_type=jnp.float32)
                  + cls_b_ref[...])
        out_ref[...] = logits

    return kernel


# ----------------------------------------------------------------------------
# Parameter construction (deterministic, synthetic; gate order [i, f, g, o])
# ----------------------------------------------------------------------------
def init_params(key, n_vocab, embedding_dim, hidden_dim, n_layers, n_classes,
                bidirectional=True):
    num_dirs = 2 if bidirectional else 1
    n_keys = 3 + 3 * n_layers * num_dirs          # emb + 3 per (layer, dir) + cls_w + cls_b
    keys = jax.random.split(key, n_keys)
    kit = iter(keys)

    emb = jax.random.normal(next(kit), (n_vocab, embedding_dim), jnp.float32) * 0.1
    emb = emb.at[0].set(0.0)  # padding_idx=0

    lstm_layers = []
    for layer in range(n_layers):
        d_in = embedding_dim if layer == 0 else hidden_dim * num_dirs
        dirs = {}
        for name in (("fwd", "bwd") if bidirectional else ("fwd",)):
            w_ih = jax.random.normal(next(kit), (d_in, 4 * hidden_dim), jnp.float32) * 0.1
            w_hh = jax.random.normal(next(kit), (hidden_dim, 4 * hidden_dim), jnp.float32) * 0.1
            b = jax.random.normal(next(kit), (1, 4 * hidden_dim), jnp.float32) * 0.1  # b_ih + b_hh
            dirs[name] = (w_ih, w_hh, b)
        lstm_layers.append(dirs)

    feat = hidden_dim * num_dirs
    cls_w = jax.random.normal(next(kit), (feat, n_classes), jnp.float32) * 0.1
    cls_b = jax.random.normal(next(kit), (n_classes,), jnp.float32) * 0.1

    return {"embedding": emb, "lstm": lstm_layers, "cls_w": cls_w, "cls_b": cls_b}


def _reorder_gates(w, H):
    # Column reorder [i | f | g | o] -> [i | f | o | g] (so sigmoid is contiguous 3H).
    return jnp.concatenate([w[..., 0:2 * H], w[..., 3 * H:4 * H], w[..., 2 * H:3 * H]],
                           axis=-1)


# ----------------------------------------------------------------------------
# Forward pass (single fused pallas_call)
# ----------------------------------------------------------------------------
@jax.jit
def sentence_classifier_forward(params, token_ids):
    """token_ids: (B, T) int32 -> logits (B, n_classes)."""
    emb_tab = params["embedding"]
    B, T = token_ids.shape
    n_layers = len(params["lstm"])
    H = params["lstm"][0]["fwd"][1].shape[0]
    C = params["cls_w"].shape[1]

    # Pad batch to a sublane multiple (8); padded rows use token 0 (zero embedding)
    # and are sliced off at the end.
    Bp = ((B + 7) // 8) * 8
    tok = jnp.pad(token_ids, ((0, Bp - B), (0, 0)))
    # Gather embeddings directly in time-major order: row t*Bp + b == token (b, t).
    x = jnp.take(emb_tab, jnp.transpose(tok).reshape(-1), axis=0)     # (T*Bp, E) f32
    x = x.astype(jnp.bfloat16)                                        # bf16 MXU operand

    inputs = [x]
    for layer in params["lstm"]:
        w_ih_f, w_hh_f, b_f = layer["fwd"]
        w_ih_b, w_hh_b, b_b = layer["bwd"]
        inputs += [
            _reorder_gates(w_ih_f, H).astype(jnp.bfloat16),
            _reorder_gates(b_f, H),                                   # biases stay f32
            _reorder_gates(w_hh_f, H).astype(jnp.bfloat16),
            _reorder_gates(w_ih_b, H).astype(jnp.bfloat16),
            _reorder_gates(b_b, H),
            _reorder_gates(w_hh_b, H).astype(jnp.bfloat16),
        ]
    inputs += [params["cls_w"], params["cls_b"].reshape(1, C)]

    # Scoped-VMEM budget sized to the actual resident footprint (+ headroom).
    scratch_bytes = (2 * T * Bp * 4 * H + T * Bp * 2 * H) * 4
    in_bytes = sum(int(a.size) * a.dtype.itemsize for a in inputs)
    out_bytes = Bp * C * 4
    vmem_limit = int(min(64 * 2 ** 20,
                         max(2 * (in_bytes + out_bytes) + scratch_bytes + (4 << 20),
                             8 << 20)))

    logits = pl.pallas_call(
        make_fused_kernel(T, Bp, H, n_layers),
        out_shape=jax.ShapeDtypeStruct((Bp, C), jnp.float32),
        scratch_shapes=[
            pltpu.VMEM((T * Bp, 4 * H), jnp.float32),   # hoisted input-gates, fwd
            pltpu.VMEM((T * Bp, 4 * H), jnp.float32),   # hoisted input-gates, bwd
            pltpu.VMEM((T * Bp, 2 * H), jnp.float32),   # fused layer output seq [fwd|bwd]
        ],
        compiler_params=pltpu.CompilerParams(vmem_limit_bytes=vmem_limit),
    )(*inputs)
    return logits[:B]


# ----------------------------------------------------------------------------
# Pure-JAX reference (same mixed-precision strategy, no Pallas) for correctness
# ----------------------------------------------------------------------------
def reference_forward(params, token_ids):
    bf16 = jnp.bfloat16
    emb = jnp.take(params["embedding"], token_ids, axis=0)            # (B, T, E)
    x = jnp.transpose(emb, (1, 0, 2)).astype(jnp.float32)             # (T, B, E)
    T, B, _ = x.shape
    for layer in params["lstm"]:
        outs = []
        for (w_ih, w_hh, b), reverse in ((layer["fwd"], False), (layer["bwd"], True)):
            H = w_hh.shape[0]
            h = jnp.zeros((B, H), jnp.float32)
            c = jnp.zeros((B, H), jnp.float32)
            seq = [None] * T
            order = range(T - 1, -1, -1) if reverse else range(T)
            for t in order:
                g = (jnp.dot(x[t].astype(bf16), w_ih.astype(bf16),
                             preferred_element_type=jnp.float32)
                     + jnp.dot(h.astype(bf16), w_hh.astype(bf16),
                               preferred_element_type=jnp.float32)
                     + b)
                i = jax.nn.sigmoid(g[:, 0 * H:1 * H])
                f = jax.nn.sigmoid(g[:, 1 * H:2 * H])
                gg = jnp.tanh(g[:, 2 * H:3 * H])
                o = jax.nn.sigmoid(g[:, 3 * H:4 * H])
                c = f * c + i * gg
                h = o * jnp.tanh(c)
                seq[t] = h
            outs.append(jnp.stack(seq, axis=0))
        x = jnp.concatenate(outs, axis=-1)                            # (T, B, 2H)
    last = x[-1]                                                      # (B, 2H)
    return jnp.dot(last, params["cls_w"]) + params["cls_b"]


# ----------------------------------------------------------------------------
if __name__ == "__main__":
    n_vocab, embedding_dim, hidden_dim = 50, 32, 32
    n_layers, n_classes = 2, 3
    B, T = 2, 8

    key = jax.random.PRNGKey(0)
    pkey, ikey = jax.random.split(key)

    params = init_params(pkey, n_vocab, embedding_dim, hidden_dim,
                         n_layers, n_classes, bidirectional=True)
    token_ids = jax.random.randint(ikey, (B, T), minval=0, maxval=n_vocab,
                                   dtype=jnp.int32)

    logits = sentence_classifier_forward(params, token_ids)
    jax.block_until_ready(logits)
    assert logits.shape == (B, n_classes)

    ref = reference_forward(params, token_ids)
    max_diff = float(jnp.max(jnp.abs(logits - ref)))
    assert jnp.allclose(logits, ref, atol=1e-2, rtol=2e-2), (
        f"mismatch vs pure-JAX reference, max abs diff {max_diff}")

    print("KERNEL_OK")
</pallas_src>

<mosaic_0001>
module attributes {stable_mosaic.version = 11 : i64} {
  func.func @kernel(%arg0: memref<64x32xbf16, #tpu.memory_space<vmem>>, %arg1: memref<32x128xbf16, #tpu.memory_space<vmem>>, %arg2: memref<1x128xf32, #tpu.memory_space<vmem>>, %arg3: memref<32x128xbf16, #tpu.memory_space<vmem>>, %arg4: memref<32x128xbf16, #tpu.memory_space<vmem>>, %arg5: memref<1x128xf32, #tpu.memory_space<vmem>>, %arg6: memref<32x128xbf16, #tpu.memory_space<vmem>>, %arg7: memref<64x128xbf16, #tpu.memory_space<vmem>>, %arg8: memref<1x128xf32, #tpu.memory_space<vmem>>, %arg9: memref<32x128xbf16, #tpu.memory_space<vmem>>, %arg10: memref<64x128xbf16, #tpu.memory_space<vmem>>, %arg11: memref<1x128xf32, #tpu.memory_space<vmem>>, %arg12: memref<32x128xbf16, #tpu.memory_space<vmem>>, %arg13: memref<64x3xf32, #tpu.memory_space<vmem>>, %arg14: memref<1x3xf32, #tpu.memory_space<vmem>>, %arg15: memref<8x3xf32, #tpu.memory_space<vmem>>, %arg16: memref<64x128xf32, #tpu.memory_space<vmem>>, %arg17: memref<64x128xf32, #tpu.memory_space<vmem>>, %arg18: memref<64x64xf32, #tpu.memory_space<vmem>>) attributes {dimension_semantics = [], scalar_prefetch = 0 : i64, scratch_operands = 3 : i64, tpu.core_type = #tpu.core_type<tc>} {
    %c0 = arith.constant 0 : index
    %c0_0 = arith.constant 0 : index
    %0 = vector.load %arg0[%c0, %c0_0] : memref<64x32xbf16, #tpu.memory_space<vmem>>, vector<64x32xbf16>
    %c0_1 = arith.constant 0 : index
    %c0_2 = arith.constant 0 : index
    %1 = vector.load %arg1[%c0_1, %c0_2] : memref<32x128xbf16, #tpu.memory_space<vmem>>, vector<32x128xbf16>
    %cst = arith.constant dense<0.000000e+00> : vector<64x128xf32>
    %2 = tpu.matmul %0, %1, %cst {dimension_numbers = #tpu.dot_dimension_numbers<[1], [0], [0], [1], [0, 0, 1, 1], [], []>} : vector<64x32xbf16>, vector<32x128xbf16>, vector<64x128xf32> -> vector<64x128xf32>
    %c0_3 = arith.constant 0 : index
    %c0_4 = arith.constant 0 : index
    %3 = vector.load %arg2[%c0_3, %c0_4] : memref<1x128xf32, #tpu.memory_space<vmem>>, vector<1x128xf32>
    %4 = vector.broadcast %3 : vector<1x128xf32> to vector<64x128xf32>
    %5 = arith.addf %2, %4 : vector<64x128xf32>
    %c0_5 = arith.constant 0 : index
    %c0_6 = arith.constant 0 : index
    %6 = vector.load %arg16[%c0_5, %c0_6] : memref<64x128xf32, #tpu.memory_space<vmem>>, vector<64x128xf32>
    tpu.vector_store %arg16[%c0_5, %c0_6], %5 {strides = array<i32>} : memref<64x128xf32, #tpu.memory_space<vmem>>, vector<64x128xf32>,
    %c0_7 = arith.constant 0 : index
    %c0_8 = arith.constant 0 : index
    %7 = vector.load %arg4[%c0_7, %c0_8] : memref<32x128xbf16, #tpu.memory_space<vmem>>, vector<32x128xbf16>
    %cst_9 = arith.constant dense<0.000000e+00> : vector<64x128xf32>
    %8 = tpu.matmul %0, %7, %cst_9 {dimension_numbers = #tpu.dot_dimension_numbers<[1], [0], [0], [1], [0, 0, 1, 1], [], []>} : vector<64x32xbf16>, vector<32x128xbf16>, vector<64x128xf32> -> vector<64x128xf32>
    %c0_10 = arith.constant 0 : index
    %c0_11 = arith.constant 0 : index
    %9 = vector.load %arg5[%c0_10, %c0_11] : memref<1x128xf32, #tpu.memory_space<vmem>>, vector<1x128xf32>
    %10 = vector.broadcast %9 : vector<1x128xf32> to vector<64x128xf32>
    %11 = arith.addf %8, %10 : vector<64x128xf32>
    %c0_12 = arith.constant 0 : index
    %c0_13 = arith.constant 0 : index
    %12 = vector.load %arg17[%c0_12, %c0_13] : memref<64x128xf32, #tpu.memory_space<vmem>>, vector<64x128xf32>
    tpu.vector_store %arg17[%c0_12, %c0_13], %11 {strides = array<i32>} : memref<64x128xf32, #tpu.memory_space<vmem>>, vector<64x128xf32>,
    %cst_14 = arith.constant 0.000000e+00 : f32
    %13 = vector.broadcast %cst_14 : f32 to vector<8x32xf32>
    %c0_i32 = arith.constant 0 : i32
    %14 = arith.truncf %13 : vector<8x32xf32> to vector<8x32xbf16>
    %c0_15 = arith.constant 0 : index
    %c0_16 = arith.constant 0 : index
    %15 = vector.load %arg3[%c0_15, %c0_16] : memref<32x128xbf16, #tpu.memory_space<vmem>>, vector<32x128xbf16>
    %cst_17 = arith.constant dense<0.000000e+00> : vector<8x128xf32>
    %16 = tpu.matmul %14, %15, %cst_17 {dimension_numbers = #tpu.dot_dimension_numbers<[1], [0], [0], [1], [0, 0, 1, 1], [], []>} : vector<8x32xbf16>, vector<32x128xbf16>, vector<8x128xf32> -> vector<8x128xf32>
    %17 = arith.truncf %13 : vector<8x32xf32> to vector<8x32xbf16>
    %c0_18 = arith.constant 0 : index
    %c0_19 = arith.constant 0 : index
    %18 = vector.load %arg6[%c0_18, %c0_19] : memref<32x128xbf16, #tpu.memory_space<vmem>>, vector<32x128xbf16>
    %cst_20 = arith.constant dense<0.000000e+00> : vector<8x128xf32>
    %19 = tpu.matmul %17, %18, %cst_20 {dimension_numbers = #tpu.dot_dimension_numbers<[1], [0], [0], [1], [0, 0, 1, 1], [], []>} : vector<8x32xbf16>, vector<32x128xbf16>, vector<8x128xf32> -> vector<8x128xf32>
    %c8_i32 = arith.constant 8 : i32
    %20 = arith.muli %c0_i32, %c8_i32 : i32
    %21 = tpu.assume_multiple %20, 8 : i32
    %c7_i32 = arith.constant 7 : i32
    %22 = arith.subi %c7_i32, %c0_i32 : i32
    %c8_i32_21 = arith.constant 8 : i32
    %23 = arith.muli %22, %c8_i32_21 : i32
    %24 = tpu.assume_multiple %23, 8 : i32
    %25 = arith.index_cast %21 : i32 to index
    %c0_22 = arith.constant 0 : index
    %26 = vector.load %arg16[%25, %c0_22] : memref<64x128xf32, #tpu.memory_space<vmem>>, vector<8x128xf32>
    %27 = arith.addf %26, %16 : vector<8x128xf32>
    %28 = arith.index_cast %24 : i32 to index
    %c0_23 = arith.constant 0 : index
    %29 = vector.load %arg17[%28, %c0_23] : memref<64x128xf32, #tpu.memory_space<vmem>>, vector<8x128xf32>
    %30 = arith.addf %29, %19 : vector<8x128xf32>
    %31 = vector.extract_strided_slice %27 {offsets = [0, 0], sizes = [8, 96], strides = [1, 1]} : vector<8x128xf32> to vector<8x96xf32>
    %32 = arith.negf %31 : vector<8x96xf32>
    %33 = math.exp %32 : vector<8x96xf32>
    %cst_24 = arith.constant 1.000000e+00 : f32
    %34 = vector.broadcast %cst_24 : f32 to vector<8x96xf32>
    %35 = arith.addf %34, %33 : vector<8x96xf32>
    %36 = arith.divf %34, %35 : vector<8x96xf32>
    %37 = vector.extract_strided_slice %27 {offsets = [0, 96], sizes = [8, 32], strides = [1, 1]} : vector<8x128xf32> to vector<8x32xf32>
    %38 = math.tanh %37 : vector<8x32xf32>
    %39 = vector.extract_strided_slice %36 {offsets = [0, 0], sizes = [8, 32], strides = [1, 1]} : vector<8x96xf32> to vector<8x32xf32>
    %40 = vector.extract_strided_slice %36 {offsets = [0, 32], sizes = [8, 32], strides = [1, 1]} : vector<8x96xf32> to vector<8x32xf32>
    %41 = vector.extract_strided_slice %36 {offsets = [0, 64], sizes = [8, 32], strides = [1, 1]} : vector<8x96xf32> to vector<8x32xf32>
    %42 = arith.mulf %40, %13 : vector<8x32xf32>
    %43 = arith.mulf %39, %38 : vector<8x32xf32>
    %44 = arith.addf %42, %43 : vector<8x32xf32>
    %45 = math.tanh %44 : vector<8x32xf32>
    %46 = arith.mulf %41, %45 : vector<8x32xf32>
    %47 = vector.extract_strided_slice %30 {offsets = [0, 0], sizes = [8, 96], strides = [1, 1]} : vector<8x128xf32> to vector<8x96xf32>
    %48 = arith.negf %47 : vector<8x96xf32>
    %49 = math.exp %48 : vector<8x96xf32>
    %cst_25 = arith.constant 1.000000e+00 : f32
    %50 = vector.broadcast %cst_25 : f32 to vector<8x96xf32>
    %51 = arith.addf %50, %49 : vector<8x96xf32>
    %52 = arith.divf %50, %51 : vector<8x96xf32>
    %53 = vector.extract_strided_slice %30 {offsets = [0, 96], sizes = [8, 32], strides = [1, 1]} : vector<8x128xf32> to vector<8x32xf32>
    %54 = math.tanh %53 : vector<8x32xf32>
    %55 = vector.extract_strided_slice %52 {offsets = [0, 0], sizes = [8, 32], strides = [1, 1]} : vector<8x96xf32> to vector<8x32xf32>
    %56 = vector.extract_strided_slice %52 {offsets = [0, 32], sizes = [8, 32], strides = [1, 1]} : vector<8x96xf32> to vector<8x32xf32>
    %57 = vector.extract_strided_slice %52 {offsets = [0, 64], sizes = [8, 32], strides = [1, 1]} : vector<8x96xf32> to vector<8x32xf32>
    %58 = arith.mulf %56, %13 : vector<8x32xf32>
    %59 = arith.mulf %55, %54 : vector<8x32xf32>
    %60 = arith.addf %58, %59 : vector<8x32xf32>
    %61 = math.tanh %60 : vector<8x32xf32>
    %62 = arith.mulf %57, %61 : vector<8x32xf32>
    %63 = arith.index_cast %21 : i32 to index
    %c0_26 = arith.constant 0 : index
    %64 = vector.load %arg18[%63, %c0_26] : memref<64x64xf32, #tpu.memory_space<vmem>>, vector<8x32xf32>
    tpu.vector_store %arg18[%63, %c0_26], %46 {strides = array<i32>} : memref<64x64xf32, #tpu.memory_space<vmem>>, vector<8x32xf32>,
    %65 = arith.index_cast %24 : i32 to index
    %c32 = arith.constant 32 : index
    %66 = vector.load %arg18[%65, %c32] : memref<64x64xf32, #tpu.memory_space<vmem>>, vector<8x32xf32>
    tpu.vector_store %arg18[%65, %c32], %62 {strides = array<i32>} : memref<64x64xf32, #tpu.memory_space<vmem>>, vector<8x32xf32>,
    %c1_i32 = arith.constant 1 : i32
    %67 = arith.truncf %46 : vector<8x32xf32> to vector<8x32xbf16>
    %c0_27 = arith.constant 0 : index
    %c0_28 = arith.constant 0 : index
    %68 = vector.load %arg3[%c0_27, %c0_28] : memref<32x128xbf16, #tpu.memory_space<vmem>>, vector<32x128xbf16>
    %cst_29 = arith.constant dense<0.000000e+00> : vector<8x128xf32>
    %69 = tpu.matmul %67, %68, %cst_29 {dimension_numbers = #tpu.dot_dimension_numbers<[1], [0], [0], [1], [0, 0, 1, 1], [], []>} : vector<8x32xbf16>, vector<32x128xbf16>, vector<8x128xf32> -> vector<8x128xf32>
    %70 = arith.truncf %62 : vector<8x32xf32> to vector<8x32xbf16>
    %c0_30 = arith.constant 0 : index
    %c0_31 = arith.constant 0 : index
    %71 = vector.load %arg6[%c0_30, %c0_31] : memref<32x128xbf16, #tpu.memory_space<vmem>>, vector<32x128xbf16>
    %cst_32 = arith.constant dense<0.000000e+00> : vector<8x128xf32>
    %72 = tpu.matmul %70, %71, %cst_32 {dimension_numbers = #tpu.dot_dimension_numbers<[1], [0], [0], [1], [0, 0, 1, 1], [], []>} : vector<8x32xbf16>, vector<32x128xbf16>, vector<8x128xf32> -> vector<8x128xf32>
    %c8_i32_33 = arith.constant 8 : i32
    %73 = arith.muli %c1_i32, %c8_i32_33 : i32
    %74 = tpu.assume_multiple %73, 8 : i32
    %c7_i32_34 = arith.constant 7 : i32
    %75 = arith.subi %c7_i32_34, %c1_i32 : i32
    %c8_i32_35 = arith.constant 8 : i32
    %76 = arith.muli %75, %c8_i32_35 : i32
    %77 = tpu.assume_multiple %76, 8 : i32
    %78 = arith.index_cast %74 : i32 to index
    %c0_36 = arith.constant 0 : index
    %79 = vector.load %arg16[%78, %c0_36] : memref<64x128xf32, #tpu.memory_space<vmem>>, vector<8x128xf32>
    %80 = arith.addf %79, %69 : vector<8x128xf32>
    %81 = arith.index_cast %77 : i32 to index
    %c0_37 = arith.constant 0 : index
    %82 = vector.load %arg17[%81, %c0_37] : memref<64x128xf32, #tpu.memory_space<vmem>>, vector<8x128xf32>
    %83 = arith.addf %82, %72 : vector<8x128xf32>
    %84 = vector.extract_strided_slice %80 {offsets = [0, 0], sizes = [8, 96], strides = [1, 1]} : vector<8x128xf32> to vector<8x96xf32>
    %85 = arith.negf %84 : vector<8x96xf32>
    %86 = math.exp %85 : vector<8x96xf32>
    %cst_38 = arith.constant 1.000000e+00 : f32
    %87 = vector.broadcast %cst_38 : f32 to vector<8x96xf32>
    %88 = arith.addf %87, %86 : vector<8x96xf32>
    %89 = arith.divf %87, %88 : vector<8x96xf32>
    %90 = vector.extract_strided_slice %80 {offsets = [0, 96], sizes = [8, 32], strides = [1, 1]} : vector<8x128xf32> to vector<8x32xf32>
    %91 = math.tanh %90 : vector<8x32xf32>
    %92 = vector.extract_strided_slice %89 {offsets = [0, 0], sizes = [8, 32], strides = [1, 1]} : vector<8x96xf32> to vector<8x32xf32>
    %93 = vector.extract_strided_slice %89 {offsets = [0, 32], sizes = [8, 32], strides = [1, 1]} : vector<8x96xf32> to vector<8x32xf32>
    %94 = vector.extract_strided_slice %89 {offsets = [0, 64], sizes = [8, 32], strides = [1, 1]} : vector<8x96xf32> to vector<8x32xf32>
    %95 = arith.mulf %93, %44 : vector<8x32xf32>
    %96 = arith.mulf %92, %91 : vector<8x32xf32>
    %97 = arith.addf %95, %96 : vector<8x32xf32>
    %98 = math.tanh %97 : vector<8x32xf32>
    %99 = arith.mulf %94, %98 : vector<8x32xf32>
    %100 = vector.extract_strided_slice %83 {offsets = [0, 0], sizes = [8, 96], strides = [1, 1]} : vector<8x128xf32> to vector<8x96xf32>
    %101 = arith.negf %100 : vector<8x96xf32>
    %102 = math.exp %101 : vector<8x96xf32>
    %cst_39 = arith.constant 1.000000e+00 : f32
    %103 = vector.broadcast %cst_39 : f32 to vector<8x96xf32>
    %104 = arith.addf %103, %102 : vector<8x96xf32>
    %105 = arith.divf %103, %104 : vector<8x96xf32>
    %106 = vector.extract_strided_slice %83 {offsets = [0, 96], sizes = [8, 32], strides = [1, 1]} : vector<8x128xf32> to vector<8x32xf32>
    %107 = math.tanh %106 : vector<8x32xf32>
    %108 = vector.extract_strided_slice %105 {offsets = [0, 0], sizes = [8, 32], strides = [1, 1]} : vector<8x96xf32> to vector<8x32xf32>
    %109 = vector.extract_strided_slice %105 {offsets = [0, 32], sizes = [8, 32], strides = [1, 1]} : vector<8x96xf32> to vector<8x32xf32>
    %110 = vector.extract_strided_slice %105 {offsets = [0, 64], sizes = [8, 32], strides = [1, 1]} : vector<8x96xf32> to vector<8x32xf32>
    %111 = arith.mulf %109, %60 : vector<8x32xf32>
    %112 = arith.mulf %108, %107 : vector<8x32xf32>
    %113 = arith.addf %111, %112 : vector<8x32xf32>
    %114 = math.tanh %113 : vector<8x32xf32>
    %115 = arith.mulf %110, %114 : vector<8x32xf32>
    %116 = arith.index_cast %74 : i32 to index
    %c0_40 = arith.constant 0 : index
    %117 = vector.load %arg18[%116, %c0_40] : memref<64x64xf32, #tpu.memory_space<vmem>>, vector<8x32xf32>
    tpu.vector_store %arg18[%116, %c0_40], %99 {strides = array<i32>} : memref<64x64xf32, #tpu.memory_space<vmem>>, vector<8x32xf32>,
    %118 = arith.index_cast %77 : i32 to index
    %c32_41 = arith.constant 32 : index
    %119 = vector.load %arg18[%118, %c32_41] : memref<64x64xf32, #tpu.memory_space<vmem>>, vector<8x32xf32>
    tpu.vector_store %arg18[%118, %c32_41], %115 {strides = array<i32>} : memref<64x64xf32, #tpu.memory_space<vmem>>, vector<8x32xf32>,
    %c2_i32 = arith.constant 2 : i32
    %120 = arith.truncf %99 : vector<8x32xf32> to vector<8x32xbf16>
    %c0_42 = arith.constant 0 : index
    %c0_43 = arith.constant 0 : index
    %121 = vector.load %arg3[%c0_42, %c0_43] : memref<32x128xbf16, #tpu.memory_space<vmem>>, vector<32x128xbf16>
    %cst_44 = arith.constant dense<0.000000e+00> : vector<8x128xf32>
    %122 = tpu.matmul %120, %121, %cst_44 {dimension_numbers = #tpu.dot_dimension_numbers<[1], [0], [0], [1], [0, 0, 1, 1], [], []>} : vector<8x32xbf16>, vector<32x128xbf16>, vector<8x128xf32> -> vector<8x128xf32>
    %123 = arith.truncf %115 : vector<8x32xf32> to vector<8x32xbf16>
    %c0_45 = arith.constant 0 : index
    %c0_46 = arith.constant 0 : index
    %124 = vector.load %arg6[%c0_45, %c0_46] : memref<32x128xbf16, #tpu.memory_space<vmem>>, vector<32x128xbf16>
    %cst_47 = arith.constant dense<0.000000e+00> : vector<8x128xf32>
    %125 = tpu.matmul %123, %124, %cst_47 {dimension_numbers = #tpu.dot_dimension_numbers<[1], [0], [0], [1], [0, 0, 1, 1], [], []>} : vector<8x32xbf16>, vector<32x128xbf16>, vector<8x128xf32> -> vector<8x128xf32>
    %c8_i32_48 = arith.constant 8 : i32
    %126 = arith.muli %c2_i32, %c8_i32_48 : i32
    %127 = tpu.assume_multiple %126, 8 : i32
    %c7_i32_49 = arith.constant 7 : i32
    %128 = arith.subi %c7_i32_49, %c2_i32 : i32
    %c8_i32_50 = arith.constant 8 : i32
    %129 = arith.muli %128, %c8_i32_50 : i32
    %130 = tpu.assume_multiple %129, 8 : i32
    %131 = arith.index_cast %127 : i32 to index
    %c0_51 = arith.constant 0 : index
    %132 = vector.load %arg16[%131, %c0_51] : memref<64x128xf32, #tpu.memory_space<vmem>>, vector<8x128xf32>
    %133 = arith.addf %132, %122 : vector<8x128xf32>
    %134 = arith.index_cast %130 : i32 to index
    %c0_52 = arith.constant 0 : index
    %135 = vector.load %arg17[%134, %c0_52] : memref<64x128xf32, #tpu.memory_space<vmem>>, vector<8x128xf32>
    %136 = arith.addf %135, %125 : vector<8x128xf32>
    %137 = vector.extract_strided_slice %133 {offsets = [0, 0], sizes = [8, 96], strides = [1, 1]} : vector<8x128xf32> to vector<8x96xf32>
    %138 = arith.negf %137 : vector<8x96xf32>
    %139 = math.exp %138 : vector<8x96xf32>
    %cst_53 = arith.constant 1.000000e+00 : f32
    %140 = vector.broadcast %cst_53 : f32 to vector<8x96xf32>
    %141 = arith.addf %140, %139 : vector<8x96xf32>
    %142 = arith.divf %140, %141 : vector<8x96xf32>
    %143 = vector.extract_strided_slice %133 {offsets = [0, 96], sizes = [8, 32], strides = [1, 1]} : vector<8x128xf32> to vector<8x32xf32>
    %144 = math.tanh %143 : vector<8x32xf32>
    %145 = vector.extract_strided_slice %142 {offsets = [0, 0], sizes = [8, 32], strides = [1, 1]} : vector<8x96xf32> to vector<8x32xf32>
    %146 = vector.extract_strided_slice %142 {offsets = [0, 32], sizes = [8, 32], strides = [1, 1]} : vector<8x96xf32> to vector<8x32xf32>
    %147 = vector.extract_strided_slice %142 {offsets = [0, 64], sizes = [8, 32], strides = [1, 1]} : vector<8x96xf32> to vector<8x32xf32>
    %148 = arith.mulf %146, %97 : vector<8x32xf32>
    %149 = arith.mulf %145, %144 : vector<8x32xf32>
    %150 = arith.addf %148, %149 : vector<8x32xf32>
    %151 = math.tanh %150 : vector<8x32xf32>
    %152 = arith.mulf %147, %151 : vector<8x32xf32>
    %153 = vector.extract_strided_slice %136 {offsets = [0, 0], sizes = [8, 96], strides = [1, 1]} : vector<8x128xf32> to vector<8x96xf32>
    %154 = arith.negf %153 : vector<8x96xf32>
    %155 = math.exp %154 : vector<8x96xf32>
    %cst_54 = arith.constant 1.000000e+00 : f32
    %156 = vector.broadcast %cst_54 : f32 to vector<8x96xf32>
    %157 = arith.addf %156, %155 : vector<8x96xf32>
    %158 = arith.divf %156, %157 : vector<8x96xf32>
    %159 = vector.extract_strided_slice %136 {offsets = [0, 96], sizes = [8, 32], strides = [1, 1]} : vector<8x128xf32> to vector<8x32xf32>
    %160 = math.tanh %159 : vector<8x32xf32>
    %161 = vector.extract_strided_slice %158 {offsets = [0, 0], sizes = [8, 32], strides = [1, 1]} : vector<8x96xf32> to vector<8x32xf32>
    %162 = vector.extract_strided_slice %158 {offsets = [0, 32], sizes = [8, 32], strides = [1, 1]} : vector<8x96xf32> to vector<8x32xf32>
    %163 = vector.extract_strided_slice %158 {offsets = [0, 64], sizes = [8, 32], strides = [1, 1]} : vector<8x96xf32> to vector<8x32xf32>
    %164 = arith.mulf %162, %113 : vector<8x32xf32>
    %165 = arith.mulf %161, %160 : vector<8x32xf32>
    %166 = arith.addf %164, %165 : vector<8x32xf32>
    %167 = math.tanh %166 : vector<8x32xf32>
    %168 = arith.mulf %163, %167 : vector<8x32xf32>
    %169 = arith.index_cast %127 : i32 to index
    %c0_55 = arith.constant 0 : index
    %170 = vector.load %arg18[%169, %c0_55] : memref<64x64xf32, #tpu.memory_space<vmem>>, vector<8x32xf32>
    tpu.vector_store %arg18[%169, %c0_55], %152 {strides = array<i32>} : memref<64x64xf32, #tpu.memory_space<vmem>>, vector<8x32xf32>,
    %171 = arith.index_cast %130 : i32 to index
    %c32_56 = arith.constant 32 : index
    %172 = vector.load %arg18[%171, %c32_56] : memref<64x64xf32, #tpu.memory_space<vmem>>, vector<8x32xf32>
    tpu.vector_store %arg18[%171, %c32_56], %168 {strides = array<i32>} : memref<64x64xf32, #tpu.memory_space<vmem>>, vector<8x32xf32>,
    %c3_i32 = arith.constant 3 : i32
    %173 = arith.truncf %152 : vector<8x32xf32> to vector<8x32xbf16>
    %c0_57 = arith.constant 0 : index
    %c0_58 = arith.constant 0 : index
    %174 = vector.load %arg3[%c0_57, %c0_58] : memref<32x128xbf16, #tpu.memory_space<vmem>>, vector<32x128xbf16>
    %cst_59 = arith.constant dense<0.000000e+00> : vector<8x128xf32>
    %175 = tpu.matmul %173, %174, %cst_59 {dimension_numbers = #tpu.dot_dimension_numbers<[1], [0], [0], [1], [0, 0, 1, 1], [], []>} : vector<8x32xbf16>, vector<32x128xbf16>, vector<8x128xf32> -> vector<8x128xf32>
    %176 = arith.truncf %168 : vector<8x32xf32> to vector<8x32xbf16>
    %c0_60 = arith.constant 0 : index
    %c0_61 = arith.constant 0 : index
    %177 = vector.load %arg6[%c0_60, %c0_61] : memref<32x128xbf16, #tpu.memory_space<vmem>>, vector<32x128xbf16>
    %cst_62 = arith.constant dense<0.000000e+00> : vector<8x128xf32>
    %178 = tpu.matmul %176, %177, %cst_62 {dimension_numbers = #tpu.dot_dimension_numbers<[1], [0], [0], [1], [0, 0, 1, 1], [], []>} : vector<8x32xbf16>, vector<32x128xbf16>, vector<8x128xf32> -> vector<8x128xf32>
    %c8_i32_63 = arith.constant 8 : i32
    %179 = arith.muli %c3_i32, %c8_i32_63 : i32
    %180 = tpu.assume_multiple %179, 8 : i32
    %c7_i32_64 = arith.constant 7 : i32
    %181 = arith.subi %c7_i32_64, %c3_i32 : i32
    %c8_i32_65 = arith.constant 8 : i32
    %182 = arith.muli %181, %c8_i32_65 : i32
    %183 = tpu.assume_multiple %182, 8 : i32
    %184 = arith.index_cast %180 : i32 to index
    %c0_66 = arith.constant 0 : index
    %185 = vector.load %arg16[%184, %c0_66] : memref<64x128xf32, #tpu.memory_space<vmem>>, vector<8x128xf32>
    %186 = arith.addf %185, %175 : vector<8x128xf32>
    %187 = arith.index_cast %183 : i32 to index
    %c0_67 = arith.constant 0 : index
    %188 = vector.load %arg17[%187, %c0_67] : memref<64x128xf32, #tpu.memory_space<vmem>>, vector<8x128xf32>
    %189 = arith.addf %188, %178 : vector<8x128xf32>
    %190 = vector.extract_strided_slice %186 {offsets = [0, 0], sizes = [8, 96], strides = [1, 1]} : vector<8x128xf32> to vector<8x96xf32>
    %191 = arith.negf %190 : vector<8x96xf32>
    %192 = math.exp %191 : vector<8x96xf32>
    %cst_68 = arith.constant 1.000000e+00 : f32
    %193 = vector.broadcast %cst_68 : f32 to vector<8x96xf32>
    %194 = arith.addf %193, %192 : vector<8x96xf32>
    %195 = arith.divf %193, %194 : vector<8x96xf32>
    %196 = vector.extract_strided_slice %186 {offsets = [0, 96], sizes = [8, 32], strides = [1, 1]} : vector<8x128xf32> to vector<8x32xf32>
    %197 = math.tanh %196 : vector<8x32xf32>
    %198 = vector.extract_strided_slice %195 {offsets = [0, 0], sizes = [8, 32], strides = [1, 1]} : vector<8x96xf32> to vector<8x32xf32>
    %199 = vector.extract_strided_slice %195 {offsets = [0, 32], sizes = [8, 32], strides = [1, 1]} : vector<8x96xf32> to vector<8x32xf32>
    %200 = vector.extract_strided_slice %195 {offsets = [0, 64], sizes = [8, 32], strides = [1, 1]} : vector<8x96xf32> to vector<8x32xf32>
    %201 = arith.mulf %199, %150 : vector<8x32xf32>
    %202 = arith.mulf %198, %197 : vector<8x32xf32>
    %203 = arith.addf %201, %202 : vector<8x32xf32>
    %204 = math.tanh %203 : vector<8x32xf32>
    %205 = arith.mulf %200, %204 : vector<8x32xf32>
    %206 = vector.extract_strided_slice %189 {offsets = [0, 0], sizes = [8, 96], strides = [1, 1]} : vector<8x128xf32> to vector<8x96xf32>
    %207 = arith.negf %206 : vector<8x96xf32>
    %208 = math.exp %207 : vector<8x96xf32>
    %cst_69 = arith.constant 1.000000e+00 : f32
    %209 = vector.broadcast %cst_69 : f32 to vector<8x96xf32>
    %210 = arith.addf %209, %208 : vector<8x96xf32>
    %211 = arith.divf %209, %210 : vector<8x96xf32>
    %212 = vector.extract_strided_slice %189 {offsets = [0, 96], sizes = [8, 32], strides = [1, 1]} : vector<8x128xf32> to vector<8x32xf32>
    %213 = math.tanh %212 : vector<8x32xf32>
    %214 = vector.extract_strided_slice %211 {offsets = [0, 0], sizes = [8, 32], strides = [1, 1]} : vector<8x96xf32> to vector<8x32xf32>
    %215 = vector.extract_strided_slice %211 {offsets = [0, 32], sizes = [8, 32], strides = [1, 1]} : vector<8x96xf32> to vector<8x32xf32>
    %216 = vector.extract_strided_slice %211 {offsets = [0, 64], sizes = [8, 32], strides = [1, 1]} : vector<8x96xf32> to vector<8x32xf32>
    %217 = arith.mulf %215, %166 : vector<8x32xf32>
    %218 = arith.mulf %214, %213 : vector<8x32xf32>
    %219 = arith.addf %217, %218 : vector<8x32xf32>
    %220 = math.tanh %219 : vector<8x32xf32>
    %221 = arith.mulf %216, %220 : vector<8x32xf32>
    %222 = arith.index_cast %180 : i32 to index
    %c0_70 = arith.constant 0 : index
    %223 = vector.load %arg18[%222, %c0_70] : memref<64x64xf32, #tpu.memory_space<vmem>>, vector<8x32xf32>
    tpu.vector_store %arg18[%222, %c0_70], %205 {strides = array<i32>} : memref<64x64xf32, #tpu.memory_space<vmem>>, vector<8x32xf32>,
    %224 = arith.index_cast %183 : i32 to index
    %c32_71 = arith.constant 32 : index
    %225 = vector.load %arg18[%224, %c32_71] : memref<64x64xf32, #tpu.memory_space<vmem>>, vector<8x32xf32>
    tpu.vector_store %arg18[%224, %c32_71], %221 {strides = array<i32>} : memref<64x64xf32, #tpu.memory_space<vmem>>, vector<8x32xf32>,
    %c4_i32 = arith.constant 4 : i32
    %226 = arith.truncf %205 : vector<8x32xf32> to vector<8x32xbf16>
    %c0_72 = arith.constant 0 : index
    %c0_73 = arith.constant 0 : index
    %227 = vector.load %arg3[%c0_72, %c0_73] : memref<32x128xbf16, #tpu.memory_space<vmem>>, vector<32x128xbf16>
    %cst_74 = arith.constant dense<0.000000e+00> : vector<8x128xf32>
    %228 = tpu.matmul %226, %227, %cst_74 {dimension_numbers = #tpu.dot_dimension_numbers<[1], [0], [0], [1], [0, 0, 1, 1], [], []>} : vector<8x32xbf16>, vector<32x128xbf16>, vector<8x128xf32> -> vector<8x128xf32>
    %229 = arith.truncf %221 : vector<8x32xf32> to vector<8x32xbf16>
    %c0_75 = arith.constant 0 : index
    %c0_76 = arith.constant 0 : index
    %230 = vector.load %arg6[%c0_75, %c0_76] : memref<32x128xbf16, #tpu.memory_space<vmem>>, vector<32x128xbf16>
    %cst_77 = arith.constant dense<0.000000e+00> : vector<8x128xf32>
    %231 = tpu.matmul %229, %230, %cst_77 {dimension_numbers = #tpu.dot_dimension_numbers<[1], [0], [0], [1], [0, 0, 1, 1], [], []>} : vector<8x32xbf16>, vector<32x128xbf16>, vector<8x128xf32> -> vector<8x128xf32>
    %c8_i32_78 = arith.constant 8 : i32
    %232 = arith.muli %c4_i32, %c8_i32_78 : i32
    %233 = tpu.assume_multiple %232, 8 : i32
    %c7_i32_79 = arith.constant 7 : i32
    %234 = arith.subi %c7_i32_79, %c4_i32 : i32
    %c8_i32_80 = arith.constant 8 : i32
    %235 = arith.muli %234, %c8_i32_80 : i32
    %236 = tpu.assume_multiple %235, 8 : i32
    %237 = arith.index_cast %233 : i32 to index
    %c0_81 = arith.constant 0 : index
    %238 = vector.load %arg16[%237, %c0_81] : memref<64x128xf32, #tpu.memory_space<vmem>>, vector<8x128xf32>
    %239 = arith.addf %238, %228 : vector<8x128xf32>
    %240 = arith.index_cast %236 : i32 to index
    %c0_82 = arith.constant 0 : index
    %241 = vector.load %arg17[%240, %c0_82] : memref<64x128xf32, #tpu.memory_space<vmem>>, vector<8x128xf32>
    %242 = arith.addf %241, %231 : vector<8x128xf32>
    %243 = vector.extract_strided_slice %239 {offsets = [0, 0], sizes = [8, 96], strides = [1, 1]} : vector<8x128xf32> to vector<8x96xf32>
    %244 = arith.negf %243 : vector<8x96xf32>
    %245 = math.exp %244 : vector<8x96xf32>
    %cst_83 = arith.constant 1.000000e+00 : f32
    %246 = vector.broadcast %cst_83 : f32 to vector<8x96xf32>
    %247 = arith.addf %246, %245 : vector<8x96xf32>
    %248 = arith.divf %246, %247 : vector<8x96xf32>
    %249 = vector.extract_strided_slice %239 {offsets = [0, 96], sizes = [8, 32], strides = [1, 1]} : vector<8x128xf32> to vector<8x32xf32>
    %250 = math.tanh %249 : vector<8x32xf32>
    %251 = vector.extract_strided_slice %248 {offsets = [0, 0], sizes = [8, 32], strides = [1, 1]} : vector<8x96xf32> to vector<8x32xf32>
    %252 = vector.extract_strided_slice %248 {offsets = [0, 32], sizes = [8, 32], strides = [1, 1]} : vector<8x96xf32> to vector<8x32xf32>
    %253 = vector.extract_strided_slice %248 {offsets = [0, 64], sizes = [8, 32], strides = [1, 1]} : vector<8x96xf32> to vector<8x32xf32>
    %254 = arith.mulf %252, %203 : vector<8x32xf32>
    %255 = arith.mulf %251, %250 : vector<8x32xf32>
    %256 = arith.addf %254, %255 : vector<8x32xf32>
    %257 = math.tanh %256 : vector<8x32xf32>
    %258 = arith.mulf %253, %257 : vector<8x32xf32>
    %259 = vector.extract_strided_slice %242 {offsets = [0, 0], sizes = [8, 96], strides = [1, 1]} : vector<8x128xf32> to vector<8x96xf32>
    %260 = arith.negf %259 : vector<8x96xf32>
    %261 = math.exp %260 : vector<8x96xf32>
    %cst_84 = arith.constant 1.000000e+00 : f32
    %262 = vector.broadcast %cst_84 : f32 to vector<8x96xf32>
    %263 = arith.addf %262, %261 : vector<8x96xf32>
    %264 = arith.divf %262, %263 : vector<8x96xf32>
    %265 = vector.extract_strided_slice %242 {offsets = [0, 96], sizes = [8, 32], strides = [1, 1]} : vector<8x128xf32> to vector<8x32xf32>
    %266 = math.tanh %265 : vector<8x32xf32>
    %267 = vector.extract_strided_slice %264 {offsets = [0, 0], sizes = [8, 32], strides = [1, 1]} : vector<8x96xf32> to vector<8x32xf32>
    %268 = vector.extract_strided_slice %264 {offsets = [0, 32], sizes = [8, 32], strides = [1, 1]} : vector<8x96xf32> to vector<8x32xf32>
    %269 = vector.extract_strided_slice %264 {offsets = [0, 64], sizes = [8, 32], strides = [1, 1]} : vector<8x96xf32> to vector<8x32xf32>
    %270 = arith.mulf %268, %219 : vector<8x32xf32>
    %271 = arith.mulf %267, %266 : vector<8x32xf32>
    %272 = arith.addf %270, %271 : vector<8x32xf32>
    %273 = math.tanh %272 : vector<8x32xf32>
    %274 = arith.mulf %269, %273 : vector<8x32xf32>
    %275 = arith.index_cast %233 : i32 to index
    %c0_85 = arith.constant 0 : index
    %276 = vector.load %arg18[%275, %c0_85] : memref<64x64xf32, #tpu.memory_space<vmem>>, vector<8x32xf32>
    tpu.vector_store %arg18[%275, %c0_85], %258 {strides = array<i32>} : memref<64x64xf32, #tpu.memory_space<vmem>>, vector<8x32xf32>,
    %277 = arith.index_cast %236 : i32 to index
    %c32_86 = arith.constant 32 : index
    %278 = vector.load %arg18[%277, %c32_86] : memref<64x64xf32, #tpu.memory_space<vmem>>, vector<8x32xf32>
    tpu.vector_store %arg18[%277, %c32_86], %274 {strides = array<i32>} : memref<64x64xf32, #tpu.memory_space<vmem>>, vector<8x32xf32>,
    %c5_i32 = arith.constant 5 : i32
    %279 = arith.truncf %258 : vector<8x32xf32> to vector<8x32xbf16>
    %c0_87 = arith.constant 0 : index
    %c0_88 = arith.constant 0 : index
    %280 = vector.load %arg3[%c0_87, %c0_88] : memref<32x128xbf16, #tpu.memory_space<vmem>>, vector<32x128xbf16>
    %cst_89 = arith.constant dense<0.000000e+00> : vector<8x128xf32>
    %281 = tpu.matmul %279, %280, %cst_89 {dimension_numbers = #tpu.dot_dimension_numbers<[1], [0], [0], [1], [0, 0, 1, 1], [], []>} : vector<8x32xbf16>, vector<32x128xbf16>, vector<8x128xf32> -> vector<8x128xf32>
    %282 = arith.truncf %274 : vector<8x32xf32> to vector<8x32xbf16>
    %c0_90 = arith.constant 0 : index
    %c0_91 = arith.constant 0 : index
    %283 = vector.load %arg6[%c0_90, %c0_91] : memref<32x128xbf16, #tpu.memory_space<vmem>>, vector<32x128xbf16>
    %cst_92 = arith.constant dense<0.000000e+00> : vector<8x128xf32>
    %284 = tpu.matmul %282, %283, %cst_92 {dimension_numbers = #tpu.dot_dimension_numbers<[1], [0], [0], [1], [0, 0, 1, 1], [], []>} : vector<8x32xbf16>, vector<32x128xbf16>, vector<8x128xf32> -> vector<8x128xf32>
    %c8_i32_93 = arith.constant 8 : i32
    %285 = arith.muli %c5_i32, %c8_i32_93 : i32
    %286 = tpu.assume_multiple %285, 8 : i32
    %c7_i32_94 = arith.constant 7 : i32
    %287 = arith.subi %c7_i32_94, %c5_i32 : i32
    %c8_i32_95 = arith.constant 8 : i32
    %288 = arith.muli %287, %c8_i32_95 : i32
    %289 = tpu.assume_multiple %288, 8 : i32
    %290 = arith.index_cast %286 : i32 to index
    %c0_96 = arith.constant 0 : index
    %291 = vector.load %arg16[%290, %c0_96] : memref<64x128xf32, #tpu.memory_space<vmem>>, vector<8x128xf32>
    %292 = arith.addf %291, %281 : vector<8x128xf32>
    %293 = arith.index_cast %289 : i32 to index
    %c0_97 = arith.constant 0 : index
    %294 = vector.load %arg17[%293, %c0_97] : memref<64x128xf32, #tpu.memory_space<vmem>>, vector<8x128xf32>
    %295 = arith.addf %294, %284 : vector<8x128xf32>
    %296 = vector.extract_strided_slice %292 {offsets = [0, 0], sizes = [8, 96], strides = [1, 1]} : vector<8x128xf32> to vector<8x96xf32>
    %297 = arith.negf %296 : vector<8x96xf32>
    %298 = math.exp %297 : vector<8x96xf32>
    %cst_98 = arith.constant 1.000000e+00 : f32
    %299 = vector.broadcast %cst_98 : f32 to vector<8x96xf32>
    %300 = arith.addf %299, %298 : vector<8x96xf32>
    %301 = arith.divf %299, %300 : vector<8x96xf32>
    %302 = vector.extract_strided_slice %292 {offsets = [0, 96], sizes = [8, 32], strides = [1, 1]} : vector<8x128xf32> to vector<8x32xf32>
    %303 = math.tanh %302 : vector<8x32xf32>
    %304 = vector.extract_strided_slice %301 {offsets = [0, 0], sizes = [8, 32], strides = [1, 1]} : vector<8x96xf32> to vector<8x32xf32>
    %305 = vector.extract_strided_slice %301 {offsets = [0, 32], sizes = [8, 32], strides = [1, 1]} : vector<8x96xf32> to vector<8x32xf32>
    %306 = vector.extract_strided_slice %301 {offsets = [0, 64], sizes = [8, 32], strides = [1, 1]} : vector<8x96xf32> to vector<8x32xf32>
    %307 = arith.mulf %305, %256 : vector<8x32xf32>
    %308 = arith.mulf %304, %303 : vector<8x32xf32>
    %309 = arith.addf %307, %308 : vector<8x32xf32>
    %310 = math.tanh %309 : vector<8x32xf32>
    %311 = arith.mulf %306, %310 : vector<8x32xf32>
    %312 = vector.extract_strided_slice %295 {offsets = [0, 0], sizes = [8, 96], strides = [1, 1]} : vector<8x128xf32> to vector<8x96xf32>
    %313 = arith.negf %312 : vector<8x96xf32>
    %314 = math.exp %313 : vector<8x96xf32>
    %cst_99 = arith.constant 1.000000e+00 : f32
    %315 = vector.broadcast %cst_99 : f32 to vector<8x96xf32>
    %316 = arith.addf %315, %314 : vector<8x96xf32>
    %317 = arith.divf %315, %316 : vector<8x96xf32>
    %318 = vector.extract_strided_slice %295 {offsets = [0, 96], sizes = [8, 32], strides = [1, 1]} : vector<8x128xf32> to vector<8x32xf32>
    %319 = math.tanh %318 : vector<8x32xf32>
    %320 = vector.extract_strided_slice %317 {offsets = [0, 0], sizes = [8, 32], strides = [1, 1]} : vector<8x96xf32> to vector<8x32xf32>
    %321 = vector.extract_strided_slice %317 {offsets = [0, 32], sizes = [8, 32], strides = [1, 1]} : vector<8x96xf32> to vector<8x32xf32>
    %322 = vector.extract_strided_slice %317 {offsets = [0, 64], sizes = [8, 32], strides = [1, 1]} : vector<8x96xf32> to vector<8x32xf32>
    %323 = arith.mulf %321, %272 : vector<8x32xf32>
    %324 = arith.mulf %320, %319 : vector<8x32xf32>
    %325 = arith.addf %323, %324 : vector<8x32xf32>
    %326 = math.tanh %325 : vector<8x32xf32>
    %327 = arith.mulf %322, %326 : vector<8x32xf32>
    %328 = arith.index_cast %286 : i32 to index
    %c0_100 = arith.constant 0 : index
    %329 = vector.load %arg18[%328, %c0_100] : memref<64x64xf32, #tpu.memory_space<vmem>>, vector<8x32xf32>
    tpu.vector_store %arg18[%328, %c0_100], %311 {strides = array<i32>} : memref<64x64xf32, #tpu.memory_space<vmem>>, vector<8x32xf32>,
    %330 = arith.index_cast %289 : i32 to index
    %c32_101 = arith.constant 32 : index
    %331 = vector.load %arg18[%330, %c32_101] : memref<64x64xf32, #tpu.memory_space<vmem>>, vector<8x32xf32>
    tpu.vector_store %arg18[%330, %c32_101], %327 {strides = array<i32>} : memref<64x64xf32, #tpu.memory_space<vmem>>, vector<8x32xf32>,
    %c6_i32 = arith.constant 6 : i32
    %332 = arith.truncf %311 : vector<8x32xf32> to vector<8x32xbf16>
    %c0_102 = arith.constant 0 : index
    %c0_103 = arith.constant 0 : index
    %333 = vector.load %arg3[%c0_102, %c0_103] : memref<32x128xbf16, #tpu.memory_space<vmem>>, vector<32x128xbf16>
    %cst_104 = arith.constant dense<0.000000e+00> : vector<8x128xf32>
    %334 = tpu.matmul %332, %333, %cst_104 {dimension_numbers = #tpu.dot_dimension_numbers<[1], [0], [0], [1], [0, 0, 1, 1], [], []>} : vector<8x32xbf16>, vector<32x128xbf16>, vector<8x128xf32> -> vector<8x128xf32>
    %335 = arith.truncf %327 : vector<8x32xf32> to vector<8x32xbf16>
    %c0_105 = arith.constant 0 : index
    %c0_106 = arith.constant 0 : index
    %336 = vector.load %arg6[%c0_105, %c0_106] : memref<32x128xbf16, #tpu.memory_space<vmem>>, vector<32x128xbf16>
    %cst_107 = arith.constant dense<0.000000e+00> : vector<8x128xf32>
    %337 = tpu.matmul %335, %336, %cst_107 {dimension_numbers = #tpu.dot_dimension_numbers<[1], [0], [0], [1], [0, 0, 1, 1], [], []>} : vector<8x32xbf16>, vector<32x128xbf16>, vector<8x128xf32> -> vector<8x128xf32>
    %c8_i32_108 = arith.constant 8 : i32
    %338 = arith.muli %c6_i32, %c8_i32_108 : i32
    %339 = tpu.assume_multiple %338, 8 : i32
    %c7_i32_109 = arith.constant 7 : i32
    %340 = arith.subi %c7_i32_109, %c6_i32 : i32
    %c8_i32_110 = arith.constant 8 : i32
    %341 = arith.muli %340, %c8_i32_110 : i32
    %342 = tpu.assume_multiple %341, 8 : i32
    %343 = arith.index_cast %339 : i32 to index
    %c0_111 = arith.constant 0 : index
    %344 = vector.load %arg16[%343, %c0_111] : memref<64x128xf32, #tpu.memory_space<vmem>>, vector<8x128xf32>
    %345 = arith.addf %344, %334 : vector<8x128xf32>
    %346 = arith.index_cast %342 : i32 to index
    %c0_112 = arith.constant 0 : index
    %347 = vector.load %arg17[%346, %c0_112] : memref<64x128xf32, #tpu.memory_space<vmem>>, vector<8x128xf32>
    %348 = arith.addf %347, %337 : vector<8x128xf32>
    %349 = vector.extract_strided_slice %345 {offsets = [0, 0], sizes = [8, 96], strides = [1, 1]} : vector<8x128xf32> to vector<8x96xf32>
    %350 = arith.negf %349 : vector<8x96xf32>
    %351 = math.exp %350 : vector<8x96xf32>
    %cst_113 = arith.constant 1.000000e+00 : f32
    %352 = vector.broadcast %cst_113 : f32 to vector<8x96xf32>
    %353 = arith.addf %352, %351 : vector<8x96xf32>
    %354 = arith.divf %352, %353 : vector<8x96xf32>
    %355 = vector.extract_strided_slice %345 {offsets = [0, 96], sizes = [8, 32], strides = [1, 1]} : vector<8x128xf32> to vector<8x32xf32>
    %356 = math.tanh %355 : vector<8x32xf32>
    %357 = vector.extract_strided_slice %354 {offsets = [0, 0], sizes = [8, 32], strides = [1, 1]} : vector<8x96xf32> to vector<8x32xf32>
    %358 = vector.extract_strided_slice %354 {offsets = [0, 32], sizes = [8, 32], strides = [1, 1]} : vector<8x96xf32> to vector<8x32xf32>
    %359 = vector.extract_strided_slice %354 {offsets = [0, 64], sizes = [8, 32], strides = [1, 1]} : vector<8x96xf32> to vector<8x32xf32>
    %360 = arith.mulf %358, %309 : vector<8x32xf32>
    %361 = arith.mulf %357, %356 : vector<8x32xf32>
    %362 = arith.addf %360, %361 : vector<8x32xf32>
    %363 = math.tanh %362 : vector<8x32xf32>
    %364 = arith.mulf %359, %363 : vector<8x32xf32>
    %365 = vector.extract_strided_slice %348 {offsets = [0, 0], sizes = [8, 96], strides = [1, 1]} : vector<8x128xf32> to vector<8x96xf32>
    %366 = arith.negf %365 : vector<8x96xf32>
    %367 = math.exp %366 : vector<8x96xf32>
    %cst_114 = arith.constant 1.000000e+00 : f32
    %368 = vector.broadcast %cst_114 : f32 to vector<8x96xf32>
    %369 = arith.addf %368, %367 : vector<8x96xf32>
    %370 = arith.divf %368, %369 : vector<8x96xf32>
    %371 = vector.extract_strided_slice %348 {offsets = [0, 96], sizes = [8, 32], strides = [1, 1]} : vector<8x128xf32> to vector<8x32xf32>
    %372 = math.tanh %371 : vector<8x32xf32>
    %373 = vector.extract_strided_slice %370 {offsets = [0, 0], sizes = [8, 32], strides = [1, 1]} : vector<8x96xf32> to vector<8x32xf32>
    %374 = vector.extract_strided_slice %370 {offsets = [0, 32], sizes = [8, 32], strides = [1, 1]} : vector<8x96xf32> to vector<8x32xf32>
    %375 = vector.extract_strided_slice %370 {offsets = [0, 64], sizes = [8, 32], strides = [1, 1]} : vector<8x96xf32> to vector<8x32xf32>
    %376 = arith.mulf %374, %325 : vector<8x32xf32>
    %377 = arith.mulf %373, %372 : vector<8x32xf32>
    %378 = arith.addf %376, %377 : vector<8x32xf32>
    %379 = math.tanh %378 : vector<8x32xf32>
    %380 = arith.mulf %375, %379 : vector<8x32xf32>
    %381 = arith.index_cast %339 : i32 to index
    %c0_115 = arith.constant 0 : index
    %382 = vector.load %arg18[%381, %c0_115] : memref<64x64xf32, #tpu.memory_space<vmem>>, vector<8x32xf32>
    tpu.vector_store %arg18[%381, %c0_115], %364 {strides = array<i32>} : memref<64x64xf32, #tpu.memory_space<vmem>>, vector<8x32xf32>,
    %383 = arith.index_cast %342 : i32 to index
    %c32_116 = arith.constant 32 : index
    %384 = vector.load %arg18[%383, %c32_116] : memref<64x64xf32, #tpu.memory_space<vmem>>, vector<8x32xf32>
    tpu.vector_store %arg18[%383, %c32_116], %380 {strides = array<i32>} : memref<64x64xf32, #tpu.memory_space<vmem>>, vector<8x32xf32>,
    %c7_i32_117 = arith.constant 7 : i32
    %385 = arith.truncf %364 : vector<8x32xf32> to vector<8x32xbf16>
    %c0_118 = arith.constant 0 : index
    %c0_119 = arith.constant 0 : index
    %386 = vector.load %arg3[%c0_118, %c0_119] : memref<32x128xbf16, #tpu.memory_space<vmem>>, vector<32x128xbf16>
    %cst_120 = arith.constant dense<0.000000e+00> : vector<8x128xf32>
    %387 = tpu.matmul %385, %386, %cst_120 {dimension_numbers = #tpu.dot_dimension_numbers<[1], [0], [0], [1], [0, 0, 1, 1], [], []>} : vector<8x32xbf16>, vector<32x128xbf16>, vector<8x128xf32> -> vector<8x128xf32>
    %388 = arith.truncf %380 : vector<8x32xf32> to vector<8x32xbf16>
    %c0_121 = arith.constant 0 : index
    %c0_122 = arith.constant 0 : index
    %389 = vector.load %arg6[%c0_121, %c0_122] : memref<32x128xbf16, #tpu.memory_space<vmem>>, vector<32x128xbf16>
    %cst_123 = arith.constant dense<0.000000e+00> : vector<8x128xf32>
    %390 = tpu.matmul %388, %389, %cst_123 {dimension_numbers = #tpu.dot_dimension_numbers<[1], [0], [0], [1], [0, 0, 1, 1], [], []>} : vector<8x32xbf16>, vector<32x128xbf16>, vector<8x128xf32> -> vector<8x128xf32>
    %c8_i32_124 = arith.constant 8 : i32
    %391 = arith.muli %c7_i32_117, %c8_i32_124 : i32
    %392 = tpu.assume_multiple %391, 8 : i32
    %c7_i32_125 = arith.constant 7 : i32
    %393 = arith.subi %c7_i32_125, %c7_i32_117 : i32
    %c8_i32_126 = arith.constant 8 : i32
    %394 = arith.muli %393, %c8_i32_126 : i32
    %395 = tpu.assume_multiple %394, 8 : i32
    %396 = arith.index_cast %392 : i32 to index
    %c0_127 = arith.constant 0 : index
    %397 = vector.load %arg16[%396, %c0_127] : memref<64x128xf32, #tpu.memory_space<vmem>>, vector<8x128xf32>
    %398 = arith.addf %397, %387 : vector<8x128xf32>
    %399 = arith.index_cast %395 : i32 to index
    %c0_128 = arith.constant 0 : index
    %400 = vector.load %arg17[%399, %c0_128] : memref<64x128xf32, #tpu.memory_space<vmem>>, vector<8x128xf32>
    %401 = arith.addf %400, %390 : vector<8x128xf32>
    %402 = vector.extract_strided_slice %398 {offsets = [0, 0], sizes = [8, 96], strides = [1, 1]} : vector<8x128xf32> to vector<8x96xf32>
    %403 = arith.negf %402 : vector<8x96xf32>
    %404 = math.exp %403 : vector<8x96xf32>
    %cst_129 = arith.constant 1.000000e+00 : f32
    %405 = vector.broadcast %cst_129 : f32 to vector<8x96xf32>
    %406 = arith.addf %405, %404 : vector<8x96xf32>
    %407 = arith.divf %405, %406 : vector<8x96xf32>
    %408 = vector.extract_strided_slice %398 {offsets = [0, 96], sizes = [8, 32], strides = [1, 1]} : vector<8x128xf32> to vector<8x32xf32>
    %409 = math.tanh %408 : vector<8x32xf32>
    %410 = vector.extract_strided_slice %407 {offsets = [0, 0], sizes = [8, 32], strides = [1, 1]} : vector<8x96xf32> to vector<8x32xf32>
    %411 = vector.extract_strided_slice %407 {offsets = [0, 32], sizes = [8, 32], strides = [1, 1]} : vector<8x96xf32> to vector<8x32xf32>
    %412 = vector.extract_strided_slice %407 {offsets = [0, 64], sizes = [8, 32], strides = [1, 1]} : vector<8x96xf32> to vector<8x32xf32>
    %413 = arith.mulf %411, %362 : vector<8x32xf32>
    %414 = arith.mulf %410, %409 : vector<8x32xf32>
    %415 = arith.addf %413, %414 : vector<8x32xf32>
    %416 = math.tanh %415 : vector<8x32xf32>
    %417 = arith.mulf %412, %416 : vector<8x32xf32>
    %418 = vector.extract_strided_slice %401 {offsets = [0, 0], sizes = [8, 96], strides = [1, 1]} : vector<8x128xf32> to vector<8x96xf32>
    %419 = arith.negf %418 : vector<8x96xf32>
    %420 = math.exp %419 : vector<8x96xf32>
    %cst_130 = arith.constant 1.000000e+00 : f32
    %421 = vector.broadcast %cst_130 : f32 to vector<8x96xf32>
    %422 = arith.addf %421, %420 : vector<8x96xf32>
    %423 = arith.divf %421, %422 : vector<8x96xf32>
    %424 = vector.extract_strided_slice %401 {offsets = [0, 96], sizes = [8, 32], strides = [1, 1]} : vector<8x128xf32> to vector<8x32xf32>
    %425 = math.tanh %424 : vector<8x32xf32>
    %426 = vector.extract_strided_slice %423 {offsets = [0, 0], sizes = [8, 32], strides = [1, 1]} : vector<8x96xf32> to vector<8x32xf32>
    %427 = vector.extract_strided_slice %423 {offsets = [0, 32], sizes = [8, 32], strides = [1, 1]} : vector<8x96xf32> to vector<8x32xf32>
    %428 = vector.extract_strided_slice %423 {offsets = [0, 64], sizes = [8, 32], strides = [1, 1]} : vector<8x96xf32> to vector<8x32xf32>
    %429 = arith.mulf %427, %378 : vector<8x32xf32>
    %430 = arith.mulf %426, %425 : vector<8x32xf32>
    %431 = arith.addf %429, %430 : vector<8x32xf32>
    %432 = math.tanh %431 : vector<8x32xf32>
    %433 = arith.mulf %428, %432 : vector<8x32xf32>
    %434 = arith.index_cast %392 : i32 to index
    %c0_131 = arith.constant 0 : index
    %435 = vector.load %arg18[%434, %c0_131] : memref<64x64xf32, #tpu.memory_space<vmem>>, vector<8x32xf32>
    tpu.vector_store %arg18[%434, %c0_131], %417 {strides = array<i32>} : memref<64x64xf32, #tpu.memory_space<vmem>>, vector<8x32xf32>,
    %436 = arith.index_cast %395 : i32 to index
    %c32_132 = arith.constant 32 : index
    %437 = vector.load %arg18[%436, %c32_132] : memref<64x64xf32, #tpu.memory_space<vmem>>, vector<8x32xf32>
    tpu.vector_store %arg18[%436, %c32_132], %433 {strides = array<i32>} : memref<64x64xf32, #tpu.memory_space<vmem>>, vector<8x32xf32>,
    %c8_i32_133 = arith.constant 8 : i32
    %c0_134 = arith.constant 0 : index
    %c0_135 = arith.constant 0 : index
    %438 = vector.load %arg18[%c0_134, %c0_135] : memref<64x64xf32, #tpu.memory_space<vmem>>, vector<64x64xf32>
    %439 = arith.truncf %438 : vector<64x64xf32> to vector<64x64xbf16>
    %c0_136 = arith.constant 0 : index
    %c0_137 = arith.constant 0 : index
    %440 = vector.load %arg7[%c0_136, %c0_137] : memref<64x128xbf16, #tpu.memory_space<vmem>>, vector<64x128xbf16>
    %cst_138 = arith.constant dense<0.000000e+00> : vector<64x128xf32>
    %441 = tpu.matmul %439, %440, %cst_138 {dimension_numbers = #tpu.dot_dimension_numbers<[1], [0], [0], [1], [0, 0, 1, 1], [], []>} : vector<64x64xbf16>, vector<64x128xbf16>, vector<64x128xf32> -> vector<64x128xf32>
    %c0_139 = arith.constant 0 : index
    %c0_140 = arith.constant 0 : index
    %442 = vector.load %arg8[%c0_139, %c0_140] : memref<1x128xf32, #tpu.memory_space<vmem>>, vector<1x128xf32>
    %443 = vector.broadcast %442 : vector<1x128xf32> to vector<64x128xf32>
    %444 = arith.addf %441, %443 : vector<64x128xf32>
    %c0_141 = arith.constant 0 : index
    %c0_142 = arith.constant 0 : index
    %445 = vector.load %arg16[%c0_141, %c0_142] : memref<64x128xf32, #tpu.memory_space<vmem>>, vector<64x128xf32>
    tpu.vector_store %arg16[%c0_141, %c0_142], %444 {strides = array<i32>} : memref<64x128xf32, #tpu.memory_space<vmem>>, vector<64x128xf32>,
    %cst_143 = arith.constant 0.000000e+00 : f32
    %446 = vector.broadcast %cst_143 : f32 to vector<8x32xf32>
    %c0_i32_144 = arith.constant 0 : i32
    %447 = arith.truncf %446 : vector<8x32xf32> to vector<8x32xbf16>
    %c0_145 = arith.constant 0 : index
    %c0_146 = arith.constant 0 : index
    %448 = vector.load %arg9[%c0_145, %c0_146] : memref<32x128xbf16, #tpu.memory_space<vmem>>, vector<32x128xbf16>
    %cst_147 = arith.constant dense<0.000000e+00> : vector<8x128xf32>
    %449 = tpu.matmul %447, %448, %cst_147 {dimension_numbers = #tpu.dot_dimension_numbers<[1], [0], [0], [1], [0, 0, 1, 1], [], []>} : vector<8x32xbf16>, vector<32x128xbf16>, vector<8x128xf32> -> vector<8x128xf32>
    %c8_i32_148 = arith.constant 8 : i32
    %450 = arith.muli %c0_i32_144, %c8_i32_148 : i32
    %451 = tpu.assume_multiple %450, 8 : i32
    %452 = arith.index_cast %451 : i32 to index
    %c0_149 = arith.constant 0 : index
    %453 = vector.load %arg16[%452, %c0_149] : memref<64x128xf32, #tpu.memory_space<vmem>>, vector<8x128xf32>
    %454 = arith.addf %453, %449 : vector<8x128xf32>
    %455 = vector.extract_strided_slice %454 {offsets = [0, 0], sizes = [8, 96], strides = [1, 1]} : vector<8x128xf32> to vector<8x96xf32>
    %456 = arith.negf %455 : vector<8x96xf32>
    %457 = math.exp %456 : vector<8x96xf32>
    %cst_150 = arith.constant 1.000000e+00 : f32
    %458 = vector.broadcast %cst_150 : f32 to vector<8x96xf32>
    %459 = arith.addf %458, %457 : vector<8x96xf32>
    %460 = arith.divf %458, %459 : vector<8x96xf32>
    %461 = vector.extract_strided_slice %454 {offsets = [0, 96], sizes = [8, 32], strides = [1, 1]} : vector<8x128xf32> to vector<8x32xf32>
    %462 = math.tanh %461 : vector<8x32xf32>
    %463 = vector.extract_strided_slice %460 {offsets = [0, 0], sizes = [8, 32], strides = [1, 1]} : vector<8x96xf32> to vector<8x32xf32>
    %464 = vector.extract_strided_slice %460 {offsets = [0, 32], sizes = [8, 32], strides = [1, 1]} : vector<8x96xf32> to vector<8x32xf32>
    %465 = vector.extract_strided_slice %460 {offsets = [0, 64], sizes = [8, 32], strides = [1, 1]} : vector<8x96xf32> to vector<8x32xf32>
    %466 = arith.mulf %464, %446 : vector<8x32xf32>
    %467 = arith.mulf %463, %462 : vector<8x32xf32>
    %468 = arith.addf %466, %467 : vector<8x32xf32>
    %469 = math.tanh %468 : vector<8x32xf32>
    %470 = arith.mulf %465, %469 : vector<8x32xf32>
    %c1_i32_151 = arith.constant 1 : i32
    %471 = arith.truncf %470 : vector<8x32xf32> to vector<8x32xbf16>
    %c0_152 = arith.constant 0 : index
    %c0_153 = arith.constant 0 : index
    %472 = vector.load %arg9[%c0_152, %c0_153] : memref<32x128xbf16, #tpu.memory_space<vmem>>, vector<32x128xbf16>
    %cst_154 = arith.constant dense<0.000000e+00> : vector<8x128xf32>
    %473 = tpu.matmul %471, %472, %cst_154 {dimension_numbers = #tpu.dot_dimension_numbers<[1], [0], [0], [1], [0, 0, 1, 1], [], []>} : vector<8x32xbf16>, vector<32x128xbf16>, vector<8x128xf32> -> vector<8x128xf32>
    %c8_i32_155 = arith.constant 8 : i32
    %474 = arith.muli %c1_i32_151, %c8_i32_155 : i32
    %475 = tpu.assume_multiple %474, 8 : i32
    %476 = arith.index_cast %475 : i32 to index
    %c0_156 = arith.constant 0 : index
    %477 = vector.load %arg16[%476, %c0_156] : memref<64x128xf32, #tpu.memory_space<vmem>>, vector<8x128xf32>
    %478 = arith.addf %477, %473 : vector<8x128xf32>
    %479 = vector.extract_strided_slice %478 {offsets = [0, 0], sizes = [8, 96], strides = [1, 1]} : vector<8x128xf32> to vector<8x96xf32>
    %480 = arith.negf %479 : vector<8x96xf32>
    %481 = math.exp %480 : vector<8x96xf32>
    %cst_157 = arith.constant 1.000000e+00 : f32
    %482 = vector.broadcast %cst_157 : f32 to vector<8x96xf32>
    %483 = arith.addf %482, %481 : vector<8x96xf32>
    %484 = arith.divf %482, %483 : vector<8x96xf32>
    %485 = vector.extract_strided_slice %478 {offsets = [0, 96], sizes = [8, 32], strides = [1, 1]} : vector<8x128xf32> to vector<8x32xf32>
    %486 = math.tanh %485 : vector<8x32xf32>
    %487 = vector.extract_strided_slice %484 {offsets = [0, 0], sizes = [8, 32], strides = [1, 1]} : vector<8x96xf32> to vector<8x32xf32>
    %488 = vector.extract_strided_slice %484 {offsets = [0, 32], sizes = [8, 32], strides = [1, 1]} : vector<8x96xf32> to vector<8x32xf32>
    %489 = vector.extract_strided_slice %484 {offsets = [0, 64], sizes = [8, 32], strides = [1, 1]} : vector<8x96xf32> to vector<8x32xf32>
    %490 = arith.mulf %488, %468 : vector<8x32xf32>
    %491 = arith.mulf %487, %486 : vector<8x32xf32>
    %492 = arith.addf %490, %491 : vector<8x32xf32>
    %493 = math.tanh %492 : vector<8x32xf32>
    %494 = arith.mulf %489, %493 : vector<8x32xf32>
    %c2_i32_158 = arith.constant 2 : i32
    %495 = arith.truncf %494 : vector<8x32xf32> to vector<8x32xbf16>
    %c0_159 = arith.constant 0 : index
    %c0_160 = arith.constant 0 : index
    %496 = vector.load %arg9[%c0_159, %c0_160] : memref<32x128xbf16, #tpu.memory_space<vmem>>, vector<32x128xbf16>
    %cst_161 = arith.constant dense<0.000000e+00> : vector<8x128xf32>
    %497 = tpu.matmul %495, %496, %cst_161 {dimension_numbers = #tpu.dot_dimension_numbers<[1], [0], [0], [1], [0, 0, 1, 1], [], []>} : vector<8x32xbf16>, vector<32x128xbf16>, vector<8x128xf32> -> vector<8x128xf32>
    %c8_i32_162 = arith.constant 8 : i32
    %498 = arith.muli %c2_i32_158, %c8_i32_162 : i32
    %499 = tpu.assume_multiple %498, 8 : i32
    %500 = arith.index_cast %499 : i32 to index
    %c0_163 = arith.constant 0 : index
    %501 = vector.load %arg16[%500, %c0_163] : memref<64x128xf32, #tpu.memory_space<vmem>>, vector<8x128xf32>
    %502 = arith.addf %501, %497 : vector<8x128xf32>
    %503 = vector.extract_strided_slice %502 {offsets = [0, 0], sizes = [8, 96], strides = [1, 1]} : vector<8x128xf32> to vector<8x96xf32>
    %504 = arith.negf %503 : vector<8x96xf32>
    %505 = math.exp %504 : vector<8x96xf32>
    %cst_164 = arith.constant 1.000000e+00 : f32
    %506 = vector.broadcast %cst_164 : f32 to vector<8x96xf32>
    %507 = arith.addf %506, %505 : vector<8x96xf32>
    %508 = arith.divf %506, %507 : vector<8x96xf32>
    %509 = vector.extract_strided_slice %502 {offsets = [0, 96], sizes = [8, 32], strides = [1, 1]} : vector<8x128xf32> to vector<8x32xf32>
    %510 = math.tanh %509 : vector<8x32xf32>
    %511 = vector.extract_strided_slice %508 {offsets = [0, 0], sizes = [8, 32], strides = [1, 1]} : vector<8x96xf32> to vector<8x32xf32>
    %512 = vector.extract_strided_slice %508 {offsets = [0, 32], sizes = [8, 32], strides = [1, 1]} : vector<8x96xf32> to vector<8x32xf32>
    %513 = vector.extract_strided_slice %508 {offsets = [0, 64], sizes = [8, 32], strides = [1, 1]} : vector<8x96xf32> to vector<8x32xf32>
    %514 = arith.mulf %512, %492 : vector<8x32xf32>
    %515 = arith.mulf %511, %510 : vector<8x32xf32>
    %516 = arith.addf %514, %515 : vector<8x32xf32>
    %517 = math.tanh %516 : vector<8x32xf32>
    %518 = arith.mulf %513, %517 : vector<8x32xf32>
    %c3_i32_165 = arith.constant 3 : i32
    %519 = arith.truncf %518 : vector<8x32xf32> to vector<8x32xbf16>
    %c0_166 = arith.constant 0 : index
    %c0_167 = arith.constant 0 : index
    %520 = vector.load %arg9[%c0_166, %c0_167] : memref<32x128xbf16, #tpu.memory_space<vmem>>, vector<32x128xbf16>
    %cst_168 = arith.constant dense<0.000000e+00> : vector<8x128xf32>
    %521 = tpu.matmul %519, %520, %cst_168 {dimension_numbers = #tpu.dot_dimension_numbers<[1], [0], [0], [1], [0, 0, 1, 1], [], []>} : vector<8x32xbf16>, vector<32x128xbf16>, vector<8x128xf32> -> vector<8x128xf32>
    %c8_i32_169 = arith.constant 8 : i32
    %522 = arith.muli %c3_i32_165, %c8_i32_169 : i32
    %523 = tpu.assume_multiple %522, 8 : i32
    %524 = arith.index_cast %523 : i32 to index
    %c0_170 = arith.constant 0 : index
    %525 = vector.load %arg16[%524, %c0_170] : memref<64x128xf32, #tpu.memory_space<vmem>>, vector<8x128xf32>
    %526 = arith.addf %525, %521 : vector<8x128xf32>
    %527 = vector.extract_strided_slice %526 {offsets = [0, 0], sizes = [8, 96], strides = [1, 1]} : vector<8x128xf32> to vector<8x96xf32>
    %528 = arith.negf %527 : vector<8x96xf32>
    %529 = math.exp %528 : vector<8x96xf32>
    %cst_171 = arith.constant 1.000000e+00 : f32
    %530 = vector.broadcast %cst_171 : f32 to vector<8x96xf32>
    %531 = arith.addf %530, %529 : vector<8x96xf32>
    %532 = arith.divf %530, %531 : vector<8x96xf32>
    %533 = vector.extract_strided_slice %526 {offsets = [0, 96], sizes = [8, 32], strides = [1, 1]} : vector<8x128xf32> to vector<8x32xf32>
    %534 = math.tanh %533 : vector<8x32xf32>
    %535 = vector.extract_strided_slice %532 {offsets = [0, 0], sizes = [8, 32], strides = [1, 1]} : vector<8x96xf32> to vector<8x32xf32>
    %536 = vector.extract_strided_slice %532 {offsets = [0, 32], sizes = [8, 32], strides = [1, 1]} : vector<8x96xf32> to vector<8x32xf32>
    %537 = vector.extract_strided_slice %532 {offsets = [0, 64], sizes = [8, 32], strides = [1, 1]} : vector<8x96xf32> to vector<8x32xf32>
    %538 = arith.mulf %536, %516 : vector<8x32xf32>
    %539 = arith.mulf %535, %534 : vector<8x32xf32>
    %540 = arith.addf %538, %539 : vector<8x32xf32>
    %541 = math.tanh %540 : vector<8x32xf32>
    %542 = arith.mulf %537, %541 : vector<8x32xf32>
    %c4_i32_172 = arith.constant 4 : i32
    %543 = arith.truncf %542 : vector<8x32xf32> to vector<8x32xbf16>
    %c0_173 = arith.constant 0 : index
    %c0_174 = arith.constant 0 : index
    %544 = vector.load %arg9[%c0_173, %c0_174] : memref<32x128xbf16, #tpu.memory_space<vmem>>, vector<32x128xbf16>
    %cst_175 = arith.constant dense<0.000000e+00> : vector<8x128xf32>
    %545 = tpu.matmul %543, %544, %cst_175 {dimension_numbers = #tpu.dot_dimension_numbers<[1], [0], [0], [1], [0, 0, 1, 1], [], []>} : vector<8x32xbf16>, vector<32x128xbf16>, vector<8x128xf32> -> vector<8x128xf32>
    %c8_i32_176 = arith.constant 8 : i32
    %546 = arith.muli %c4_i32_172, %c8_i32_176 : i32
    %547 = tpu.assume_multiple %546, 8 : i32
    %548 = arith.index_cast %547 : i32 to index
    %c0_177 = arith.constant 0 : index
    %549 = vector.load %arg16[%548, %c0_177] : memref<64x128xf32, #tpu.memory_space<vmem>>, vector<8x128xf32>
    %550 = arith.addf %549, %545 : vector<8x128xf32>
    %551 = vector.extract_strided_slice %550 {offsets = [0, 0], sizes = [8, 96], strides = [1, 1]} : vector<8x128xf32> to vector<8x96xf32>
    %552 = arith.negf %551 : vector<8x96xf32>
    %553 = math.exp %552 : vector<8x96xf32>
    %cst_178 = arith.constant 1.000000e+00 : f32
    %554 = vector.broadcast %cst_178 : f32 to vector<8x96xf32>
    %555 = arith.addf %554, %553 : vector<8x96xf32>
    %556 = arith.divf %554, %555 : vector<8x96xf32>
    %557 = vector.extract_strided_slice %550 {offsets = [0, 96], sizes = [8, 32], strides = [1, 1]} : vector<8x128xf32> to vector<8x32xf32>
    %558 = math.tanh %557 : vector<8x32xf32>
    %559 = vector.extract_strided_slice %556 {offsets = [0, 0], sizes = [8, 32], strides = [1, 1]} : vector<8x96xf32> to vector<8x32xf32>
    %560 = vector.extract_strided_slice %556 {offsets = [0, 32], sizes = [8, 32], strides = [1, 1]} : vector<8x96xf32> to vector<8x32xf32>
    %561 = vector.extract_strided_slice %556 {offsets = [0, 64], sizes = [8, 32], strides = [1, 1]} : vector<8x96xf32> to vector<8x32xf32>
    %562 = arith.mulf %560, %540 : vector<8x32xf32>
    %563 = arith.mulf %559, %558 : vector<8x32xf32>
    %564 = arith.addf %562, %563 : vector<8x32xf32>
    %565 = math.tanh %564 : vector<8x32xf32>
    %566 = arith.mulf %561, %565 : vector<8x32xf32>
    %c5_i32_179 = arith.constant 5 : i32
    %567 = arith.truncf %566 : vector<8x32xf32> to vector<8x32xbf16>
    %c0_180 = arith.constant 0 : index
    %c0_181 = arith.constant 0 : index
    %568 = vector.load %arg9[%c0_180, %c0_181] : memref<32x128xbf16, #tpu.memory_space<vmem>>, vector<32x128xbf16>
    %cst_182 = arith.constant dense<0.000000e+00> : vector<8x128xf32>
    %569 = tpu.matmul %567, %568, %cst_182 {dimension_numbers = #tpu.dot_dimension_numbers<[1], [0], [0], [1], [0, 0, 1, 1], [], []>} : vector<8x32xbf16>, vector<32x128xbf16>, vector<8x128xf32> -> vector<8x128xf32>
    %c8_i32_183 = arith.constant 8 : i32
    %570 = arith.muli %c5_i32_179, %c8_i32_183 : i32
    %571 = tpu.assume_multiple %570, 8 : i32
    %572 = arith.index_cast %571 : i32 to index
    %c0_184 = arith.constant 0 : index
    %573 = vector.load %arg16[%572, %c0_184] : memref<64x128xf32, #tpu.memory_space<vmem>>, vector<8x128xf32>
    %574 = arith.addf %573, %569 : vector<8x128xf32>
    %575 = vector.extract_strided_slice %574 {offsets = [0, 0], sizes = [8, 96], strides = [1, 1]} : vector<8x128xf32> to vector<8x96xf32>
    %576 = arith.negf %575 : vector<8x96xf32>
    %577 = math.exp %576 : vector<8x96xf32>
    %cst_185 = arith.constant 1.000000e+00 : f32
    %578 = vector.broadcast %cst_185 : f32 to vector<8x96xf32>
    %579 = arith.addf %578, %577 : vector<8x96xf32>
    %580 = arith.divf %578, %579 : vector<8x96xf32>
    %581 = vector.extract_strided_slice %574 {offsets = [0, 96], sizes = [8, 32], strides = [1, 1]} : vector<8x128xf32> to vector<8x32xf32>
    %582 = math.tanh %581 : vector<8x32xf32>
    %583 = vector.extract_strided_slice %580 {offsets = [0, 0], sizes = [8, 32], strides = [1, 1]} : vector<8x96xf32> to vector<8x32xf32>
    %584 = vector.extract_strided_slice %580 {offsets = [0, 32], sizes = [8, 32], strides = [1, 1]} : vector<8x96xf32> to vector<8x32xf32>
    %585 = vector.extract_strided_slice %580 {offsets = [0, 64], sizes = [8, 32], strides = [1, 1]} : vector<8x96xf32> to vector<8x32xf32>
    %586 = arith.mulf %584, %564 : vector<8x32xf32>
    %587 = arith.mulf %583, %582 : vector<8x32xf32>
    %588 = arith.addf %586, %587 : vector<8x32xf32>
    %589 = math.tanh %588 : vector<8x32xf32>
    %590 = arith.mulf %585, %589 : vector<8x32xf32>
    %c6_i32_186 = arith.constant 6 : i32
    %591 = arith.truncf %590 : vector<8x32xf32> to vector<8x32xbf16>
    %c0_187 = arith.constant 0 : index
    %c0_188 = arith.constant 0 : index
    %592 = vector.load %arg9[%c0_187, %c0_188] : memref<32x128xbf16, #tpu.memory_space<vmem>>, vector<32x128xbf16>
    %cst_189 = arith.constant dense<0.000000e+00> : vector<8x128xf32>
    %593 = tpu.matmul %591, %592, %cst_189 {dimension_numbers = #tpu.dot_dimension_numbers<[1], [0], [0], [1], [0, 0, 1, 1], [], []>} : vector<8x32xbf16>, vector<32x128xbf16>, vector<8x128xf32> -> vector<8x128xf32>
    %c8_i32_190 = arith.constant 8 : i32
    %594 = arith.muli %c6_i32_186, %c8_i32_190 : i32
    %595 = tpu.assume_multiple %594, 8 : i32
    %596 = arith.index_cast %595 : i32 to index
    %c0_191 = arith.constant 0 : index
    %597 = vector.load %arg16[%596, %c0_191] : memref<64x128xf32, #tpu.memory_space<vmem>>, vector<8x128xf32>
    %598 = arith.addf %597, %593 : vector<8x128xf32>
    %599 = vector.extract_strided_slice %598 {offsets = [0, 0], sizes = [8, 96], strides = [1, 1]} : vector<8x128xf32> to vector<8x96xf32>
    %600 = arith.negf %599 : vector<8x96xf32>
    %601 = math.exp %600 : vector<8x96xf32>
    %cst_192 = arith.constant 1.000000e+00 : f32
    %602 = vector.broadcast %cst_192 : f32 to vector<8x96xf32>
    %603 = arith.addf %602, %601 : vector<8x96xf32>
    %604 = arith.divf %602, %603 : vector<8x96xf32>
    %605 = vector.extract_strided_slice %598 {offsets = [0, 96], sizes = [8, 32], strides = [1, 1]} : vector<8x128xf32> to vector<8x32xf32>
    %606 = math.tanh %605 : vector<8x32xf32>
    %607 = vector.extract_strided_slice %604 {offsets = [0, 0], sizes = [8, 32], strides = [1, 1]} : vector<8x96xf32> to vector<8x32xf32>
    %608 = vector.extract_strided_slice %604 {offsets = [0, 32], sizes = [8, 32], strides = [1, 1]} : vector<8x96xf32> to vector<8x32xf32>
    %609 = vector.extract_strided_slice %604 {offsets = [0, 64], sizes = [8, 32], strides = [1, 1]} : vector<8x96xf32> to vector<8x32xf32>
    %610 = arith.mulf %608, %588 : vector<8x32xf32>
    %611 = arith.mulf %607, %606 : vector<8x32xf32>
    %612 = arith.addf %610, %611 : vector<8x32xf32>
    %613 = math.tanh %612 : vector<8x32xf32>
    %614 = arith.mulf %609, %613 : vector<8x32xf32>
    %c7_i32_193 = arith.constant 7 : i32
    %615 = arith.truncf %614 : vector<8x32xf32> to vector<8x32xbf16>
    %c0_194 = arith.constant 0 : index
    %c0_195 = arith.constant 0 : index
    %616 = vector.load %arg9[%c0_194, %c0_195] : memref<32x128xbf16, #tpu.memory_space<vmem>>, vector<32x128xbf16>
    %cst_196 = arith.constant dense<0.000000e+00> : vector<8x128xf32>
    %617 = tpu.matmul %615, %616, %cst_196 {dimension_numbers = #tpu.dot_dimension_numbers<[1], [0], [0], [1], [0, 0, 1, 1], [], []>} : vector<8x32xbf16>, vector<32x128xbf16>, vector<8x128xf32> -> vector<8x128xf32>
    %c8_i32_197 = arith.constant 8 : i32
    %618 = arith.muli %c7_i32_193, %c8_i32_197 : i32
    %619 = tpu.assume_multiple %618, 8 : i32
    %620 = arith.index_cast %619 : i32 to index
    %c0_198 = arith.constant 0 : index
    %621 = vector.load %arg16[%620, %c0_198] : memref<64x128xf32, #tpu.memory_space<vmem>>, vector<8x128xf32>
    %622 = arith.addf %621, %617 : vector<8x128xf32>
    %623 = vector.extract_strided_slice %622 {offsets = [0, 0], sizes = [8, 96], strides = [1, 1]} : vector<8x128xf32> to vector<8x96xf32>
    %624 = arith.negf %623 : vector<8x96xf32>
    %625 = math.exp %624 : vector<8x96xf32>
    %cst_199 = arith.constant 1.000000e+00 : f32
    %626 = vector.broadcast %cst_199 : f32 to vector<8x96xf32>
    %627 = arith.addf %626, %625 : vector<8x96xf32>
    %628 = arith.divf %626, %627 : vector<8x96xf32>
    %629 = vector.extract_strided_slice %622 {offsets = [0, 96], sizes = [8, 32], strides = [1, 1]} : vector<8x128xf32> to vector<8x32xf32>
    %630 = math.tanh %629 : vector<8x32xf32>
    %631 = vector.extract_strided_slice %628 {offsets = [0, 0], sizes = [8, 32], strides = [1, 1]} : vector<8x96xf32> to vector<8x32xf32>
    %632 = vector.extract_strided_slice %628 {offsets = [0, 32], sizes = [8, 32], strides = [1, 1]} : vector<8x96xf32> to vector<8x32xf32>
    %633 = vector.extract_strided_slice %628 {offsets = [0, 64], sizes = [8, 32], strides = [1, 1]} : vector<8x96xf32> to vector<8x32xf32>
    %634 = arith.mulf %632, %612 : vector<8x32xf32>
    %635 = arith.mulf %631, %630 : vector<8x32xf32>
    %636 = arith.addf %634, %635 : vector<8x32xf32>
    %637 = math.tanh %636 : vector<8x32xf32>
    %638 = arith.mulf %633, %637 : vector<8x32xf32>
    %c8_i32_200 = arith.constant 8 : i32
    %639 = vector.extract_strided_slice %439 {offsets = [56, 0], sizes = [8, 64], strides = [1, 1]} : vector<64x64xbf16> to vector<8x64xbf16>
    %c0_201 = arith.constant 0 : index
    %c0_202 = arith.constant 0 : index
    %640 = vector.load %arg10[%c0_201, %c0_202] : memref<64x128xbf16, #tpu.memory_space<vmem>>, vector<64x128xbf16>
    %cst_203 = arith.constant dense<0.000000e+00> : vector<8x128xf32>
    %641 = tpu.matmul %639, %640, %cst_203 {dimension_numbers = #tpu.dot_dimension_numbers<[1], [0], [0], [1], [0, 0, 1, 1], [], []>} : vector<8x64xbf16>, vector<64x128xbf16>, vector<8x128xf32> -> vector<8x128xf32>
    %c0_204 = arith.constant 0 : index
    %c0_205 = arith.constant 0 : index
    %642 = vector.load %arg11[%c0_204, %c0_205] : memref<1x128xf32, #tpu.memory_space<vmem>>, vector<1x128xf32>
    %643 = vector.broadcast %642 : vector<1x128xf32> to vector<8x128xf32>
    %644 = arith.addf %641, %643 : vector<8x128xf32>
    %cst_206 = arith.constant 0.000000e+00 : f32
    %645 = vector.broadcast %cst_206 : f32 to vector<8x32xf32>
    %646 = vector.extract_strided_slice %644 {offsets = [0, 0], sizes = [8, 96], strides = [1, 1]} : vector<8x128xf32> to vector<8x96xf32>
    %647 = arith.negf %646 : vector<8x96xf32>
    %648 = math.exp %647 : vector<8x96xf32>
    %cst_207 = arith.constant 1.000000e+00 : f32
    %649 = vector.broadcast %cst_207 : f32 to vector<8x96xf32>
    %650 = arith.addf %649, %648 : vector<8x96xf32>
    %651 = arith.divf %649, %650 : vector<8x96xf32>
    %652 = vector.extract_strided_slice %644 {offsets = [0, 96], sizes = [8, 32], strides = [1, 1]} : vector<8x128xf32> to vector<8x32xf32>
    %653 = math.tanh %652 : vector<8x32xf32>
    %654 = vector.extract_strided_slice %651 {offsets = [0, 0], sizes = [8, 32], strides = [1, 1]} : vector<8x96xf32> to vector<8x32xf32>
    %655 = vector.extract_strided_slice %651 {offsets = [0, 32], sizes = [8, 32], strides = [1, 1]} : vector<8x96xf32> to vector<8x32xf32>
    %656 = vector.extract_strided_slice %651 {offsets = [0, 64], sizes = [8, 32], strides = [1, 1]} : vector<8x96xf32> to vector<8x32xf32>
    %657 = arith.mulf %655, %645 : vector<8x32xf32>
    %658 = arith.mulf %654, %653 : vector<8x32xf32>
    %659 = arith.addf %657, %658 : vector<8x32xf32>
    %660 = math.tanh %659 : vector<8x32xf32>
    %661 = arith.mulf %656, %660 : vector<8x32xf32>
    %c0_208 = arith.constant 0 : index
    %c0_209 = arith.constant 0 : index
    %662 = vector.load %arg13[%c0_208, %c0_209] : memref<64x3xf32, #tpu.memory_space<vmem>>, vector<32x3xf32>
    %cst_210 = arith.constant dense<0.000000e+00> : vector<8x3xf32>
    %663 = tpu.matmul %638, %662, %cst_210 {dimension_numbers = #tpu.dot_dimension_numbers<[1], [0], [0], [1], [0, 0, 1, 1], [], []>} : vector<8x32xf32>, vector<32x3xf32>, vector<8x3xf32> -> vector<8x3xf32>
    %c32_211 = arith.constant 32 : index
    %c0_212 = arith.constant 0 : index
    %664 = vector.load %arg13[%c32_211, %c0_212] : memref<64x3xf32, #tpu.memory_space<vmem>>, vector<32x3xf32>
    %cst_213 = arith.constant dense<0.000000e+00> : vector<8x3xf32>
    %665 = tpu.matmul %661, %664, %cst_213 {dimension_numbers = #tpu.dot_dimension_numbers<[1], [0], [0], [1], [0, 0, 1, 1], [], []>} : vector<8x32xf32>, vector<32x3xf32>, vector<8x3xf32> -> vector<8x3xf32>
    %666 = arith.addf %663, %665 : vector<8x3xf32>
    %c0_214 = arith.constant 0 : index
    %c0_215 = arith.constant 0 : index
    %667 = vector.load %arg14[%c0_214, %c0_215] : memref<1x3xf32, #tpu.memory_space<vmem>>, vector<1x3xf32>
    %668 = vector.broadcast %667 : vector<1x3xf32> to vector<8x3xf32>
    %669 = arith.addf %666, %668 : vector<8x3xf32>
    %c0_216 = arith.constant 0 : index
    %c0_217 = arith.constant 0 : index
    %670 = vector.load %arg15[%c0_216, %c0_217] : memref<8x3xf32, #tpu.memory_space<vmem>>, vector<8x3xf32>
    tpu.vector_store %arg15[%c0_216, %c0_217], %669 {strides = array<i32>} : memref<8x3xf32, #tpu.memory_space<vmem>>, vector<8x3xf32>,
    return
  }
}

</mosaic_0001>

<llo_original>
// kernel: sentence_classifier_forward.1
$region0: #{sentence_classifier_forward.1}
  #allocation0 [shape = 'u32[]', space=smem, size = 0x4, offset = 0x4, fixed_abs, tag = 'smem constant byte address 0x4 - core index']
  #allocation1 [shape = 'u32[144,128]{1,0:T(1,128)}', space=vmem, size = 0x12000, scoped, tag = 'internal scratch']
  #allocation2 [shape = 'f32[64,128]{1,0:T(8,128)}', space=vmem, size = 0x8000, scoped, tag = 'scratch operand']
  #allocation3 [shape = 'f32[64,128]{1,0:T(8,128)}', space=vmem, size = 0x8000, scoped, tag = 'scratch operand']
  #allocation4 [shape = 'f32[64,64]{1,0:T(8,128)}', space=vmem, size = 0x8000, scoped, tag = 'scratch operand']
  %s0 = inlined_call_operand.vmem [shape: bf16[64,32], index: 0, kind: input, shape index: {}]
  %s1 = inlined_call_operand.vmem [shape: bf16[32,128], index: 1, kind: input, shape index: {}]
  %s2 = inlined_call_operand.vmem [shape: f32[1,128], index: 2, kind: input, shape index: {}]
  %s3 = inlined_call_operand.vmem [shape: bf16[32,128], index: 3, kind: input, shape index: {}]
  %s4 = inlined_call_operand.vmem [shape: bf16[32,128], index: 4, kind: input, shape index: {}]
  %s5 = inlined_call_operand.vmem [shape: f32[1,128], index: 5, kind: input, shape index: {}]
  %s6 = inlined_call_operand.vmem [shape: bf16[32,128], index: 6, kind: input, shape index: {}]
  %s7 = inlined_call_operand.vmem [shape: bf16[64,128], index: 7, kind: input, shape index: {}]
  %s8 = inlined_call_operand.vmem [shape: f32[1,128], index: 8, kind: input, shape index: {}]
  %s9 = inlined_call_operand.vmem [shape: bf16[32,128], index: 9, kind: input, shape index: {}]
  %s10 = inlined_call_operand.vmem [shape: bf16[64,128], index: 10, kind: input, shape index: {}]
  %s11 = inlined_call_operand.vmem [shape: f32[1,128], index: 11, kind: input, shape index: {}]
  %s12 = inlined_call_operand.vmem [shape: bf16[32,128], index: 12, kind: input, shape index: {}]
  %s13 = inlined_call_operand.vmem [shape: f32[64,3], index: 13, kind: input, shape index: {}]
  %s14 = inlined_call_operand.vmem [shape: f32[1,3], index: 14, kind: input, shape index: {}]
  %s15 = inlined_call_operand.vmem [shape: f32[8,3], index: 15, kind: output, shape index: {}]
  %s16 = sld [smem:[#allocation0]]
  $region70: #{sentence_classifier_forward.1} parent=0
    _
  %s18 = ssub.s32 1, %s16
  %s19 = scalar_select 0, %s18, %s16
  // Predicated region
  $region2: #{sentence_classifier_forward.1} parent=0 // pred_check
    _
  $region3: #{sentence_classifier_forward.1} parent=0 // pred_check_branch
    %21 = sbr.rel (0) target = $region5
  $region4: #{sentence_classifier_forward.1} parent=0 // pred_region
    _
  $region5: #{sentence_classifier_forward.1} parent=0 // pred_fallthru
    _
  // Predicated region
  $region6: #{sentence_classifier_forward.1} parent=0 // pred_check
    _
  $region7: #{sentence_classifier_forward.1} parent=0 // pred_check_branch
    %23 = sbr.rel (0) target = $region9
  $region8: #{sentence_classifier_forward.1} parent=0 // pred_region
    _
  $region9: #{sentence_classifier_forward.1} parent=0 // pred_fallthru
    _
  // Predicated region
  $region10: #{sentence_classifier_forward.1} parent=0 // pred_check
    _
  $region11: #{sentence_classifier_forward.1} parent=0 // pred_check_branch
    %25 = sbr.rel (0) target = $region13
  $region12: #{sentence_classifier_forward.1} parent=0 // pred_region
    _
  $region13: #{sentence_classifier_forward.1} parent=0 // pred_fallthru
    _
  // Predicated region
  $region14: #{sentence_classifier_forward.1} parent=0 // pred_check
    _
  $region15: #{sentence_classifier_forward.1} parent=0 // pred_check_branch
    %27 = sbr.rel (0) target = $region17
  $region16: #{sentence_classifier_forward.1} parent=0 // pred_region
    _
  $region17: #{sentence_classifier_forward.1} parent=0 // pred_fallthru
    _
  // Predicated region
  $region18: #{sentence_classifier_forward.1} parent=0 // pred_check
    _
  $region19: #{sentence_classifier_forward.1} parent=0 // pred_check_branch
    %29 = sbr.rel (0) target = $region21
  $region20: #{sentence_classifier_forward.1} parent=0 // pred_region
    _
  $region21: #{sentence_classifier_forward.1} parent=0 // pred_fallthru
    _
  // Predicated region
  $region22: #{sentence_classifier_forward.1} parent=0 // pred_check
    _
  $region23: #{sentence_classifier_forward.1} parent=0 // pred_check_branch
    %31 = sbr.rel (0) target = $region25
  $region24: #{sentence_classifier_forward.1} parent=0 // pred_region
    _
  $region25: #{sentence_classifier_forward.1} parent=0 // pred_fallthru
    _
  // Predicated region
  $region26: #{sentence_classifier_forward.1} parent=0 // pred_check
    _
  $region27: #{sentence_classifier_forward.1} parent=0 // pred_check_branch
    %33 = sbr.rel (0) target = $region29
  $region28: #{sentence_classifier_forward.1} parent=0 // pred_region
    _
  $region29: #{sentence_classifier_forward.1} parent=0 // pred_fallthru
    _
  // Predicated region
  $region30: #{sentence_classifier_forward.1} parent=0 // pred_check
    _
  $region31: #{sentence_classifier_forward.1} parent=0 // pred_check_branch
    %35 = sbr.rel (0) target = $region33
  $region32: #{sentence_classifier_forward.1} parent=0 // pred_region
    _
  $region33: #{sentence_classifier_forward.1} parent=0 // pred_fallthru
    _
  // Predicated region
  $region34: #{sentence_classifier_forward.1} parent=0 // pred_check
    _
  $region35: #{sentence_classifier_forward.1} parent=0 // pred_check_branch
    %37 = sbr.rel (0) target = $region37
  $region36: #{sentence_classifier_forward.1} parent=0 // pred_region
    _
  $region37: #{sentence_classifier_forward.1} parent=0 // pred_fallthru
    _
  // Predicated region
  $region38: #{sentence_classifier_forward.1} parent=0 // pred_check
    _
  $region39: #{sentence_classifier_forward.1} parent=0 // pred_check_branch
    %39 = sbr.rel (0) target = $region41
  $region40: #{sentence_classifier_forward.1} parent=0 // pred_region
    _
  $region41: #{sentence_classifier_forward.1} parent=0 // pred_fallthru
    _
  // Predicated region
  $region42: #{sentence_classifier_forward.1} parent=0 // pred_check
    _
  $region43: #{sentence_classifier_forward.1} parent=0 // pred_check_branch
    %41 = sbr.rel (0) target = $region45
  $region44: #{sentence_classifier_forward.1} parent=0 // pred_region
    _
  $region45: #{sentence_classifier_forward.1} parent=0 // pred_fallthru
    _
  // Predicated region
  $region46: #{sentence_classifier_forward.1} parent=0 // pred_check
    _
  $region47: #{sentence_classifier_forward.1} parent=0 // pred_check_branch
    %43 = sbr.rel (0) target = $region49
  $region48: #{sentence_classifier_forward.1} parent=0 // pred_region
    _
  $region49: #{sentence_classifier_forward.1} parent=0 // pred_fallthru
    _
  // Predicated region
  $region50: #{sentence_classifier_forward.1} parent=0 // pred_check
    _
  $region51: #{sentence_classifier_forward.1} parent=0 // pred_check_branch
    %45 = sbr.rel (0) target = $region53
  $region52: #{sentence_classifier_forward.1} parent=0 // pred_region
    _
  $region53: #{sentence_classifier_forward.1} parent=0 // pred_fallthru
    _
  // Predicated region
  $region54: #{sentence_classifier_forward.1} parent=0 // pred_check
    _
  $region55: #{sentence_classifier_forward.1} parent=0 // pred_check_branch
    %47 = sbr.rel (0) target = $region57
  $region56: #{sentence_classifier_forward.1} parent=0 // pred_region
    _
  $region57: #{sentence_classifier_forward.1} parent=0 // pred_fallthru
    _
  // Predicated region
  $region58: #{sentence_classifier_forward.1} parent=0 // pred_check
    _
  $region59: #{sentence_classifier_forward.1} parent=0 // pred_check_branch
    %49 = sbr.rel (0) target = $region61
  $region60: #{sentence_classifier_forward.1} parent=0 // pred_region
    _
  $region61: #{sentence_classifier_forward.1} parent=0 // pred_fallthru
    _
  %v51 = vld [vmem:[%s0] sm:$0xf]
  %v52 = vld [vmem:[%s0 + $0x4] sm:$0xf]
  %v53 = vld [vmem:[%s0 + $0x8] sm:$0xf]
  %v54 = vld [vmem:[%s0 + $0xc] sm:$0xf]
  %v55 = vld [vmem:[%s0 + $0x10] sm:$0xf]
  %v56 = vld [vmem:[%s0 + $0x14] sm:$0xf]
  %v57 = vld [vmem:[%s0 + $0x18] sm:$0xf]
  %v58 = vld [vmem:[%s0 + $0x1c] sm:$0xf]
  %v59 = vld [vmem:[%s1] sm:$0xf]
  %v60 = vld [vmem:[%s1 + $0x4] sm:$0xf]
  %v61 = vld [vmem:[%s1 + $0x8] sm:$0xf]
  %v62 = vld [vmem:[%s1 + $0xc] sm:$0xf]
  %v63 = vld [vmem:[%s2] sm:$0x1]
  %v65 = vlaneseq
  %v66 = vshrl.u32 %v65, 7
  %v67 = vsub.s32 0, %v66
  %v68 = vrot.slane %v63, %v67
  %v78 = vunpack.c.l.b16 %v51
  %v79 = vunpack.c.l.b16 %v52
  %v80 = vunpack.c.l.b16 %v53
  %v81 = vunpack.c.l.b16 %v54
  %v82 = vunpack.c.l.b16 %v55
  %v83 = vunpack.c.l.b16 %v56
  %v84 = vunpack.c.l.b16 %v57
  %v85 = vunpack.c.l.b16 %v58
  %v86 = vpack.c.b16 %v79, %v78
  %v87 = vpack.c.b16 %v81, %v80
  %v88 = vpack.c.b16 %v83, %v82
  %v89 = vpack.c.b16 %v85, %v84
  %v94 = vunpack.c.l.b16 %v59
  %v95 = vunpack.c.l.b16 %v60
  %v96 = vunpack.c.l.b16 %v61
  %v97 = vunpack.c.l.b16 %v62
  %v98 = vpack.c.b16 %v95, %v94
  %v99 = vpack.c.b16 %v97, %v96
  %vm102 = vcmask 261120
  %v104 = vsel %vm102, %v86, 0
  %v107 = vsel %vm102, %v87, 0
  %v110 = vsel %vm102, %v88, 0
  %v113 = vsel %vm102, %v89, 0
  %115 = vmatprep.subr.bf16.mxu0 0
  %116 = vmatpush1.bf16.msra.mxu0 %v98
  %117 = vmatprep.subr.bf16.mxu0 0
  %118 = vmatpush1.bf16.msra.mxu0 %v99
  %119 = vmatprep.subr.bf16.mxu0 0
  %120 = vmatpush1.bf16.msra.mxu0 0
  %121 = vmatprep.subr.bf16.mxu0 0
  %122 = vmatpush1.bf16.msra.mxu0 0
  %123 = vmatprep.subr.bf16.mxu0 0
  %124 = vmatpush1.bf16.msra.mxu0 0
  %125 = vmatprep.subr.bf16.mxu0 0
  %126 = vmatpush1.bf16.msra.mxu0 0
  %127 = vmatprep.subr.bf16.mxu0 0
  %128 = vmatpush1.bf16.msra.mxu0 0
  %129 = vmatprep.subr.bf16.mxu0 0
  %130 = vmatpush1.bf16.msra.mxu0 0
  %131 = vmatprep.subr.bf16.mxu0 0
  %132 = vmatpush1.bf16.msra.mxu0 0
  %133 = vmatprep.subr.bf16.mxu0 0
  %134 = vmatpush1.bf16.msra.mxu0 0
  %135 = vmatprep.subr.bf16.mxu0 0
  %136 = vmatpush1.bf16.msra.mxu0 0
  %137 = vmatprep.subr.bf16.mxu0 0
  %138 = vmatpush1.bf16.msra.mxu0 0
  %139 = vmatprep.subr.bf16.mxu0 0
  %140 = vmatpush1.bf16.msra.mxu0 0
  %141 = vmatprep.subr.bf16.mxu0 0
  %142 = vmatpush1.bf16.msra.mxu0 0
  %143 = vmatprep.subr.bf16.mxu0 0
  %144 = vmatpush1.bf16.msra.mxu0 0
  %145 = vmatprep.subr.bf16.mxu0 0
  %146 = vmatpush1.bf16.msra.mxu0 0
  %147 = vmatprep.mubr.bf16.mxu0 0
  %148 = vmatmul.mubr.bf16.gmra.mrb[0].mxu0 %v104
  %v149 = vpop.f32.mrb[0].mxu0
  %v150 = vadd.f32 %v68, %v149
  %v151 = vpop.f32.mrb[0].mxu0
  %v152 = vpop.f32.mrb[0].mxu0
  %v153 = vadd.f32 %v68, %v152
  %v154 = vpop.f32.mrb[0].mxu0
  %155 = vmatprep.mubr.bf16.mxu0 0
  %156 = vmatmul.mubr.bf16.gmra.mrb[0].mxu0 %v107
  %v157 = vpop.f32.mrb[0].mxu0
  %v158 = vadd.f32 %v68, %v157
  %v159 = vpop.f32.mrb[0].mxu0
  %v160 = vpop.f32.mrb[0].mxu0
  %v161 = vadd.f32 %v68, %v160
  %v162 = vpop.f32.mrb[0].mxu0
  %163 = vmatprep.mubr.bf16.mxu0 0
  %164 = vmatmul.mubr.bf16.gmra.mrb[0].mxu0 %v110
  %v165 = vpop.f32.mrb[0].mxu0
  %v166 = vadd.f32 %v68, %v165
  %v167 = vpop.f32.mrb[0].mxu0
  %v168 = vpop.f32.mrb[0].mxu0
  %v169 = vadd.f32 %v68, %v168
  %v170 = vpop.f32.mrb[0].mxu0
  %171 = vmatprep.mubr.bf16.mxu0 0
  %172 = vmatmul.mubr.bf16.gmra.mrb[0].mxu0 %v113
  %v173 = vpop.f32.mrb[0].mxu0
  %v174 = vadd.f32 %v68, %v173
  %v175 = vpop.f32.mrb[0].mxu0
  %v176 = vpop.f32.mrb[0].mxu0
  %v177 = vadd.f32 %v68, %v176
  %v178 = vpop.f32.mrb[0].mxu0
  %179 = vdwg.mxu0
  %180 = vst [vmem:[#allocation2] sm:$0xff] %v150
  %181 = vst [vmem:[#allocation2 + $0x8] sm:$0xff] %v153
  %182 = vst [vmem:[#allocation2 + $0x10] sm:$0xff] %v158
  %183 = vst [vmem:[#allocation2 + $0x18] sm:$0xff] %v161
  %184 = vst [vmem:[#allocation2 + $0x20] sm:$0xff] %v166
  %185 = vst [vmem:[#allocation2 + $0x28] sm:$0xff] %v169
  %186 = vst [vmem:[#allocation2 + $0x30] sm:$0xff] %v174
  %187 = vst [vmem:[#allocation2 + $0x38] sm:$0xff] %v177
  %v188 = vld [vmem:[%s4] sm:$0xf]
  %v189 = vld [vmem:[%s4 + $0x4] sm:$0xf]
  %v190 = vld [vmem:[%s4 + $0x8] sm:$0xf]
  %v191 = vld [vmem:[%s4 + $0xc] sm:$0xf]
  %v192 = vld [vmem:[%s5] sm:$0x1]
  %v194 = vlaneseq
  %v195 = vshrl.u32 %v194, 7
  %v196 = vsub.s32 0, %v195
  %v197 = vrot.slane %v192, %v196
  %v203 = vunpack.c.l.b16 %v188
  %v204 = vunpack.c.l.b16 %v189
  %v205 = vunpack.c.l.b16 %v190
  %v206 = vunpack.c.l.b16 %v191
  %v207 = vpack.c.b16 %v204, %v203
  %v208 = vpack.c.b16 %v206, %v205
  %211 = vmatprep.subr.bf16.mxu0 0
  %212 = vmatpush1.bf16.msra.mxu0 %v207
  %213 = vmatprep.subr.bf16.mxu0 0
  %214 = vmatpush1.bf16.msra.mxu0 %v208
  %215 = vmatprep.subr.bf16.mxu0 0
  %216 = vmatpush1.bf16.msra.mxu0 0
  %217 = vmatprep.subr.bf16.mxu0 0
  %218 = vmatpush1.bf16.msra.mxu0 0
  %219 = vmatprep.subr.bf16.mxu0 0
  %220 = vmatpush1.bf16.msra.mxu0 0
  %221 = vmatprep.subr.bf16.mxu0 0
  %222 = vmatpush1.bf16.msra.mxu0 0
  %223 = vmatprep.subr.bf16.mxu0 0
  %224 = vmatpush1.bf16.msra.mxu0 0
  %225 = vmatprep.subr.bf16.mxu0 0
  %226 = vmatpush1.bf16.msra.mxu0 0
  %227 = vmatprep.subr.bf16.mxu0 0
  %228 = vmatpush1.bf16.msra.mxu0 0
  %229 = vmatprep.subr.bf16.mxu0 0
  %230 = vmatpush1.bf16.msra.mxu0 0
  %231 = vmatprep.subr.bf16.mxu0 0
  %232 = vmatpush1.bf16.msra.mxu0 0
  %233 = vmatprep.subr.bf16.mxu0 0
  %234 = vmatpush1.bf16.msra.mxu0 0
  %235 = vmatprep.subr.bf16.mxu0 0
  %236 = vmatpush1.bf16.msra.mxu0 0
  %237 = vmatprep.subr.bf16.mxu0 0
  %238 = vmatpush1.bf16.msra.mxu0 0
  %239 = vmatprep.subr.bf16.mxu0 0
  %240 = vmatpush1.bf16.msra.mxu0 0
  %241 = vmatprep.subr.bf16.mxu0 0
  %242 = vmatpush1.bf16.msra.mxu0 0
  %243 = vmatprep.mubr.bf16.mxu0 0
  %244 = vmatmul.mubr.bf16.gmra.mrb[0].mxu0 %v104
  %v245 = vpop.f32.mrb[0].mxu0
  %v246 = vadd.f32 %v197, %v245
  %v247 = vpop.f32.mrb[0].mxu0
  %v248 = vpop.f32.mrb[0].mxu0
  %v249 = vadd.f32 %v197, %v248
  %v250 = vpop.f32.mrb[0].mxu0
  %251 = vmatprep.mubr.bf16.mxu0 0
  %252 = vmatmul.mubr.bf16.gmra.mrb[0].mxu0 %v107
  %v253 = vpop.f32.mrb[0].mxu0
  %v254 = vadd.f32 %v197, %v253
  %v255 = vpop.f32.mrb[0].mxu0
  %v256 = vpop.f32.mrb[0].mxu0
  %v257 = vadd.f32 %v197, %v256
  %v258 = vpop.f32.mrb[0].mxu0
  %259 = vmatprep.mubr.bf16.mxu0 0
  %260 = vmatmul.mubr.bf16.gmra.mrb[0].mxu0 %v110
  %v261 = vpop.f32.mrb[0].mxu0
  %v262 = vadd.f32 %v197, %v261
  %v263 = vpop.f32.mrb[0].mxu0
  %v264 = vpop.f32.mrb[0].mxu0
  %v265 = vadd.f32 %v197, %v264
  %v266 = vpop.f32.mrb[0].mxu0
  %267 = vmatprep.mubr.bf16.mxu0 0
  %268 = vmatmul.mubr.bf16.gmra.mrb[0].mxu0 %v113
  %v269 = vpop.f32.mrb[0].mxu0
  %v270 = vadd.f32 %v197, %v269
  %v271 = vpop.f32.mrb[0].mxu0
  %v272 = vpop.f32.mrb[0].mxu0
  %v273 = vadd.f32 %v197, %v272
  %v274 = vpop.f32.mrb[0].mxu0
  %275 = vdwg.mxu0
  %276 = vst [vmem:[#allocation3] sm:$0xff] %v246
  %277 = vst [vmem:[#allocation3 + $0x8] sm:$0xff] %v249
  %278 = vst [vmem:[#allocation3 + $0x10] sm:$0xff] %v254
  %279 = vst [vmem:[#allocation3 + $0x18] sm:$0xff] %v257
  %280 = vst [vmem:[#allocation3 + $0x20] sm:$0xff] %v262
  %281 = vst [vmem:[#allocation3 + $0x28] sm:$0xff] %v265
  %282 = vst [vmem:[#allocation3 + $0x30] sm:$0xff] %v270
  %283 = vst [vmem:[#allocation3 + $0x38] sm:$0xff] %v273
  %v284 = vld [vmem:[%s3] sm:$0xf]
  %v285 = vld [vmem:[%s3 + $0x4] sm:$0xf]
  %v286 = vld [vmem:[%s3 + $0x8] sm:$0xf]
  %v287 = vld [vmem:[%s3 + $0xc] sm:$0xf]
  %v292 = vunpack.c.l.b16 %v284
  %v293 = vunpack.c.l.b16 %v285
  %v294 = vunpack.c.l.b16 %v286
  %v295 = vunpack.c.l.b16 %v287
  %v296 = vpack.c.b16 %v293, %v292
  %v297 = vpack.c.b16 %v295, %v294
  %v301 = vsel %vm102, 0, 0
  %303 = vmatprep.subr.bf16.mxu0 0
  %304 = vmatpush1.bf16.msra.mxu0 %v296
  %305 = vmatprep.subr.bf16.mxu0 0
  %306 = vmatpush1.bf16.msra.mxu0 %v297
  %307 = vmatprep.subr.bf16.mxu0 0
  %308 = vmatpush1.bf16.msra.mxu0 0
  %309 = vmatprep.subr.bf16.mxu0 0
  %310 = vmatpush1.bf16.msra.mxu0 0
  %311 = vmatprep.subr.bf16.mxu0 0
  %312 = vmatpush1.bf16.msra.mxu0 0
  %313 = vmatprep.subr.bf16.mxu0 0
  %314 = vmatpush1.bf16.msra.mxu0 0
  %315 = vmatprep.subr.bf16.mxu0 0
  %316 = vmatpush1.bf16.msra.mxu0 0
  %317 = vmatprep.subr.bf16.mxu0 0
  %318 = vmatpush1.bf16.msra.mxu0 0
  %319 = vmatprep.subr.bf16.mxu0 0
  %320 = vmatpush1.bf16.msra.mxu0 0
  %321 = vmatprep.subr.bf16.mxu0 0
  %322 = vmatpush1.bf16.msra.mxu0 0
  %323 = vmatprep.subr.bf16.mxu0 0
  %324 = vmatpush1.bf16.msra.mxu0 0
  %325 = vmatprep.subr.bf16.mxu0 0
  %326 = vmatpush1.bf16.msra.mxu0 0
  %327 = vmatprep.subr.bf16.mxu0 0
  %328 = vmatpush1.bf16.msra.mxu0 0
  %329 = vmatprep.subr.bf16.mxu0 0
  %330 = vmatpush1.bf16.msra.mxu0 0
  %331 = vmatprep.subr.bf16.mxu0 0
  %332 = vmatpush1.bf16.msra.mxu0 0
  %333 = vmatprep.subr.bf16.mxu0 0
  %334 = vmatpush1.bf16.msra.mxu0 0
  %335 = vmatprep.mubr.bf16.mxu0 0
  %336 = vmatmul.mubr.bf16.gmra.mrb[0].mxu0 %v301
  %v337 = vpop.f32.mrb[0].mxu0
  %v338 = vadd.f32 0.0, %v337
  %v339 = vpop.f32.mrb[0].mxu0
  %v340 = vpop.f32.mrb[0].mxu0
  %v341 = vpop.f32.mrb[0].mxu0
  %342 = vdwg.mxu0
  %v343 = vld [vmem:[%s6] sm:$0xf]
  %v344 = vld [vmem:[%s6 + $0x4] sm:$0xf]
  %v345 = vld [vmem:[%s6 + $0x8] sm:$0xf]
  %v346 = vld [vmem:[%s6 + $0xc] sm:$0xf]
  %v351 = vunpack.c.l.b16 %v343
  %v352 = vunpack.c.l.b16 %v344
  %v353 = vunpack.c.l.b16 %v345
  %v354 = vunpack.c.l.b16 %v346
  %v355 = vpack.c.b16 %v352, %v351
  %v356 = vpack.c.b16 %v354, %v353
  %359 = vmatprep.subr.bf16.mxu0 0
  %360 = vmatpush1.bf16.msra.mxu0 %v355
  %361 = vmatprep.subr.bf16.mxu0 0
  %362 = vmatpush1.bf16.msra.mxu0 %v356
  %363 = vmatprep.subr.bf16.mxu0 0
  %364 = vmatpush1.bf16.msra.mxu0 0
  %365 = vmatprep.subr.bf16.mxu0 0
  %366 = vmatpush1.bf16.msra.mxu0 0
  %367 = vmatprep.subr.bf16.mxu0 0
  %368 = vmatpush1.bf16.msra.mxu0 0
  %369 = vmatprep.subr.bf16.mxu0 0
  %370 = vmatpush1.bf16.msra.mxu0 0
  %371 = vmatprep.subr.bf16.mxu0 0
  %372 = vmatpush1.bf16.msra.mxu0 0
  %373 = vmatprep.subr.bf16.mxu0 0
  %374 = vmatpush1.bf16.msra.mxu0 0
  %375 = vmatprep.subr.bf16.mxu0 0
  %376 = vmatpush1.bf16.msra.mxu0 0
  %377 = vmatprep.subr.bf16.mxu0 0
  %378 = vmatpush1.bf16.msra.mxu0 0
  %379 = vmatprep.subr.bf16.mxu0 0
  %380 = vmatpush1.bf16.msra.mxu0 0
  %381 = vmatprep.subr.bf16.mxu0 0
  %382 = vmatpush1.bf16.msra.mxu0 0
  %383 = vmatprep.subr.bf16.mxu0 0
  %384 = vmatpush1.bf16.msra.mxu0 0
  %385 = vmatprep.subr.bf16.mxu0 0
  %386 = vmatpush1.bf16.msra.mxu0 0
  %387 = vmatprep.subr.bf16.mxu0 0
  %388 = vmatpush1.bf16.msra.mxu0 0
  %389 = vmatprep.subr.bf16.mxu0 0
  %390 = vmatpush1.bf16.msra.mxu0 0
  %391 = vmatprep.mubr.bf16.mxu0 0
  %392 = vmatmul.mubr.bf16.gmra.mrb[0].mxu0 %v301
  %v393 = vpop.f32.mrb[0].mxu0
  %v394 = vadd.f32 0.0, %v393
  %v395 = vpop.f32.mrb[0].mxu0
  %v396 = vpop.f32.mrb[0].mxu0
  %v397 = vpop.f32.mrb[0].mxu0
  %398 = vdwg.mxu0
  %v399 = vld [vmem:[#allocation2] sm:$0xff]
  %v400 = vadd.f32 %v399, %v338
  %s401 = scalar_lea.vmem [#allocation3], 56
  %v402 = vld [vmem:[%s401] sm:$0xff]
  %v403 = vadd.f32 %v402, %v394
  %v404 = vxor.u32 %v400, 2147483648
  %v405 = vmul.f32 %v404, 1.442695
  %v406 = vpow.pop %v405
  %v407 = vadd.f32 %v406, 1.0
  %v408 = vrcp.pop %v407
  %v409 = vmul.f32 1.0, %v408
  %v410 = vtanh.pop %v400
  %v411 = vmul.f32 %v409, 0.0
  %413 = vrot.lane.b32.xlu0 %v410, 32
  %v414 = vpop.permute.xlu0 %413
  %v416 = vmul.f32 %v409, %v414
  %418 = vrot.lane.b32.xlu0 %v416, 32
  %v419 = vpop.permute.xlu0 %418
  %v421 = vadd.f32 %v411, %v419
  %v422 = vtanh.pop %v421
  %424 = vrot.lane.b32.xlu0 %v422, 32
  %v425 = vpop.permute.xlu0 %424
  %v427 = vmul.f32 %v409, %v425
  %v428 = vxor.u32 %v403, 2147483648
  %v429 = vmul.f32 %v428, 1.442695
  %v430 = vpow.pop %v429
  %v431 = vadd.f32 %v430, 1.0
  %v432 = vrcp.pop %v431
  %v433 = vmul.f32 1.0, %v432
  %v434 = vtanh.pop %v403
  %v435 = vmul.f32 %v433, 0.0
  %437 = vrot.lane.b32.xlu0 %v434, 32
  %v438 = vpop.permute.xlu0 %437
  %v440 = vmul.f32 %v433, %v438
  %442 = vrot.lane.b32.xlu0 %v440, 32
  %v443 = vpop.permute.xlu0 %442
  %v445 = vadd.f32 %v435, %v443
  %v446 = vtanh.pop %v445
  %448 = vrot.lane.b32.xlu0 %v446, 32
  %v449 = vpop.permute.xlu0 %448
  %v451 = vmul.f32 %v433, %v449
  %453 = vrot.lane.b32.xlu0 %v427, 64
  %v454 = vpop.permute.xlu0 %453
  %456 = vst.msk [vmem:[#allocation4] sm:$0xff] %vm102, %v454
  %458 = vrot.lane.b32.xlu0 %v451, 96
  %v459 = vpop.permute.xlu0 %458
  %s461 = scalar_lea.vmem [#allocation4], 56
  %vm462 = vcmask 523520
  %463 = vst.msk [vmem:[%s461] sm:$0xff] %vm462, %v459
  %v464 = vpack.c.bf16 %v427, %v427
  %v465 = vld [vmem:[%s3] sm:$0xf]
  %v466 = vld [vmem:[%s3 + $0x4] sm:$0xf]
  %v467 = vld [vmem:[%s3 + $0x8] sm:$0xf]
  %v468 = vld [vmem:[%s3 + $0xc] sm:$0xf]
  %470 = vrot.lane.b32.xlu0 %v464, 64
  %v471 = vpop.permute.xlu0 %470
  %v476 = vunpack.c.l.b16 %v465
  %v477 = vunpack.c.l.b16 %v466
  %v478 = vunpack.c.l.b16 %v467
  %v479 = vunpack.c.l.b16 %v468
  %v480 = vpack.c.b16 %v477, %v476
  %v481 = vpack.c.b16 %v479, %v478
  %v485 = vsel %vm102, %v471, 0
  %487 = vmatprep.subr.bf16.mxu0 0
  %488 = vmatpush1.bf16.msra.mxu0 %v480
  %489 = vmatprep.subr.bf16.mxu0 0
  %490 = vmatpush1.bf16.msra.mxu0 %v481
  %491 = vmatprep.subr.bf16.mxu0 0
  %492 = vmatpush1.bf16.msra.mxu0 0
  %493 = vmatprep.subr.bf16.mxu0 0
  %494 = vmatpush1.bf16.msra.mxu0 0
  %495 = vmatprep.subr.bf16.mxu0 0
  %496 = vmatpush1.bf16.msra.mxu0 0
  %497 = vmatprep.subr.bf16.mxu0 0
  %498 = vmatpush1.bf16.msra.mxu0 0
  %499 = vmatprep.subr.bf16.mxu0 0
  %500 = vmatpush1.bf16.msra.mxu0 0
  %501 = vmatprep.subr.bf16.mxu0 0
  %502 = vmatpush1.bf16.msra.mxu0 0
  %503 = vmatprep.subr.bf16.mxu0 0
  %504 = vmatpush1.bf16.msra.mxu0 0
  %505 = vmatprep.subr.bf16.mxu0 0
  %506 = vmatpush1.bf16.msra.mxu0 0
  %507 = vmatprep.subr.bf16.mxu0 0
  %508 = vmatpush1.bf16.msra.mxu0 0
  %509 = vmatprep.subr.bf16.mxu0 0
  %510 = vmatpush1.bf16.msra.mxu0 0
  %511 = vmatprep.subr.bf16.mxu0 0
  %512 = vmatpush1.bf16.msra.mxu0 0
  %513 = vmatprep.subr.bf16.mxu0 0
  %514 = vmatpush1.bf16.msra.mxu0 0
  %515 = vmatprep.subr.bf16.mxu0 0
  %516 = vmatpush1.bf16.msra.mxu0 0
  %517 = vmatprep.subr.bf16.mxu0 0
  %518 = vmatpush1.bf16.msra.mxu0 0
  %519 = vmatprep.mubr.bf16.mxu0 0
  %520 = vmatmul.mubr.bf16.gmra.mrb[0].mxu0 %v485
  %v521 = vpop.f32.mrb[0].mxu0
  %v522 = vadd.f32 0.0, %v521
  %v523 = vpop.f32.mrb[0].mxu0
  %v524 = vpop.f32.mrb[0].mxu0
  %v525 = vpop.f32.mrb[0].mxu0
  %526 = vdwg.mxu0
  %v527 = vpack.c.bf16 %v451, %v451
  %v528 = vld [vmem:[%s6] sm:$0xf]
  %v529 = vld [vmem:[%s6 + $0x4] sm:$0xf]
  %v530 = vld [vmem:[%s6 + $0x8] sm:$0xf]
  %v531 = vld [vmem:[%s6 + $0xc] sm:$0xf]
  %533 = vrot.lane.b32.xlu0 %v527, 64
  %v534 = vpop.permute.xlu0 %533
  %v539 = vunpack.c.l.b16 %v528
  %v540 = vunpack.c.l.b16 %v529
  %v541 = vunpack.c.l.b16 %v530
  %v542 = vunpack.c.l.b16 %v531
  %v543 = vpack.c.b16 %v540, %v539
  %v544 = vpack.c.b16 %v542, %v541
  %v548 = vsel %vm102, %v534, 0
  %550 = vmatprep.subr.bf16.mxu0 0
  %551 = vmatpush1.bf16.msra.mxu0 %v543
  %552 = vmatprep.subr.bf16.mxu0 0
  %553 = vmatpush1.bf16.msra.mxu0 %v544
  %554 = vmatprep.subr.bf16.mxu0 0
  %555 = vmatpush1.bf16.msra.mxu0 0
  %556 = vmatprep.subr.bf16.mxu0 0
  %557 = vmatpush1.bf16.msra.mxu0 0
  %558 = vmatprep.subr.bf16.mxu0 0
  %559 = vmatpush1.bf16.msra.mxu0 0
  %560 = vmatprep.subr.bf16.mxu0 0
  %561 = vmatpush1.bf16.msra.mxu0 0
  %562 = vmatprep.subr.bf16.mxu0 0
  %563 = vmatpush1.bf16.msra.mxu0 0
  %564 = vmatprep.subr.bf16.mxu0 0
  %565 = vmatpush1.bf16.msra.mxu0 0
  %566 = vmatprep.subr.bf16.mxu0 0
  %567 = vmatpush1.bf16.msra.mxu0 0
  %568 = vmatprep.subr.bf16.mxu0 0
  %569 = vmatpush1.bf16.msra.mxu0 0
  %570 = vmatprep.subr.bf16.mxu0 0
  %571 = vmatpush1.bf16.msra.mxu0 0
  %572 = vmatprep.subr.bf16.mxu0 0
  %573 = vmatpush1.bf16.msra.mxu0 0
  %574 = vmatprep.subr.bf16.mxu0 0
  %575 = vmatpush1.bf16.msra.mxu0 0
  %576 = vmatprep.subr.bf16.mxu0 0
  %577 = vmatpush1.bf16.msra.mxu0 0
  %578 = vmatprep.subr.bf16.mxu0 0
  %579 = vmatpush1.bf16.msra.mxu0 0
  %580 = vmatprep.subr.bf16.mxu0 0
  %581 = vmatpush1.bf16.msra.mxu0 0
  %582 = vmatprep.mubr.bf16.mxu0 0
  %583 = vmatmul.mubr.bf16.gmra.mrb[0].mxu0 %v548
  %v584 = vpop.f32.mrb[0].mxu0
  %v585 = vadd.f32 0.0, %v584
  %v586 = vpop.f32.mrb[0].mxu0
  %v587 = vpop.f32.mrb[0].mxu0
  %v588 = vpop.f32.mrb[0].mxu0
  %589 = vdwg.mxu0
  %s590 = scalar_lea.vmem [#allocation2], 8
  %v591 = vld [vmem:[%s590] sm:$0xff]
  %v592 = vadd.f32 %v591, %v522
  %s593 = scalar_lea.vmem [#allocation3], 48
  %v594 = vld [vmem:[%s593] sm:$0xff]
  %v595 = vadd.f32 %v594, %v585
  %v596 = vxor.u32 %v592, 2147483648
  %v597 = vmul.f32 %v596, 1.442695
  %v598 = vpow.pop %v597
  %v599 = vadd.f32 %v598, 1.0
  %v600 = vrcp.pop %v599
  %v601 = vmul.f32 1.0, %v600
  %v602 = vtanh.pop %v592
  %v603 = vmul.f32 %v601, %v421
  %605 = vrot.lane.b32.xlu0 %v602, 32
  %v606 = vpop.permute.xlu0 %605
  %v608 = vmul.f32 %v601, %v606
  %610 = vrot.lane.b32.xlu0 %v608, 32
  %v611 = vpop.permute.xlu0 %610
  %v613 = vadd.f32 %v603, %v611
  %v614 = vtanh.pop %v613
  %616 = vrot.lane.b32.xlu0 %v614, 32
  %v617 = vpop.permute.xlu0 %616
  %v619 = vmul.f32 %v601, %v617
  %v620 = vxor.u32 %v595, 2147483648
  %v621 = vmul.f32 %v620, 1.442695
  %v622 = vpow.pop %v621
  %v623 = vadd.f32 %v622, 1.0
  %v624 = vrcp.pop %v623
  %v625 = vmul.f32 1.0, %v624
  %v626 = vtanh.pop %v595
  %v627 = vmul.f32 %v625, %v445
  %629 = vrot.lane.b32.xlu0 %v626, 32
  %v630 = vpop.permute.xlu0 %629
  %v632 = vmul.f32 %v625, %v630
  %634 = vrot.lane.b32.xlu0 %v632, 32
  %v635 = vpop.permute.xlu0 %634
  %v637 = vadd.f32 %v627, %v635
  %v638 = vtanh.pop %v637
  %640 = vrot.lane.b32.xlu0 %v638, 32
  %v641 = vpop.permute.xlu0 %640
  %v643 = vmul.f32 %v625, %v641
  %645 = vrot.lane.b32.xlu0 %v619, 64
  %v646 = vpop.permute.xlu0 %645
  %s648 = scalar_lea.vmem [#allocation4], 8
  %649 = vst.msk [vmem:[%s648] sm:$0xff] %vm102, %v646
  %651 = vrot.lane.b32.xlu0 %v643, 96
  %v652 = vpop.permute.xlu0 %651
  %s654 = scalar_lea.vmem [#allocation4], 48
  %655 = vst.msk [vmem:[%s654] sm:$0xff] %vm462, %v652
  %v656 = vpack.c.bf16 %v619, %v619
  %v657 = vld [vmem:[%s3] sm:$0xf]
  %v658 = vld [vmem:[%s3 + $0x4] sm:$0xf]
  %v659 = vld [vmem:[%s3 + $0x8] sm:$0xf]
  %v660 = vld [vmem:[%s3 + $0xc] sm:$0xf]
  %662 = vrot.lane.b32.xlu0 %v656, 64
  %v663 = vpop.permute.xlu0 %662
  %v668 = vunpack.c.l.b16 %v657
  %v669 = vunpack.c.l.b16 %v658
  %v670 = vunpack.c.l.b16 %v659
  %v671 = vunpack.c.l.b16 %v660
  %v672 = vpack.c.b16 %v669, %v668
  %v673 = vpack.c.b16 %v671, %v670
  %v677 = vsel %vm102, %v663, 0
  %679 = vmatprep.subr.bf16.mxu0 0
  %680 = vmatpush1.bf16.msra.mxu0 %v672
  %681 = vmatprep.subr.bf16.mxu0 0
  %682 = vmatpush1.bf16.msra.mxu0 %v673
  %683 = vmatprep.subr.bf16.mxu0 0
  %684 = vmatpush1.bf16.msra.mxu0 0
  %685 = vmatprep.subr.bf16.mxu0 0
  %686 = vmatpush1.bf16.msra.mxu0 0
  %687 = vmatprep.subr.bf16.mxu0 0
  %688 = vmatpush1.bf16.msra.mxu0 0
  %689 = vmatprep.subr.bf16.mxu0 0
  %690 = vmatpush1.bf16.msra.mxu0 0
  %691 = vmatprep.subr.bf16.mxu0 0
  %692 = vmatpush1.bf16.msra.mxu0 0
  %693 = vmatprep.subr.bf16.mxu0 0
  %694 = vmatpush1.bf16.msra.mxu0 0
  %695 = vmatprep.subr.bf16.mxu0 0
  %696 = vmatpush1.bf16.msra.mxu0 0
  %697 = vmatprep.subr.bf16.mxu0 0
  %698 = vmatpush1.bf16.msra.mxu0 0
  %699 = vmatprep.subr.bf16.mxu0 0
  %700 = vmatpush1.bf16.msra.mxu0 0
  %701 = vmatprep.subr.bf16.mxu0 0
  %702 = vmatpush1.bf16.msra.mxu0 0
  %703 = vmatprep.subr.bf16.mxu0 0
  %704 = vmatpush1.bf16.msra.mxu0 0
  %705 = vmatprep.subr.bf16.mxu0 0
  %706 = vmatpush1.bf16.msra.mxu0 0
  %707 = vmatprep.subr.bf16.mxu0 0
  %708 = vmatpush1.bf16.msra.mxu0 0
  %709 = vmatprep.subr.bf16.mxu0 0
  %710 = vmatpush1.bf16.msra.mxu0 0
  %711 = vmatprep.mubr.bf16.mxu0 0
  %712 = vmatmul.mubr.bf16.gmra.mrb[0].mxu0 %v677
  %v713 = vpop.f32.mrb[0].mxu0
  %v714 = vadd.f32 0.0, %v713
  %v715 = vpop.f32.mrb[0].mxu0
  %v716 = vpop.f32.mrb[0].mxu0
  %v717 = vpop.f32.mrb[0].mxu0
  %718 = vdwg.mxu0
  %v719 = vpack.c.bf16 %v643, %v643
  %v720 = vld [vmem:[%s6] sm:$0xf]
  %v721 = vld [vmem:[%s6 + $0x4] sm:$0xf]
  %v722 = vld [vmem:[%s6 + $0x8] sm:$0xf]
  %v723 = vld [vmem:[%s6 + $0xc] sm:$0xf]
  %725 = vrot.lane.b32.xlu0 %v719, 64
  %v726 = vpop.permute.xlu0 %725
  %v731 = vunpack.c.l.b16 %v720
  %v732 = vunpack.c.l.b16 %v721
  %v733 = vunpack.c.l.b16 %v722
  %v734 = vunpack.c.l.b16 %v723
  %v735 = vpack.c.b16 %v732, %v731
  %v736 = vpack.c.b16 %v734, %v733
  %v740 = vsel %vm102, %v726, 0
  %742 = vmatprep.subr.bf16.mxu0 0
  %743 = vmatpush1.bf16.msra.mxu0 %v735
  %744 = vmatprep.subr.bf16.mxu0 0
  %745 = vmatpush1.bf16.msra.mxu0 %v736
  %746 = vmatprep.subr.bf16.mxu0 0
  %747 = vmatpush1.bf16.msra.mxu0 0
  %748 = vmatprep.subr.bf16.mxu0 0
  %749 = vmatpush1.bf16.msra.mxu0 0
  %750 = vmatprep.subr.bf16.mxu0 0
  %751 = vmatpush1.bf16.msra.mxu0 0
  %752 = vmatprep.subr.bf16.mxu0 0
  %753 = vmatpush1.bf16.msra.mxu0 0
  %754 = vmatprep.subr.bf16.mxu0 0
  %755 = vmatpush1.bf16.msra.mxu0 0
  %756 = vmatprep.subr.bf16.mxu0 0
  %757 = vmatpush1.bf16.msra.mxu0 0
  %758 = vmatprep.subr.bf16.mxu0 0
  %759 = vmatpush1.bf16.msra.mxu0 0
  %760 = vmatprep.subr.bf16.mxu0 0
  %761 = vmatpush1.bf16.msra.mxu0 0
  %762 = vmatprep.subr.bf16.mxu0 0
  %763 = vmatpush1.bf16.msra.mxu0 0
  %764 = vmatprep.subr.bf16.mxu0 0
  %765 = vmatpush1.bf16.msra.mxu0 0
  %766 = vmatprep.subr.bf16.mxu0 0
  %767 = vmatpush1.bf16.msra.mxu0 0
  %768 = vmatprep.subr.bf16.mxu0 0
  %769 = vmatpush1.bf16.msra.mxu0 0
  %770 = vmatprep.subr.bf16.mxu0 0
  %771 = vmatpush1.bf16.msra.mxu0 0
  %772 = vmatprep.subr.bf16.mxu0 0
  %773 = vmatpush1.bf16.msra.mxu0 0
  %774 = vmatprep.mubr.bf16.mxu0 0
  %775 = vmatmul.mubr.bf16.gmra.mrb[0].mxu0 %v740
  %v776 = vpop.f32.mrb[0].mxu0
  %v777 = vadd.f32 0.0, %v776
  %v778 = vpop.f32.mrb[0].mxu0
  %v779 = vpop.f32.mrb[0].mxu0
  %v780 = vpop.f32.mrb[0].mxu0
  %781 = vdwg.mxu0
  %s782 = scalar_lea.vmem [#allocation2], 16
  %v783 = vld [vmem:[%s782] sm:$0xff]
  %v784 = vadd.f32 %v783, %v714
  %s785 = scalar_lea.vmem [#allocation3], 40
  %v786 = vld [vmem:[%s785] sm:$0xff]
  %v787 = vadd.f32 %v786, %v777
  %v788 = vxor.u32 %v784, 2147483648
  %v789 = vmul.f32 %v788, 1.442695
  %v790 = vpow.pop %v789
  %v791 = vadd.f32 %v790, 1.0
  %v792 = vrcp.pop %v791
  %v793 = vmul.f32 1.0, %v792
  %v794 = vtanh.pop %v784
  %v795 = vmul.f32 %v793, %v613
  %797 = vrot.lane.b32.xlu0 %v794, 32
  %v798 = vpop.permute.xlu0 %797
  %v800 = vmul.f32 %v793, %v798
  %802 = vrot.lane.b32.xlu0 %v800, 32
  %v803 = vpop.permute.xlu0 %802
  %v805 = vadd.f32 %v795, %v803
  %v806 = vtanh.pop %v805
  %808 = vrot.lane.b32.xlu0 %v806, 32
  %v809 = vpop.permute.xlu0 %808
  %v811 = vmul.f32 %v793, %v809
  %v812 = vxor.u32 %v787, 2147483648
  %v813 = vmul.f32 %v812, 1.442695
  %v814 = vpow.pop %v813
  %v815 = vadd.f32 %v814, 1.0
  %v816 = vrcp.pop %v815
  %v817 = vmul.f32 1.0, %v816
  %v818 = vtanh.pop %v787
  %v819 = vmul.f32 %v817, %v637
  %821 = vrot.lane.b32.xlu0 %v818, 32
  %v822 = vpop.permute.xlu0 %821
  %v824 = vmul.f32 %v817, %v822
  %826 = vrot.lane.b32.xlu0 %v824, 32
  %v827 = vpop.permute.xlu0 %826
  %v829 = vadd.f32 %v819, %v827
  %v830 = vtanh.pop %v829
  %832 = vrot.lane.b32.xlu0 %v830, 32
  %v833 = vpop.permute.xlu0 %832
  %v835 = vmul.f32 %v817, %v833
  %837 = vrot.lane.b32.xlu0 %v811, 64
  %v838 = vpop.permute.xlu0 %837
  %s840 = scalar_lea.vmem [#allocation4], 16
  %841 = vst.msk [vmem:[%s840] sm:$0xff] %vm102, %v838
  %843 = vrot.lane.b32.xlu0 %v835, 96
  %v844 = vpop.permute.xlu0 %843
  %s846 = scalar_lea.vmem [#allocation4], 40
  %847 = vst.msk [vmem:[%s846] sm:$0xff] %vm462, %v844
  %v848 = vpack.c.bf16 %v811, %v811
  %v849 = vld [vmem:[%s3] sm:$0xf]
  %v850 = vld [vmem:[%s3 + $0x4] sm:$0xf]
  %v851 = vld [vmem:[%s3 + $0x8] sm:$0xf]
  %v852 = vld [vmem:[%s3 + $0xc] sm:$0xf]
  %854 = vrot.lane.b32.xlu0 %v848, 64
  %v855 = vpop.permute.xlu0 %854
  %v860 = vunpack.c.l.b16 %v849
  %v861 = vunpack.c.l.b16 %v850
  %v862 = vunpack.c.l.b16 %v851
  %v863 = vunpack.c.l.b16 %v852
  %v864 = vpack.c.b16 %v861, %v860
  %v865 = vpack.c.b16 %v863, %v862
  %v869 = vsel %vm102, %v855, 0
  %871 = vmatprep.subr.bf16.mxu0 0
  %872 = vmatpush1.bf16.msra.mxu0 %v864
  %873 = vmatprep.subr.bf16.mxu0 0
  %874 = vmatpush1.bf16.msra.mxu0 %v865
  %875 = vmatprep.subr.bf16.mxu0 0
  %876 = vmatpush1.bf16.msra.mxu0 0
  %877 = vmatprep.subr.bf16.mxu0 0
  %878 = vmatpush1.bf16.msra.mxu0 0
  %879 = vmatprep.subr.bf16.mxu0 0
  %880 = vmatpush1.bf16.msra.mxu0 0
  %881 = vmatprep.subr.bf16.mxu0 0
  %882 = vmatpush1.bf16.msra.mxu0 0
  %883 = vmatprep.subr.bf16.mxu0 0
  %884 = vmatpush1.bf16.msra.mxu0 0
  %885 = vmatprep.subr.bf16.mxu0 0
  %886 = vmatpush1.bf16.msra.mxu0 0
  %887 = vmatprep.subr.bf16.mxu0 0
  %888 = vmatpush1.bf16.msra.mxu0 0
  %889 = vmatprep.subr.bf16.mxu0 0
  %890 = vmatpush1.bf16.msra.mxu0 0
  %891 = vmatprep.subr.bf16.mxu0 0
  %892 = vmatpush1.bf16.msra.mxu0 0
  %893 = vmatprep.subr.bf16.mxu0 0
  %894 = vmatpush1.bf16.msra.mxu0 0
  %895 = vmatprep.subr.bf16.mxu0 0
  %896 = vmatpush1.bf16.msra.mxu0 0
  %897 = vmatprep.subr.bf16.mxu0 0
  %898 = vmatpush1.bf16.msra.mxu0 0
  %899 = vmatprep.subr.bf16.mxu0 0
  %900 = vmatpush1.bf16.msra.mxu0 0
  %901 = vmatprep.subr.bf16.mxu0 0
  %902 = vmatpush1.bf16.msra.mxu0 0
  %903 = vmatprep.mubr.bf16.mxu0 0
  %904 = vmatmul.mubr.bf16.gmra.mrb[0].mxu0 %v869
  %v905 = vpop.f32.mrb[0].mxu0
  %v906 = vadd.f32 0.0, %v905
  %v907 = vpop.f32.mrb[0].mxu0
  %v908 = vpop.f32.mrb[0].mxu0
  %v909 = vpop.f32.mrb[0].mxu0
  %910 = vdwg.mxu0
  %v911 = vpack.c.bf16 %v835, %v835
  %v912 = vld [vmem:[%s6] sm:$0xf]
  %v913 = vld [vmem:[%s6 + $0x4] sm:$0xf]
  %v914 = vld [vmem:[%s6 + $0x8] sm:$0xf]
  %v915 = vld [vmem:[%s6 + $0xc] sm:$0xf]
  %917 = vrot.lane.b32.xlu0 %v911, 64
  %v918 = vpop.permute.xlu0 %917
  %v923 = vunpack.c.l.b16 %v912
  %v924 = vunpack.c.l.b16 %v913
  %v925 = vunpack.c.l.b16 %v914
  %v926 = vunpack.c.l.b16 %v915
  %v927 = vpack.c.b16 %v924, %v923
  %v928 = vpack.c.b16 %v926, %v925
  %v932 = vsel %vm102, %v918, 0
  %934 = vmatprep.subr.bf16.mxu0 0
  %935 = vmatpush1.bf16.msra.mxu0 %v927
  %936 = vmatprep.subr.bf16.mxu0 0
  %937 = vmatpush1.bf16.msra.mxu0 %v928
  %938 = vmatprep.subr.bf16.mxu0 0
  %939 = vmatpush1.bf16.msra.mxu0 0
  %940 = vmatprep.subr.bf16.mxu0 0
  %941 = vmatpush1.bf16.msra.mxu0 0
  %942 = vmatprep.subr.bf16.mxu0 0
  %943 = vmatpush1.bf16.msra.mxu0 0
  %944 = vmatprep.subr.bf16.mxu0 0
  %945 = vmatpush1.bf16.msra.mxu0 0
  %946 = vmatprep.subr.bf16.mxu0 0
  %947 = vmatpush1.bf16.msra.mxu0 0
  %948 = vmatprep.subr.bf16.mxu0 0
  %949 = vmatpush1.bf16.msra.mxu0 0
  %950 = vmatprep.subr.bf16.mxu0 0
  %951 = vmatpush1.bf16.msra.mxu0 0
  %952 = vmatprep.subr.bf16.mxu0 0
  %953 = vmatpush1.bf16.msra.mxu0 0
  %954 = vmatprep.subr.bf16.mxu0 0
  %955 = vmatpush1.bf16.msra.mxu0 0
  %956 = vmatprep.subr.bf16.mxu0 0
  %957 = vmatpush1.bf16.msra.mxu0 0
  %958 = vmatprep.subr.bf16.mxu0 0
  %959 = vmatpush1.bf16.msra.mxu0 0
  %960 = vmatprep.subr.bf16.mxu0 0
  %961 = vmatpush1.bf16.msra.mxu0 0
  %962 = vmatprep.subr.bf16.mxu0 0
  %963 = vmatpush1.bf16.msra.mxu0 0
  %964 = vmatprep.subr.bf16.mxu0 0
  %965 = vmatpush1.bf16.msra.mxu0 0
  %966 = vmatprep.mubr.bf16.mxu0 0
  %967 = vmatmul.mubr.bf16.gmra.mrb[0].mxu0 %v932
  %v968 = vpop.f32.mrb[0].mxu0
  %v969 = vadd.f32 0.0, %v968
  %v970 = vpop.f32.mrb[0].mxu0
  %v971 = vpop.f32.mrb[0].mxu0
  %v972 = vpop.f32.mrb[0].mxu0
  %973 = vdwg.mxu0
  %s974 = scalar_lea.vmem [#allocation2], 24
  %v975 = vld [vmem:[%s974] sm:$0xff]
  %v976 = vadd.f32 %v975, %v906
  %s977 = scalar_lea.vmem [#allocation3], 32
  %v978 = vld [vmem:[%s977] sm:$0xff]
  %v979 = vadd.f32 %v978, %v969
  %v980 = vxor.u32 %v976, 2147483648
  %v981 = vmul.f32 %v980, 1.442695
  %v982 = vpow.pop %v981
  %v983 = vadd.f32 %v982, 1.0
  %v984 = vrcp.pop %v983
  %v985 = vmul.f32 1.0, %v984
  %v986 = vtanh.pop %v976
  %v987 = vmul.f32 %v985, %v805
  %989 = vrot.lane.b32.xlu0 %v986, 32
  %v990 = vpop.permute.xlu0 %989
  %v992 = vmul.f32 %v985, %v990
  %994 = vrot.lane.b32.xlu0 %v992, 32
  %v995 = vpop.permute.xlu0 %994
  %v997 = vadd.f32 %v987, %v995
  %v998 = vtanh.pop %v997
  %1000 = vrot.lane.b32.xlu0 %v998, 32
  %v1001 = vpop.permute.xlu0 %1000
  %v1003 = vmul.f32 %v985, %v1001
  %v1004 = vxor.u32 %v979, 2147483648
  %v1005 = vmul.f32 %v1004, 1.442695
  %v1006 = vpow.pop %v1005
  %v1007 = vadd.f32 %v1006, 1.0
  %v1008 = vrcp.pop %v1007
  %v1009 = vmul.f32 1.0, %v1008
  %v1010 = vtanh.pop %v979
  %v1011 = vmul.f32 %v1009, %v829
  %1013 = vrot.lane.b32.xlu0 %v1010, 32
  %v1014 = vpop.permute.xlu0 %1013
  %v1016 = vmul.f32 %v1009, %v1014
  %1018 = vrot.lane.b32.xlu0 %v1016, 32
  %v1019 = vpop.permute.xlu0 %1018
  %v1021 = vadd.f32 %v1011, %v1019
  %v1022 = vtanh.pop %v1021
  %1024 = vrot.lane.b32.xlu0 %v1022, 32
  %v1025 = vpop.permute.xlu0 %1024
  %v1027 = vmul.f32 %v1009, %v1025
  %1029 = vrot.lane.b32.xlu0 %v1003, 64
  %v1030 = vpop.permute.xlu0 %1029
  %s1032 = scalar_lea.vmem [#allocation4], 24
  %1033 = vst.msk [vmem:[%s1032] sm:$0xff] %vm102, %v1030
  %1035 = vrot.lane.b32.xlu0 %v1027, 96
  %v1036 = vpop.permute.xlu0 %1035
  %s1038 = scalar_lea.vmem [#allocation4], 32
  %1039 = vst.msk [vmem:[%s1038] sm:$0xff] %vm462, %v1036
  %v1040 = vpack.c.bf16 %v1003, %v1003
  %v1041 = vld [vmem:[%s3] sm:$0xf]
  %v1042 = vld [vmem:[%s3 + $0x4] sm:$0xf]
  %v1043 = vld [vmem:[%s3 + $0x8] sm:$0xf]
  %v1044 = vld [vmem:[%s3 + $0xc] sm:$0xf]
  %1046 = vrot.lane.b32.xlu0 %v1040, 64
  %v1047 = vpop.permute.xlu0 %1046
  %v1052 = vunpack.c.l.b16 %v1041
  %v1053 = vunpack.c.l.b16 %v1042
  %v1054 = vunpack.c.l.b16 %v1043
  %v1055 = vunpack.c.l.b16 %v1044
  %v1056 = vpack.c.b16 %v1053, %v1052
  %v1057 = vpack.c.b16 %v1055, %v1054
  %v1061 = vsel %vm102, %v1047, 0
  %1063 = vmatprep.subr.bf16.mxu0 0
  %1064 = vmatpush1.bf16.msra.mxu0 %v1056
  %1065 = vmatprep.subr.bf16.mxu0 0
  %1066 = vmatpush1.bf16.msra.mxu0 %v1057
  %1067 = vmatprep.subr.bf16.mxu0 0
  %1068 = vmatpush1.bf16.msra.mxu0 0
  %1069 = vmatprep.subr.bf16.mxu0 0
  %1070 = vmatpush1.bf16.msra.mxu0 0
  %1071 = vmatprep.subr.bf16.mxu0 0
  %1072 = vmatpush1.bf16.msra.mxu0 0
  %1073 = vmatprep.subr.bf16.mxu0 0
  %1074 = vmatpush1.bf16.msra.mxu0 0
  %1075 = vmatprep.subr.bf16.mxu0 0
  %1076 = vmatpush1.bf16.msra.mxu0 0
  %1077 = vmatprep.subr.bf16.mxu0 0
  %1078 = vmatpush1.bf16.msra.mxu0 0
  %1079 = vmatprep.subr.bf16.mxu0 0
  %1080 = vmatpush1.bf16.msra.mxu0 0
  %1081 = vmatprep.subr.bf16.mxu0 0
  %1082 = vmatpush1.bf16.msra.mxu0 0
  %1083 = vmatprep.subr.bf16.mxu0 0
  %1084 = vmatpush1.bf16.msra.mxu0 0
  %1085 = vmatprep.subr.bf16.mxu0 0
  %1086 = vmatpush1.bf16.msra.mxu0 0
  %1087 = vmatprep.subr.bf16.mxu0 0
  %1088 = vmatpush1.bf16.msra.mxu0 0
  %1089 = vmatprep.subr.bf16.mxu0 0
  %1090 = vmatpush1.bf16.msra.mxu0 0
  %1091 = vmatprep.subr.bf16.mxu0 0
  %1092 = vmatpush1.bf16.msra.mxu0 0
  %1093 = vmatprep.subr.bf16.mxu0 0
  %1094 = vmatpush1.bf16.msra.mxu0 0
  %1095 = vmatprep.mubr.bf16.mxu0 0
  %1096 = vmatmul.mubr.bf16.gmra.mrb[0].mxu0 %v1061
  %v1097 = vpop.f32.mrb[0].mxu0
  %v1098 = vadd.f32 0.0, %v1097
  %v1099 = vpop.f32.mrb[0].mxu0
  %v1100 = vpop.f32.mrb[0].mxu0
  %v1101 = vpop.f32.mrb[0].mxu0
  %1102 = vdwg.mxu0
  %v1103 = vpack.c.bf16 %v1027, %v1027
  %v1104 = vld [vmem:[%s6] sm:$0xf]
  %v1105 = vld [vmem:[%s6 + $0x4] sm:$0xf]
  %v1106 = vld [vmem:[%s6 + $0x8] sm:$0xf]
  %v1107 = vld [vmem:[%s6 + $0xc] sm:$0xf]
  %1109 = vrot.lane.b32.xlu0 %v1103, 64
  %v1110 = vpop.permute.xlu0 %1109
  %v1115 = vunpack.c.l.b16 %v1104
  %v1116 = vunpack.c.l.b16 %v1105
  %v1117 = vunpack.c.l.b16 %v1106
  %v1118 = vunpack.c.l.b16 %v1107
  %v1119 = vpack.c.b16 %v1116, %v1115
  %v1120 = vpack.c.b16 %v1118, %v1117
  %v1124 = vsel %vm102, %v1110, 0
  %1126 = vmatprep.subr.bf16.mxu0 0
  %1127 = vmatpush1.bf16.msra.mxu0 %v1119
  %1128 = vmatprep.subr.bf16.mxu0 0
  %1129 = vmatpush1.bf16.msra.mxu0 %v1120
  %1130 = vmatprep.subr.bf16.mxu0 0
  %1131 = vmatpush1.bf16.msra.mxu0 0
  %1132 = vmatprep.subr.bf16.mxu0 0
  %1133 = vmatpush1.bf16.msra.mxu0 0
  %1134 = vmatprep.subr.bf16.mxu0 0
  %1135 = vmatpush1.bf16.msra.mxu0 0
  %1136 = vmatprep.subr.bf16.mxu0 0
  %1137 = vmatpush1.bf16.msra.mxu0 0
  %1138 = vmatprep.subr.bf16.mxu0 0
  %1139 = vmatpush1.bf16.msra.mxu0 0
  %1140 = vmatprep.subr.bf16.mxu0 0
  %1141 = vmatpush1.bf16.msra.mxu0 0
  %1142 = vmatprep.subr.bf16.mxu0 0
  %1143 = vmatpush1.bf16.msra.mxu0 0
  %1144 = vmatprep.subr.bf16.mxu0 0
  %1145 = vmatpush1.bf16.msra.mxu0 0
  %1146 = vmatprep.subr.bf16.mxu0 0
  %1147 = vmatpush1.bf16.msra.mxu0 0
  %1148 = vmatprep.subr.bf16.mxu0 0
  %1149 = vmatpush1.bf16.msra.mxu0 0
  %1150 = vmatprep.subr.bf16.mxu0 0
  %1151 = vmatpush1.bf16.msra.mxu0 0
  %1152 = vmatprep.subr.bf16.mxu0 0
  %1153 = vmatpush1.bf16.msra.mxu0 0
  %1154 = vmatprep.subr.bf16.mxu0 0
  %1155 = vmatpush1.bf16.msra.mxu0 0
  %1156 = vmatprep.subr.bf16.mxu0 0
  %1157 = vmatpush1.bf16.msra.mxu0 0
  %1158 = vmatprep.mubr.bf16.mxu0 0
  %1159 = vmatmul.mubr.bf16.gmra.mrb[0].mxu0 %v1124
  %v1160 = vpop.f32.mrb[0].mxu0
  %v1161 = vadd.f32 0.0, %v1160
  %v1162 = vpop.f32.mrb[0].mxu0
  %v1163 = vpop.f32.mrb[0].mxu0
  %v1164 = vpop.f32.mrb[0].mxu0
  %1165 = vdwg.mxu0
  %s1166 = scalar_lea.vmem [#allocation2], 32
  %v1167 = vld [vmem:[%s1166] sm:$0xff]
  %v1168 = vadd.f32 %v1167, %v1098
  %s1169 = scalar_lea.vmem [#allocation3], 24
  %v1170 = vld [vmem:[%s1169] sm:$0xff]
  %v1171 = vadd.f32 %v1170, %v1161
  %v1172 = vxor.u32 %v1168, 2147483648
  %v1173 = vmul.f32 %v1172, 1.442695
  %v1174 = vpow.pop %v1173
  %v1175 = vadd.f32 %v1174, 1.0
  %v1176 = vrcp.pop %v1175
  %v1177 = vmul.f32 1.0, %v1176
  %v1178 = vtanh.pop %v1168
  %v1179 = vmul.f32 %v1177, %v997
  %1181 = vrot.lane.b32.xlu0 %v1178, 32
  %v1182 = vpop.permute.xlu0 %1181
  %v1184 = vmul.f32 %v1177, %v1182
  %1186 = vrot.lane.b32.xlu0 %v1184, 32
  %v1187 = vpop.permute.xlu0 %1186
  %v1189 = vadd.f32 %v1179, %v1187
  %v1190 = vtanh.pop %v1189
  %1192 = vrot.lane.b32.xlu0 %v1190, 32
  %v1193 = vpop.permute.xlu0 %1192
  %v1195 = vmul.f32 %v1177, %v1193
  %v1196 = vxor.u32 %v1171, 2147483648
  %v1197 = vmul.f32 %v1196, 1.442695
  %v1198 = vpow.pop %v1197
  %v1199 = vadd.f32 %v1198, 1.0
  %v1200 = vrcp.pop %v1199
  %v1201 = vmul.f32 1.0, %v1200
  %v1202 = vtanh.pop %v1171
  %v1203 = vmul.f32 %v1201, %v1021
  %1205 = vrot.lane.b32.xlu0 %v1202, 32
  %v1206 = vpop.permute.xlu0 %1205
  %v1208 = vmul.f32 %v1201, %v1206
  %1210 = vrot.lane.b32.xlu0 %v1208, 32
  %v1211 = vpop.permute.xlu0 %1210
  %v1213 = vadd.f32 %v1203, %v1211
  %v1214 = vtanh.pop %v1213
  %1216 = vrot.lane.b32.xlu0 %v1214, 32
  %v1217 = vpop.permute.xlu0 %1216
  %v1219 = vmul.f32 %v1201, %v1217
  %1221 = vrot.lane.b32.xlu0 %v1195, 64
  %v1222 = vpop.permute.xlu0 %1221
  %1224 = vst.msk [vmem:[%s1038] sm:$0xff] %vm102, %v1222
  %1226 = vrot.lane.b32.xlu0 %v1219, 96
  %v1227 = vpop.permute.xlu0 %1226
  %1229 = vst.msk [vmem:[%s1032] sm:$0xff] %vm462, %v1227
  %v1230 = vpack.c.bf16 %v1195, %v1195
  %v1231 = vld [vmem:[%s3] sm:$0xf]
  %v1232 = vld [vmem:[%s3 + $0x4] sm:$0xf]
  %v1233 = vld [vmem:[%s3 + $0x8] sm:$0xf]
  %v1234 = vld [vmem:[%s3 + $0xc] sm:$0xf]
  %1236 = vrot.lane.b32.xlu0 %v1230, 64
  %v1237 = vpop.permute.xlu0 %1236
  %v1242 = vunpack.c.l.b16 %v1231
  %v1243 = vunpack.c.l.b16 %v1232
  %v1244 = vunpack.c.l.b16 %v1233
  %v1245 = vunpack.c.l.b16 %v1234
  %v1246 = vpack.c.b16 %v1243, %v1242
  %v1247 = vpack.c.b16 %v1245, %v1244
  %v1251 = vsel %vm102, %v1237, 0
  %1253 = vmatprep.subr.bf16.mxu0 0
  %1254 = vmatpush1.bf16.msra.mxu0 %v1246
  %1255 = vmatprep.subr.bf16.mxu0 0
  %1256 = vmatpush1.bf16.msra.mxu0 %v1247
  %1257 = vmatprep.subr.bf16.mxu0 0
  %1258 = vmatpush1.bf16.msra.mxu0 0
  %1259 = vmatprep.subr.bf16.mxu0 0
  %1260 = vmatpush1.bf16.msra.mxu0 0
  %1261 = vmatprep.subr.bf16.mxu0 0
  %1262 = vmatpush1.bf16.msra.mxu0 0
  %1263 = vmatprep.subr.bf16.mxu0 0
  %1264 = vmatpush1.bf16.msra.mxu0 0
  %1265 = vmatprep.subr.bf16.mxu0 0
  %1266 = vmatpush1.bf16.msra.mxu0 0
  %1267 = vmatprep.subr.bf16.mxu0 0
  %1268 = vmatpush1.bf16.msra.mxu0 0
  %1269 = vmatprep.subr.bf16.mxu0 0
  %1270 = vmatpush1.bf16.msra.mxu0 0
  %1271 = vmatprep.subr.bf16.mxu0 0
  %1272 = vmatpush1.bf16.msra.mxu0 0
  %1273 = vmatprep.subr.bf16.mxu0 0
  %1274 = vmatpush1.bf16.msra.mxu0 0
  %1275 = vmatprep.subr.bf16.mxu0 0
  %1276 = vmatpush1.bf16.msra.mxu0 0
  %1277 = vmatprep.subr.bf16.mxu0 0
  %1278 = vmatpush1.bf16.msra.mxu0 0
  %1279 = vmatprep.subr.bf16.mxu0 0
  %1280 = vmatpush1.bf16.msra.mxu0 0
  %1281 = vmatprep.subr.bf16.mxu0 0
  %1282 = vmatpush1.bf16.msra.mxu0 0
  %1283 = vmatprep.subr.bf16.mxu0 0
  %1284 = vmatpush1.bf16.msra.mxu0 0
  %1285 = vmatprep.mubr.bf16.mxu0 0
  %1286 = vmatmul.mubr.bf16.gmra.mrb[0].mxu0 %v1251
  %v1287 = vpop.f32.mrb[0].mxu0
  %v1288 = vadd.f32 0.0, %v1287
  %v1289 = vpop.f32.mrb[0].mxu0
  %v1290 = vpop.f32.mrb[0].mxu0
  %v1291 = vpop.f32.mrb[0].mxu0
  %1292 = vdwg.mxu0
  %v1293 = vpack.c.bf16 %v1219, %v1219
  %v1294 = vld [vmem:[%s6] sm:$0xf]
  %v1295 = vld [vmem:[%s6 + $0x4] sm:$0xf]
  %v1296 = vld [vmem:[%s6 + $0x8] sm:$0xf]
  %v1297 = vld [vmem:[%s6 + $0xc] sm:$0xf]
  %1299 = vrot.lane.b32.xlu0 %v1293, 64
  %v1300 = vpop.permute.xlu0 %1299
  %v1305 = vunpack.c.l.b16 %v1294
  %v1306 = vunpack.c.l.b16 %v1295
  %v1307 = vunpack.c.l.b16 %v1296
  %v1308 = vunpack.c.l.b16 %v1297
  %v1309 = vpack.c.b16 %v1306, %v1305
  %v1310 = vpack.c.b16 %v1308, %v1307
  %v1314 = vsel %vm102, %v1300, 0
  %1316 = vmatprep.subr.bf16.mxu0 0
  %1317 = vmatpush1.bf16.msra.mxu0 %v1309
  %1318 = vmatprep.subr.bf16.mxu0 0
  %1319 = vmatpush1.bf16.msra.mxu0 %v1310
  %1320 = vmatprep.subr.bf16.mxu0 0
  %1321 = vmatpush1.bf16.msra.mxu0 0
  %1322 = vmatprep.subr.bf16.mxu0 0
  %1323 = vmatpush1.bf16.msra.mxu0 0
  %1324 = vmatprep.subr.bf16.mxu0 0
  %1325 = vmatpush1.bf16.msra.mxu0 0
  %1326 = vmatprep.subr.bf16.mxu0 0
  %1327 = vmatpush1.bf16.msra.mxu0 0
  %1328 = vmatprep.subr.bf16.mxu0 0
  %1329 = vmatpush1.bf16.msra.mxu0 0
  %1330 = vmatprep.subr.bf16.mxu0 0
  %1331 = vmatpush1.bf16.msra.mxu0 0
  %1332 = vmatprep.subr.bf16.mxu0 0
  %1333 = vmatpush1.bf16.msra.mxu0 0
  %1334 = vmatprep.subr.bf16.mxu0 0
  %1335 = vmatpush1.bf16.msra.mxu0 0
  %1336 = vmatprep.subr.bf16.mxu0 0
  %1337 = vmatpush1.bf16.msra.mxu0 0
  %1338 = vmatprep.subr.bf16.mxu0 0
  %1339 = vmatpush1.bf16.msra.mxu0 0
  %1340 = vmatprep.subr.bf16.mxu0 0
  %1341 = vmatpush1.bf16.msra.mxu0 0
  %1342 = vmatprep.subr.bf16.mxu0 0
  %1343 = vmatpush1.bf16.msra.mxu0 0
  %1344 = vmatprep.subr.bf16.mxu0 0
  %1345 = vmatpush1.bf16.msra.mxu0 0
  %1346 = vmatprep.subr.bf16.mxu0 0
  %1347 = vmatpush1.bf16.msra.mxu0 0
  %1348 = vmatprep.mubr.bf16.mxu0 0
  %1349 = vmatmul.mubr.bf16.gmra.mrb[0].mxu0 %v1314
  %v1350 = vpop.f32.mrb[0].mxu0
  %v1351 = vadd.f32 0.0, %v1350
  %v1352 = vpop.f32.mrb[0].mxu0
  %v1353 = vpop.f32.mrb[0].mxu0
  %v1354 = vpop.f32.mrb[0].mxu0
  %1355 = vdwg.mxu0
  %s1356 = scalar_lea.vmem [#allocation2], 40
  %v1357 = vld [vmem:[%s1356] sm:$0xff]
  %v1358 = vadd.f32 %v1357, %v1288
  %s1359 = scalar_lea.vmem [#allocation3], 16
  %v1360 = vld [vmem:[%s1359] sm:$0xff]
  %v1361 = vadd.f32 %v1360, %v1351
  %v1362 = vxor.u32 %v1358, 2147483648
  %v1363 = vmul.f32 %v1362, 1.442695
  %v1364 = vpow.pop %v1363
  %v1365 = vadd.f32 %v1364, 1.0
  %v1366 = vrcp.pop %v1365
  %v1367 = vmul.f32 1.0, %v1366
  %v1368 = vtanh.pop %v1358
  %v1369 = vmul.f32 %v1367, %v1189
  %1371 = vrot.lane.b32.xlu0 %v1368, 32
  %v1372 = vpop.permute.xlu0 %1371
  %v1374 = vmul.f32 %v1367, %v1372
  %1376 = vrot.lane.b32.xlu0 %v1374, 32
  %v1377 = vpop.permute.xlu0 %1376
  %v1379 = vadd.f32 %v1369, %v1377
  %v1380 = vtanh.pop %v1379
  %1382 = vrot.lane.b32.xlu0 %v1380, 32
  %v1383 = vpop.permute.xlu0 %1382
  %v1385 = vmul.f32 %v1367, %v1383
  %v1386 = vxor.u32 %v1361, 2147483648
  %v1387 = vmul.f32 %v1386, 1.442695
  %v1388 = vpow.pop %v1387
  %v1389 = vadd.f32 %v1388, 1.0
  %v1390 = vrcp.pop %v1389
  %v1391 = vmul.f32 1.0, %v1390
  %v1392 = vtanh.pop %v1361
  %v1393 = vmul.f32 %v1391, %v1213
  %1395 = vrot.lane.b32.xlu0 %v1392, 32
  %v1396 = vpop.permute.xlu0 %1395
  %v1398 = vmul.f32 %v1391, %v1396
  %1400 = vrot.lane.b32.xlu0 %v1398, 32
  %v1401 = vpop.permute.xlu0 %1400
  %v1403 = vadd.f32 %v1393, %v1401
  %v1404 = vtanh.pop %v1403
  %1406 = vrot.lane.b32.xlu0 %v1404, 32
  %v1407 = vpop.permute.xlu0 %1406
  %v1409 = vmul.f32 %v1391, %v1407
  %1411 = vrot.lane.b32.xlu0 %v1385, 64
  %v1412 = vpop.permute.xlu0 %1411
  %1414 = vst.msk [vmem:[%s846] sm:$0xff] %vm102, %v1412
  %1416 = vrot.lane.b32.xlu0 %v1409, 96
  %v1417 = vpop.permute.xlu0 %1416
  %1419 = vst.msk [vmem:[%s840] sm:$0xff] %vm462, %v1417
  %v1420 = vpack.c.bf16 %v1385, %v1385
  %v1421 = vld [vmem:[%s3] sm:$0xf]
  %v1422 = vld [vmem:[%s3 + $0x4] sm:$0xf]
  %v1423 = vld [vmem:[%s3 + $0x8] sm:$0xf]
  %v1424 = vld [vmem:[%s3 + $0xc] sm:$0xf]
  %1426 = vrot.lane.b32.xlu0 %v1420, 64
  %v1427 = vpop.permute.xlu0 %1426
  %v1432 = vunpack.c.l.b16 %v1421
  %v1433 = vunpack.c.l.b16 %v1422
  %v1434 = vunpack.c.l.b16 %v1423
  %v1435 = vunpack.c.l.b16 %v1424
  %v1436 = vpack.c.b16 %v1433, %v1432
  %v1437 = vpack.c.b16 %v1435, %v1434
  %v1441 = vsel %vm102, %v1427, 0
  %1443 = vmatprep.subr.bf16.mxu0 0
  %1444 = vmatpush1.bf16.msra.mxu0 %v1436
  %1445 = vmatprep.subr.bf16.mxu0 0
  %1446 = vmatpush1.bf16.msra.mxu0 %v1437
  %1447 = vmatprep.subr.bf16.mxu0 0
  %1448 = vmatpush1.bf16.msra.mxu0 0
  %1449 = vmatprep.subr.bf16.mxu0 0
  %1450 = vmatpush1.bf16.msra.mxu0 0
  %1451 = vmatprep.subr.bf16.mxu0 0
  %1452 = vmatpush1.bf16.msra.mxu0 0
  %1453 = vmatprep.subr.bf16.mxu0 0
  %1454 = vmatpush1.bf16.msra.mxu0 0
  %1455 = vmatprep.subr.bf16.mxu0 0
  %1456 = vmatpush1.bf16.msra.mxu0 0
  %1457 = vmatprep.subr.bf16.mxu0 0
  %1458 = vmatpush1.bf16.msra.mxu0 0
  %1459 = vmatprep.subr.bf16.mxu0 0
  %1460 = vmatpush1.bf16.msra.mxu0 0
  %1461 = vmatprep.subr.bf16.mxu0 0
  %1462 = vmatpush1.bf16.msra.mxu0 0
  %1463 = vmatprep.subr.bf16.mxu0 0
  %1464 = vmatpush1.bf16.msra.mxu0 0
  %1465 = vmatprep.subr.bf16.mxu0 0
  %1466 = vmatpush1.bf16.msra.mxu0 0
  %1467 = vmatprep.subr.bf16.mxu0 0
  %1468 = vmatpush1.bf16.msra.mxu0 0
  %1469 = vmatprep.subr.bf16.mxu0 0
  %1470 = vmatpush1.bf16.msra.mxu0 0
  %1471 = vmatprep.subr.bf16.mxu0 0
  %1472 = vmatpush1.bf16.msra.mxu0 0
  %1473 = vmatprep.subr.bf16.mxu0 0
  %1474 = vmatpush1.bf16.msra.mxu0 0
  %1475 = vmatprep.mubr.bf16.mxu0 0
  %1476 = vmatmul.mubr.bf16.gmra.mrb[0].mxu0 %v1441
  %v1477 = vpop.f32.mrb[0].mxu0
  %v1478 = vadd.f32 0.0, %v1477
  %v1479 = vpop.f32.mrb[0].mxu0
  %v1480 = vpop.f32.mrb[0].mxu0
  %v1481 = vpop.f32.mrb[0].mxu0
  %1482 = vdwg.mxu0
  %v1483 = vpack.c.bf16 %v1409, %v1409
  %v1484 = vld [vmem:[%s6] sm:$0xf]
  %v1485 = vld [vmem:[%s6 + $0x4] sm:$0xf]
  %v1486 = vld [vmem:[%s6 + $0x8] sm:$0xf]
  %v1487 = vld [vmem:[%s6 + $0xc] sm:$0xf]
  %1489 = vrot.lane.b32.xlu0 %v1483, 64
  %v1490 = vpop.permute.xlu0 %1489
  %v1495 = vunpack.c.l.b16 %v1484
  %v1496 = vunpack.c.l.b16 %v1485
  %v1497 = vunpack.c.l.b16 %v1486
  %v1498 = vunpack.c.l.b16 %v1487
  %v1499 = vpack.c.b16 %v1496, %v1495
  %v1500 = vpack.c.b16 %v1498, %v1497
  %v1504 = vsel %vm102, %v1490, 0
  %1506 = vmatprep.subr.bf16.mxu0 0
  %1507 = vmatpush1.bf16.msra.mxu0 %v1499
  %1508 = vmatprep.subr.bf16.mxu0 0
  %1509 = vmatpush1.bf16.msra.mxu0 %v1500
  %1510 = vmatprep.subr.bf16.mxu0 0
  %1511 = vmatpush1.bf16.msra.mxu0 0
  %1512 = vmatprep.subr.bf16.mxu0 0
  %1513 = vmatpush1.bf16.msra.mxu0 0
  %1514 = vmatprep.subr.bf16.mxu0 0
  %1515 = vmatpush1.bf16.msra.mxu0 0
  %1516 = vmatprep.subr.bf16.mxu0 0
  %1517 = vmatpush1.bf16.msra.mxu0 0
  %1518 = vmatprep.subr.bf16.mxu0 0
  %1519 = vmatpush1.bf16.msra.mxu0 0
  %1520 = vmatprep.subr.bf16.mxu0 0
  %1521 = vmatpush1.bf16.msra.mxu0 0
  %1522 = vmatprep.subr.bf16.mxu0 0
  %1523 = vmatpush1.bf16.msra.mxu0 0
  %1524 = vmatprep.subr.bf16.mxu0 0
  %1525 = vmatpush1.bf16.msra.mxu0 0
  %1526 = vmatprep.subr.bf16.mxu0 0
  %1527 = vmatpush1.bf16.msra.mxu0 0
  %1528 = vmatprep.subr.bf16.mxu0 0
  %1529 = vmatpush1.bf16.msra.mxu0 0
  %1530 = vmatprep.subr.bf16.mxu0 0
  %1531 = vmatpush1.bf16.msra.mxu0 0
  %1532 = vmatprep.subr.bf16.mxu0 0
  %1533 = vmatpush1.bf16.msra.mxu0 0
  %1534 = vmatprep.subr.bf16.mxu0 0
  %1535 = vmatpush1.bf16.msra.mxu0 0
  %1536 = vmatprep.subr.bf16.mxu0 0
  %1537 = vmatpush1.bf16.msra.mxu0 0
  %1538 = vmatprep.mubr.bf16.mxu0 0
  %1539 = vmatmul.mubr.bf16.gmra.mrb[0].mxu0 %v1504
  %v1540 = vpop.f32.mrb[0].mxu0
  %v1541 = vadd.f32 0.0, %v1540
  %v1542 = vpop.f32.mrb[0].mxu0
  %v1543 = vpop.f32.mrb[0].mxu0
  %v1544 = vpop.f32.mrb[0].mxu0
  %1545 = vdwg.mxu0
  %s1546 = scalar_lea.vmem [#allocation2], 48
  %v1547 = vld [vmem:[%s1546] sm:$0xff]
  %v1548 = vadd.f32 %v1547, %v1478
  %s1549 = scalar_lea.vmem [#allocation3], 8
  %v1550 = vld [vmem:[%s1549] sm:$0xff]
  %v1551 = vadd.f32 %v1550, %v1541
  %v1552 = vxor.u32 %v1548, 2147483648
  %v1553 = vmul.f32 %v1552, 1.442695
  %v1554 = vpow.pop %v1553
  %v1555 = vadd.f32 %v1554, 1.0
  %v1556 = vrcp.pop %v1555
  %v1557 = vmul.f32 1.0, %v1556
  %v1558 = vtanh.pop %v1548
  %v1559 = vmul.f32 %v1557, %v1379
  %1561 = vrot.lane.b32.xlu0 %v1558, 32
  %v1562 = vpop.permute.xlu0 %1561
  %v1564 = vmul.f32 %v1557, %v1562
  %1566 = vrot.lane.b32.xlu0 %v1564, 32
  %v1567 = vpop.permute.xlu0 %1566
  %v1569 = vadd.f32 %v1559, %v1567
  %v1570 = vtanh.pop %v1569
  %1572 = vrot.lane.b32.xlu0 %v1570, 32
  %v1573 = vpop.permute.xlu0 %1572
  %v1575 = vmul.f32 %v1557, %v1573
  %v1576 = vxor.u32 %v1551, 2147483648
  %v1577 = vmul.f32 %v1576, 1.442695
  %v1578 = vpow.pop %v1577
  %v1579 = vadd.f32 %v1578, 1.0
  %v1580 = vrcp.pop %v1579
  %v1581 = vmul.f32 1.0, %v1580
  %v1582 = vtanh.pop %v1551
  %v1583 = vmul.f32 %v1581, %v1403
  %1585 = vrot.lane.b32.xlu0 %v1582, 32
  %v1586 = vpop.permute.xlu0 %1585
  %v1588 = vmul.f32 %v1581, %v1586
  %1590 = vrot.lane.b32.xlu0 %v1588, 32
  %v1591 = vpop.permute.xlu0 %1590
  %v1593 = vadd.f32 %v1583, %v1591
  %v1594 = vtanh.pop %v1593
  %1596 = vrot.lane.b32.xlu0 %v1594, 32
  %v1597 = vpop.permute.xlu0 %1596
  %v1599 = vmul.f32 %v1581, %v1597
  %1601 = vrot.lane.b32.xlu0 %v1575, 64
  %v1602 = vpop.permute.xlu0 %1601
  %1604 = vst.msk [vmem:[%s654] sm:$0xff] %vm102, %v1602
  %1606 = vrot.lane.b32.xlu0 %v1599, 96
  %v1607 = vpop.permute.xlu0 %1606
  %1609 = vst.msk [vmem:[%s648] sm:$0xff] %vm462, %v1607
  %v1610 = vpack.c.bf16 %v1575, %v1575
  %v1611 = vld [vmem:[%s3] sm:$0xf]
  %v1612 = vld [vmem:[%s3 + $0x4] sm:$0xf]
  %v1613 = vld [vmem:[%s3 + $0x8] sm:$0xf]
  %v1614 = vld [vmem:[%s3 + $0xc] sm:$0xf]
  %1616 = vrot.lane.b32.xlu0 %v1610, 64
  %v1617 = vpop.permute.xlu0 %1616
  %v1622 = vunpack.c.l.b16 %v1611
  %v1623 = vunpack.c.l.b16 %v1612
  %v1624 = vunpack.c.l.b16 %v1613
  %v1625 = vunpack.c.l.b16 %v1614
  %v1626 = vpack.c.b16 %v1623, %v1622
  %v1627 = vpack.c.b16 %v1625, %v1624
  %v1631 = vsel %vm102, %v1617, 0
  %1633 = vmatprep.subr.bf16.mxu0 0
  %1634 = vmatpush1.bf16.msra.mxu0 %v1626
  %1635 = vmatprep.subr.bf16.mxu0 0
  %1636 = vmatpush1.bf16.msra.mxu0 %v1627
  %1637 = vmatprep.subr.bf16.mxu0 0
  %1638 = vmatpush1.bf16.msra.mxu0 0
  %1639 = vmatprep.subr.bf16.mxu0 0
  %1640 = vmatpush1.bf16.msra.mxu0 0
  %1641 = vmatprep.subr.bf16.mxu0 0
  %1642 = vmatpush1.bf16.msra.mxu0 0
  %1643 = vmatprep.subr.bf16.mxu0 0
  %1644 = vmatpush1.bf16.msra.mxu0 0
  %1645 = vmatprep.subr.bf16.mxu0 0
  %1646 = vmatpush1.bf16.msra.mxu0 0
  %1647 = vmatprep.subr.bf16.mxu0 0
  %1648 = vmatpush1.bf16.msra.mxu0 0
  %1649 = vmatprep.subr.bf16.mxu0 0
  %1650 = vmatpush1.bf16.msra.mxu0 0
  %1651 = vmatprep.subr.bf16.mxu0 0
  %1652 = vmatpush1.bf16.msra.mxu0 0
  %1653 = vmatprep.subr.bf16.mxu0 0
  %1654 = vmatpush1.bf16.msra.mxu0 0
  %1655 = vmatprep.subr.bf16.mxu0 0
  %1656 = vmatpush1.bf16.msra.mxu0 0
  %1657 = vmatprep.subr.bf16.mxu0 0
  %1658 = vmatpush1.bf16.msra.mxu0 0
  %1659 = vmatprep.subr.bf16.mxu0 0
  %1660 = vmatpush1.bf16.msra.mxu0 0
  %1661 = vmatprep.subr.bf16.mxu0 0
  %1662 = vmatpush1.bf16.msra.mxu0 0
  %1663 = vmatprep.subr.bf16.mxu0 0
  %1664 = vmatpush1.bf16.msra.mxu0 0
  %1665 = vmatprep.mubr.bf16.mxu0 0
  %1666 = vmatmul.mubr.bf16.gmra.mrb[0].mxu0 %v1631
  %v1667 = vpop.f32.mrb[0].mxu0
  %v1668 = vadd.f32 0.0, %v1667
  %v1669 = vpop.f32.mrb[0].mxu0
  %v1670 = vpop.f32.mrb[0].mxu0
  %v1671 = vpop.f32.mrb[0].mxu0
  %1672 = vdwg.mxu0
  %v1673 = vpack.c.bf16 %v1599, %v1599
  %v1674 = vld [vmem:[%s6] sm:$0xf]
  %v1675 = vld [vmem:[%s6 + $0x4] sm:$0xf]
  %v1676 = vld [vmem:[%s6 + $0x8] sm:$0xf]
  %v1677 = vld [vmem:[%s6 + $0xc] sm:$0xf]
  %1679 = vrot.lane.b32.xlu0 %v1673, 64
  %v1680 = vpop.permute.xlu0 %1679
  %v1685 = vunpack.c.l.b16 %v1674
  %v1686 = vunpack.c.l.b16 %v1675
  %v1687 = vunpack.c.l.b16 %v1676
  %v1688 = vunpack.c.l.b16 %v1677
  %v1689 = vpack.c.b16 %v1686, %v1685
  %v1690 = vpack.c.b16 %v1688, %v1687
  %v1694 = vsel %vm102, %v1680, 0
  %1696 = vmatprep.subr.bf16.mxu0 0
  %1697 = vmatpush1.bf16.msra.mxu0 %v1689
  %1698 = vmatprep.subr.bf16.mxu0 0
  %1699 = vmatpush1.bf16.msra.mxu0 %v1690
  %1700 = vmatprep.subr.bf16.mxu0 0
  %1701 = vmatpush1.bf16.msra.mxu0 0
  %1702 = vmatprep.subr.bf16.mxu0 0
  %1703 = vmatpush1.bf16.msra.mxu0 0
  %1704 = vmatprep.subr.bf16.mxu0 0
  %1705 = vmatpush1.bf16.msra.mxu0 0
  %1706 = vmatprep.subr.bf16.mxu0 0
  %1707 = vmatpush1.bf16.msra.mxu0 0
  %1708 = vmatprep.subr.bf16.mxu0 0
  %1709 = vmatpush1.bf16.msra.mxu0 0
  %1710 = vmatprep.subr.bf16.mxu0 0
  %1711 = vmatpush1.bf16.msra.mxu0 0
  %1712 = vmatprep.subr.bf16.mxu0 0
  %1713 = vmatpush1.bf16.msra.mxu0 0
  %1714 = vmatprep.subr.bf16.mxu0 0
  %1715 = vmatpush1.bf16.msra.mxu0 0
  %1716 = vmatprep.subr.bf16.mxu0 0
  %1717 = vmatpush1.bf16.msra.mxu0 0
  %1718 = vmatprep.subr.bf16.mxu0 0
  %1719 = vmatpush1.bf16.msra.mxu0 0
  %1720 = vmatprep.subr.bf16.mxu0 0
  %1721 = vmatpush1.bf16.msra.mxu0 0
  %1722 = vmatprep.subr.bf16.mxu0 0
  %1723 = vmatpush1.bf16.msra.mxu0 0
  %1724 = vmatprep.subr.bf16.mxu0 0
  %1725 = vmatpush1.bf16.msra.mxu0 0
  %1726 = vmatprep.subr.bf16.mxu0 0
  %1727 = vmatpush1.bf16.msra.mxu0 0
  %1728 = vmatprep.mubr.bf16.mxu0 0
  %1729 = vmatmul.mubr.bf16.gmra.mrb[0].mxu0 %v1694
  %v1730 = vpop.f32.mrb[0].mxu0
  %v1731 = vadd.f32 0.0, %v1730
  %v1732 = vpop.f32.mrb[0].mxu0
  %v1733 = vpop.f32.mrb[0].mxu0
  %v1734 = vpop.f32.mrb[0].mxu0
  %1735 = vdwg.mxu0
  %s1736 = scalar_lea.vmem [#allocation2], 56
  %v1737 = vld [vmem:[%s1736] sm:$0xff]
  %v1738 = vadd.f32 %v1737, %v1668
  %v1739 = vld [vmem:[#allocation3] sm:$0xff]
  %v1740 = vadd.f32 %v1739, %v1731
  %v1741 = vxor.u32 %v1738, 2147483648
  %v1742 = vmul.f32 %v1741, 1.442695
  %v1743 = vpow.pop %v1742
  %v1744 = vadd.f32 %v1743, 1.0
  %v1745 = vrcp.pop %v1744
  %v1746 = vmul.f32 1.0, %v1745
  %v1747 = vtanh.pop %v1738
  %v1748 = vmul.f32 %v1746, %v1569
  %1750 = vrot.lane.b32.xlu0 %v1747, 32
  %v1751 = vpop.permute.xlu0 %1750
  %v1753 = vmul.f32 %v1746, %v1751
  %1755 = vrot.lane.b32.xlu0 %v1753, 32
  %v1756 = vpop.permute.xlu0 %1755
  %v1758 = vadd.f32 %v1748, %v1756
  %v1759 = vtanh.pop %v1758
  %1761 = vrot.lane.b32.xlu0 %v1759, 32
  %v1762 = vpop.permute.xlu0 %1761
  %v1764 = vmul.f32 %v1746, %v1762
  %v1765 = vxor.u32 %v1740, 2147483648
  %v1766 = vmul.f32 %v1765, 1.442695
  %v1767 = vpow.pop %v1766
  %v1768 = vadd.f32 %v1767, 1.0
  %v1769 = vrcp.pop %v1768
  %v1770 = vmul.f32 1.0, %v1769
  %v1771 = vtanh.pop %v1740
  %v1772 = vmul.f32 %v1770, %v1593
  %1774 = vrot.lane.b32.xlu0 %v1771, 32
  %v1775 = vpop.permute.xlu0 %1774
  %v1777 = vmul.f32 %v1770, %v1775
  %1779 = vrot.lane.b32.xlu0 %v1777, 32
  %v1780 = vpop.permute.xlu0 %1779
  %v1782 = vadd.f32 %v1772, %v1780
  %v1783 = vtanh.pop %v1782
  %1785 = vrot.lane.b32.xlu0 %v1783, 32
  %v1786 = vpop.permute.xlu0 %1785
  %v1788 = vmul.f32 %v1770, %v1786
  %1790 = vrot.lane.b32.xlu0 %v1764, 64
  %v1791 = vpop.permute.xlu0 %1790
  %1793 = vst.msk [vmem:[%s461] sm:$0xff] %vm102, %v1791
  %1795 = vrot.lane.b32.xlu0 %v1788, 96
  %v1796 = vpop.permute.xlu0 %1795
  %1798 = vst.msk [vmem:[#allocation4] sm:$0xff] %vm462, %v1796
  %v1799 = vld [vmem:[#allocation4] sm:$0xff]
  %v1800 = vld [vmem:[#allocation4 + $0x8] sm:$0xff]
  %v1801 = vld [vmem:[#allocation4 + $0x10] sm:$0xff]
  %v1802 = vld [vmem:[#allocation4 + $0x18] sm:$0xff]
  %v1803 = vld [vmem:[#allocation4 + $0x20] sm:$0xff]
  %v1804 = vld [vmem:[#allocation4 + $0x28] sm:$0xff]
  %v1805 = vld [vmem:[#allocation4 + $0x30] sm:$0xff]
  %v1806 = vld [vmem:[#allocation4 + $0x38] sm:$0xff]
  %v1807 = vpack.c.bf16 %v1800, %v1799
  %v1808 = vpack.c.bf16 %v1802, %v1801
  %v1809 = vpack.c.bf16 %v1804, %v1803
  %v1810 = vpack.c.bf16 %v1806, %v1805
  %v1811 = vld [vmem:[%s7] sm:$0xf]
  %v1812 = vld [vmem:[%s7 + $0x4] sm:$0xf]
  %v1813 = vld [vmem:[%s7 + $0x8] sm:$0xf]
  %v1814 = vld [vmem:[%s7 + $0xc] sm:$0xf]
  %v1815 = vld [vmem:[%s7 + $0x10] sm:$0xf]
  %v1816 = vld [vmem:[%s7 + $0x14] sm:$0xf]
  %v1817 = vld [vmem:[%s7 + $0x18] sm:$0xf]
  %v1818 = vld [vmem:[%s7 + $0x1c] sm:$0xf]
  %v1819 = vld [vmem:[%s8] sm:$0x1]
  %v1821 = vlaneseq
  %v1822 = vshrl.u32 %v1821, 7
  %v1823 = vsub.s32 0, %v1822
  %v1824 = vrot.slane %v1819, %v1823
  %v1834 = vunpack.c.l.b16 %v1811
  %v1835 = vunpack.c.l.b16 %v1812
  %v1836 = vunpack.c.l.b16 %v1813
  %v1837 = vunpack.c.l.b16 %v1814
  %v1838 = vunpack.c.l.b16 %v1815
  %v1839 = vunpack.c.l.b16 %v1816
  %v1840 = vunpack.c.l.b16 %v1817
  %v1841 = vunpack.c.l.b16 %v1818
  %v1842 = vpack.c.b16 %v1835, %v1834
  %v1843 = vpack.c.b16 %v1837, %v1836
  %v1844 = vpack.c.b16 %v1839, %v1838
  %v1845 = vpack.c.b16 %v1841, %v1840
  %vm1850 = vcmask 523264
  %v1852 = vsel %vm1850, %v1807, 0
  %v1855 = vsel %vm1850, %v1808, 0
  %v1858 = vsel %vm1850, %v1809, 0
  %v1861 = vsel %vm1850, %v1810, 0
  %1863 = vmatprep.subr.bf16.mxu0 0
  %1864 = vmatpush1.bf16.msra.mxu0 %v1842
  %1865 = vmatprep.subr.bf16.mxu0 0
  %1866 = vmatpush1.bf16.msra.mxu0 %v1843
  %1867 = vmatprep.subr.bf16.mxu0 0
  %1868 = vmatpush1.bf16.msra.mxu0 %v1844
  %1869 = vmatprep.subr.bf16.mxu0 0
  %1870 = vmatpush1.bf16.msra.mxu0 %v1845
  %1871 = vmatprep.subr.bf16.mxu0 0
  %1872 = vmatpush1.bf16.msra.mxu0 0
  %1873 = vmatprep.subr.bf16.mxu0 0
  %1874 = vmatpush1.bf16.msra.mxu0 0
  %1875 = vmatprep.subr.bf16.mxu0 0
  %1876 = vmatpush1.bf16.msra.mxu0 0
  %1877 = vmatprep.subr.bf16.mxu0 0
  %1878 = vmatpush1.bf16.msra.mxu0 0
  %1879 = vmatprep.subr.bf16.mxu0 0
  %1880 = vmatpush1.bf16.msra.mxu0 0
  %1881 = vmatprep.subr.bf16.mxu0 0
  %1882 = vmatpush1.bf16.msra.mxu0 0
  %1883 = vmatprep.subr.bf16.mxu0 0
  %1884 = vmatpush1.bf16.msra.mxu0 0
  %1885 = vmatprep.subr.bf16.mxu0 0
  %1886 = vmatpush1.bf16.msra.mxu0 0
  %1887 = vmatprep.subr.bf16.mxu0 0
  %1888 = vmatpush1.bf16.msra.mxu0 0
  %1889 = vmatprep.subr.bf16.mxu0 0
  %1890 = vmatpush1.bf16.msra.mxu0 0
  %1891 = vmatprep.subr.bf16.mxu0 0
  %1892 = vmatpush1.bf16.msra.mxu0 0
  %1893 = vmatprep.subr.bf16.mxu0 0
  %1894 = vmatpush1.bf16.msra.mxu0 0
  %1895 = vmatprep.mubr.bf16.mxu0 0
  %1896 = vmatmul.mubr.bf16.gmra.mrb[0].mxu0 %v1852
  %v1897 = vpop.f32.mrb[0].mxu0
  %v1898 = vadd.f32 %v1824, %v1897
  %v1899 = vpop.f32.mrb[0].mxu0
  %v1900 = vpop.f32.mrb[0].mxu0
  %v1901 = vadd.f32 %v1824, %v1900
  %v1902 = vpop.f32.mrb[0].mxu0
  %1903 = vmatprep.mubr.bf16.mxu0 0
  %1904 = vmatmul.mubr.bf16.gmra.mrb[0].mxu0 %v1855
  %v1905 = vpop.f32.mrb[0].mxu0
  %v1906 = vadd.f32 %v1824, %v1905
  %v1907 = vpop.f32.mrb[0].mxu0
  %v1908 = vpop.f32.mrb[0].mxu0
  %v1909 = vadd.f32 %v1824, %v1908
  %v1910 = vpop.f32.mrb[0].mxu0
  %1911 = vmatprep.mubr.bf16.mxu0 0
  %1912 = vmatmul.mubr.bf16.gmra.mrb[0].mxu0 %v1858
  %v1913 = vpop.f32.mrb[0].mxu0
  %v1914 = vadd.f32 %v1824, %v1913
  %v1915 = vpop.f32.mrb[0].mxu0
  %v1916 = vpop.f32.mrb[0].mxu0
  %v1917 = vadd.f32 %v1824, %v1916
  %v1918 = vpop.f32.mrb[0].mxu0
  %1919 = vmatprep.mubr.bf16.mxu0 0
  %1920 = vmatmul.mubr.bf16.gmra.mrb[0].mxu0 %v1861
  %v1921 = vpop.f32.mrb[0].mxu0
  %v1922 = vadd.f32 %v1824, %v1921
  %v1923 = vpop.f32.mrb[0].mxu0
  %v1924 = vpop.f32.mrb[0].mxu0
  %v1925 = vadd.f32 %v1824, %v1924
  %v1926 = vpop.f32.mrb[0].mxu0
  %1927 = vdwg.mxu0
  %1928 = vst [vmem:[#allocation2] sm:$0xff] %v1898
  %1929 = vst [vmem:[#allocation2 + $0x8] sm:$0xff] %v1901
  %1930 = vst [vmem:[#allocation2 + $0x10] sm:$0xff] %v1906
  %1931 = vst [vmem:[#allocation2 + $0x18] sm:$0xff] %v1909
  %1932 = vst [vmem:[#allocation2 + $0x20] sm:$0xff] %v1914
  %1933 = vst [vmem:[#allocation2 + $0x28] sm:$0xff] %v1917
  %1934 = vst [vmem:[#allocation2 + $0x30] sm:$0xff] %v1922
  %1935 = vst [vmem:[#allocation2 + $0x38] sm:$0xff] %v1925
  %v1936 = vld [vmem:[%s9] sm:$0xf]
  %v1937 = vld [vmem:[%s9 + $0x4] sm:$0xf]
  %v1938 = vld [vmem:[%s9 + $0x8] sm:$0xf]
  %v1939 = vld [vmem:[%s9 + $0xc] sm:$0xf]
  %v1944 = vunpack.c.l.b16 %v1936
  %v1945 = vunpack.c.l.b16 %v1937
  %v1946 = vunpack.c.l.b16 %v1938
  %v1947 = vunpack.c.l.b16 %v1939
  %v1948 = vpack.c.b16 %v1945, %v1944
  %v1949 = vpack.c.b16 %v1947, %v1946
  %1952 = vmatprep.subr.bf16.mxu0 0
  %1953 = vmatpush1.bf16.msra.mxu0 %v1948
  %1954 = vmatprep.subr.bf16.mxu0 0
  %1955 = vmatpush1.bf16.msra.mxu0 %v1949
  %1956 = vmatprep.subr.bf16.mxu0 0
  %1957 = vmatpush1.bf16.msra.mxu0 0
  %1958 = vmatprep.subr.bf16.mxu0 0
  %1959 = vmatpush1.bf16.msra.mxu0 0
  %1960 = vmatprep.subr.bf16.mxu0 0
  %1961 = vmatpush1.bf16.msra.mxu0 0
  %1962 = vmatprep.subr.bf16.mxu0 0
  %1963 = vmatpush1.bf16.msra.mxu0 0
  %1964 = vmatprep.subr.bf16.mxu0 0
  %1965 = vmatpush1.bf16.msra.mxu0 0
  %1966 = vmatprep.subr.bf16.mxu0 0
  %1967 = vmatpush1.bf16.msra.mxu0 0
  %1968 = vmatprep.subr.bf16.mxu0 0
  %1969 = vmatpush1.bf16.msra.mxu0 0
  %1970 = vmatprep.subr.bf16.mxu0 0
  %1971 = vmatpush1.bf16.msra.mxu0 0
  %1972 = vmatprep.subr.bf16.mxu0 0
  %1973 = vmatpush1.bf16.msra.mxu0 0
  %1974 = vmatprep.subr.bf16.mxu0 0
  %1975 = vmatpush1.bf16.msra.mxu0 0
  %1976 = vmatprep.subr.bf16.mxu0 0
  %1977 = vmatpush1.bf16.msra.mxu0 0
  %1978 = vmatprep.subr.bf16.mxu0 0
  %1979 = vmatpush1.bf16.msra.mxu0 0
  %1980 = vmatprep.subr.bf16.mxu0 0
  %1981 = vmatpush1.bf16.msra.mxu0 0
  %1982 = vmatprep.subr.bf16.mxu0 0
  %1983 = vmatpush1.bf16.msra.mxu0 0
  %1984 = vmatprep.mubr.bf16.mxu0 0
  %1985 = vmatmul.mubr.bf16.gmra.mrb[0].mxu0 %v301
  %v1986 = vpop.f32.mrb[0].mxu0
  %v1987 = vadd.f32 0.0, %v1986
  %v1988 = vpop.f32.mrb[0].mxu0
  %v1989 = vpop.f32.mrb[0].mxu0
  %v1990 = vpop.f32.mrb[0].mxu0
  %1991 = vdwg.mxu0
  %v1992 = vld [vmem:[#allocation2] sm:$0xff]
  %v1993 = vadd.f32 %v1992, %v1987
  %v1994 = vxor.u32 %v1993, 2147483648
  %v1995 = vmul.f32 %v1994, 1.442695
  %v1996 = vpow.pop %v1995
  %v1997 = vadd.f32 %v1996, 1.0
  %v1998 = vrcp.pop %v1997
  %v1999 = vmul.f32 1.0, %v1998
  %v2000 = vtanh.pop %v1993
  %v2001 = vmul.f32 %v1999, 0.0
  %2003 = vrot.lane.b32.xlu0 %v2000, 32
  %v2004 = vpop.permute.xlu0 %2003
  %v2006 = vmul.f32 %v1999, %v2004
  %2008 = vrot.lane.b32.xlu0 %v2006, 32
  %v2009 = vpop.permute.xlu0 %2008
  %v2011 = vadd.f32 %v2001, %v2009
  %v2012 = vtanh.pop %v2011
  %2014 = vrot.lane.b32.xlu0 %v2012, 32
  %v2015 = vpop.permute.xlu0 %2014
  %v2017 = vmul.f32 %v1999, %v2015
  %v2018 = vpack.c.bf16 %v2017, %v2017
  %2020 = vrot.lane.b32.xlu0 %v2018, 64
  %v2021 = vpop.permute.xlu0 %2020
  %v2023 = vsel %vm102, %v2021, 0
  %2025 = vmatprep.subr.bf16.mxu0 0
  %2026 = vmatpush1.bf16.msra.mxu0 %v1948
  %2027 = vmatprep.subr.bf16.mxu0 0
  %2028 = vmatpush1.bf16.msra.mxu0 %v1949
  %2029 = vmatprep.subr.bf16.mxu0 0
  %2030 = vmatpush1.bf16.msra.mxu0 0
  %2031 = vmatprep.subr.bf16.mxu0 0
  %2032 = vmatpush1.bf16.msra.mxu0 0
  %2033 = vmatprep.subr.bf16.mxu0 0
  %2034 = vmatpush1.bf16.msra.mxu0 0
  %2035 = vmatprep.subr.bf16.mxu0 0
  %2036 = vmatpush1.bf16.msra.mxu0 0
  %2037 = vmatprep.subr.bf16.mxu0 0
  %2038 = vmatpush1.bf16.msra.mxu0 0
  %2039 = vmatprep.subr.bf16.mxu0 0
  %2040 = vmatpush1.bf16.msra.mxu0 0
  %2041 = vmatprep.subr.bf16.mxu0 0
  %2042 = vmatpush1.bf16.msra.mxu0 0
  %2043 = vmatprep.subr.bf16.mxu0 0
  %2044 = vmatpush1.bf16.msra.mxu0 0
  %2045 = vmatprep.subr.bf16.mxu0 0
  %2046 = vmatpush1.bf16.msra.mxu0 0
  %2047 = vmatprep.subr.bf16.mxu0 0
  %2048 = vmatpush1.bf16.msra.mxu0 0
  %2049 = vmatprep.subr.bf16.mxu0 0
  %2050 = vmatpush1.bf16.msra.mxu0 0
  %2051 = vmatprep.subr.bf16.mxu0 0
  %2052 = vmatpush1.bf16.msra.mxu0 0
  %2053 = vmatprep.subr.bf16.mxu0 0
  %2054 = vmatpush1.bf16.msra.mxu0 0
  %2055 = vmatprep.subr.bf16.mxu0 0
  %2056 = vmatpush1.bf16.msra.mxu0 0
  %2057 = vmatprep.mubr.bf16.mxu0 0
  %2058 = vmatmul.mubr.bf16.gmra.mrb[0].mxu0 %v2023
  %v2059 = vpop.f32.mrb[0].mxu0
  %v2060 = vadd.f32 0.0, %v2059
  %v2061 = vpop.f32.mrb[0].mxu0
  %v2062 = vpop.f32.mrb[0].mxu0
  %v2063 = vpop.f32.mrb[0].mxu0
  %2064 = vdwg.mxu0
  %v2065 = vld [vmem:[%s590] sm:$0xff]
  %v2066 = vadd.f32 %v2065, %v2060
  %v2067 = vxor.u32 %v2066, 2147483648
  %v2068 = vmul.f32 %v2067, 1.442695
  %v2069 = vpow.pop %v2068
  %v2070 = vadd.f32 %v2069, 1.0
  %v2071 = vrcp.pop %v2070
  %v2072 = vmul.f32 1.0, %v2071
  %v2073 = vtanh.pop %v2066
  %v2074 = vmul.f32 %v2072, %v2011
  %2076 = vrot.lane.b32.xlu0 %v2073, 32
  %v2077 = vpop.permute.xlu0 %2076
  %v2079 = vmul.f32 %v2072, %v2077
  %2081 = vrot.lane.b32.xlu0 %v2079, 32
  %v2082 = vpop.permute.xlu0 %2081
  %v2084 = vadd.f32 %v2074, %v2082
  %v2085 = vtanh.pop %v2084
  %2087 = vrot.lane.b32.xlu0 %v2085, 32
  %v2088 = vpop.permute.xlu0 %2087
  %v2090 = vmul.f32 %v2072, %v2088
  %v2091 = vpack.c.bf16 %v2090, %v2090
  %2093 = vrot.lane.b32.xlu0 %v2091, 64
  %v2094 = vpop.permute.xlu0 %2093
  %v2096 = vsel %vm102, %v2094, 0
  %2098 = vmatprep.subr.bf16.mxu0 0
  %2099 = vmatpush1.bf16.msra.mxu0 %v1948
  %2100 = vmatprep.subr.bf16.mxu0 0
  %2101 = vmatpush1.bf16.msra.mxu0 %v1949
  %2102 = vmatprep.subr.bf16.mxu0 0
  %2103 = vmatpush1.bf16.msra.mxu0 0
  %2104 = vmatprep.subr.bf16.mxu0 0
  %2105 = vmatpush1.bf16.msra.mxu0 0
  %2106 = vmatprep.subr.bf16.mxu0 0
  %2107 = vmatpush1.bf16.msra.mxu0 0
  %2108 = vmatprep.subr.bf16.mxu0 0
  %2109 = vmatpush1.bf16.msra.mxu0 0
  %2110 = vmatprep.subr.bf16.mxu0 0
  %2111 = vmatpush1.bf16.msra.mxu0 0
  %2112 = vmatprep.subr.bf16.mxu0 0
  %2113 = vmatpush1.bf16.msra.mxu0 0
  %2114 = vmatprep.subr.bf16.mxu0 0
  %2115 = vmatpush1.bf16.msra.mxu0 0
  %2116 = vmatprep.subr.bf16.mxu0 0
  %2117 = vmatpush1.bf16.msra.mxu0 0
  %2118 = vmatprep.subr.bf16.mxu0 0
  %2119 = vmatpush1.bf16.msra.mxu0 0
  %2120 = vmatprep.subr.bf16.mxu0 0
  %2121 = vmatpush1.bf16.msra.mxu0 0
  %2122 = vmatprep.subr.bf16.mxu0 0
  %2123 = vmatpush1.bf16.msra.mxu0 0
  %2124 = vmatprep.subr.bf16.mxu0 0
  %2125 = vmatpush1.bf16.msra.mxu0 0
  %2126 = vmatprep.subr.bf16.mxu0 0
  %2127 = vmatpush1.bf16.msra.mxu0 0
  %2128 = vmatprep.subr.bf16.mxu0 0
  %2129 = vmatpush1.bf16.msra.mxu0 0
  %2130 = vmatprep.mubr.bf16.mxu0 0
  %2131 = vmatmul.mubr.bf16.gmra.mrb[0].mxu0 %v2096
  %v2132 = vpop.f32.mrb[0].mxu0
  %v2133 = vadd.f32 0.0, %v2132
  %v2134 = vpop.f32.mrb[0].mxu0
  %v2135 = vpop.f32.mrb[0].mxu0
  %v2136 = vpop.f32.mrb[0].mxu0
  %2137 = vdwg.mxu0
  %v2138 = vld [vmem:[%s782] sm:$0xff]
  %v2139 = vadd.f32 %v2138, %v2133
  %v2140 = vxor.u32 %v2139, 2147483648
  %v2141 = vmul.f32 %v2140, 1.442695
  %v2142 = vpow.pop %v2141
  %v2143 = vadd.f32 %v2142, 1.0
  %v2144 = vrcp.pop %v2143
  %v2145 = vmul.f32 1.0, %v2144
  %v2146 = vtanh.pop %v2139
  %v2147 = vmul.f32 %v2145, %v2084
  %2149 = vrot.lane.b32.xlu0 %v2146, 32
  %v2150 = vpop.permute.xlu0 %2149
  %v2152 = vmul.f32 %v2145, %v2150
  %2154 = vrot.lane.b32.xlu0 %v2152, 32
  %v2155 = vpop.permute.xlu0 %2154
  %v2157 = vadd.f32 %v2147, %v2155
  %v2158 = vtanh.pop %v2157
  %2160 = vrot.lane.b32.xlu0 %v2158, 32
  %v2161 = vpop.permute.xlu0 %2160
  %v2163 = vmul.f32 %v2145, %v2161
  %v2164 = vpack.c.bf16 %v2163, %v2163
  %2166 = vrot.lane.b32.xlu0 %v2164, 64
  %v2167 = vpop.permute.xlu0 %2166
  %v2169 = vsel %vm102, %v2167, 0
  %2171 = vmatprep.subr.bf16.mxu0 0
  %2172 = vmatpush1.bf16.msra.mxu0 %v1948
  %2173 = vmatprep.subr.bf16.mxu0 0
  %2174 = vmatpush1.bf16.msra.mxu0 %v1949
  %2175 = vmatprep.subr.bf16.mxu0 0
  %2176 = vmatpush1.bf16.msra.mxu0 0
  %2177 = vmatprep.subr.bf16.mxu0 0
  %2178 = vmatpush1.bf16.msra.mxu0 0
  %2179 = vmatprep.subr.bf16.mxu0 0
  %2180 = vmatpush1.bf16.msra.mxu0 0
  %2181 = vmatprep.subr.bf16.mxu0 0
  %2182 = vmatpush1.bf16.msra.mxu0 0
  %2183 = vmatprep.subr.bf16.mxu0 0
  %2184 = vmatpush1.bf16.msra.mxu0 0
  %2185 = vmatprep.subr.bf16.mxu0 0
  %2186 = vmatpush1.bf16.msra.mxu0 0
  %2187 = vmatprep.subr.bf16.mxu0 0
  %2188 = vmatpush1.bf16.msra.mxu0 0
  %2189 = vmatprep.subr.bf16.mxu0 0
  %2190 = vmatpush1.bf16.msra.mxu0 0
  %2191 = vmatprep.subr.bf16.mxu0 0
  %2192 = vmatpush1.bf16.msra.mxu0 0
  %2193 = vmatprep.subr.bf16.mxu0 0
  %2194 = vmatpush1.bf16.msra.mxu0 0
  %2195 = vmatprep.subr.bf16.mxu0 0
  %2196 = vmatpush1.bf16.msra.mxu0 0
  %2197 = vmatprep.subr.bf16.mxu0 0
  %2198 = vmatpush1.bf16.msra.mxu0 0
  %2199 = vmatprep.subr.bf16.mxu0 0
  %2200 = vmatpush1.bf16.msra.mxu0 0
  %2201 = vmatprep.subr.bf16.mxu0 0
  %2202 = vmatpush1.bf16.msra.mxu0 0
  %2203 = vmatprep.mubr.bf16.mxu0 0
  %2204 = vmatmul.mubr.bf16.gmra.mrb[0].mxu0 %v2169
  %v2205 = vpop.f32.mrb[0].mxu0
  %v2206 = vadd.f32 0.0, %v2205
  %v2207 = vpop.f32.mrb[0].mxu0
  %v2208 = vpop.f32.mrb[0].mxu0
  %v2209 = vpop.f32.mrb[0].mxu0
  %2210 = vdwg.mxu0
  %v2211 = vld [vmem:[%s974] sm:$0xff]
  %v2212 = vadd.f32 %v2211, %v2206
  %v2213 = vxor.u32 %v2212, 2147483648
  %v2214 = vmul.f32 %v2213, 1.442695
  %v2215 = vpow.pop %v2214
  %v2216 = vadd.f32 %v2215, 1.0
  %v2217 = vrcp.pop %v2216
  %v2218 = vmul.f32 1.0, %v2217
  %v2219 = vtanh.pop %v2212
  %v2220 = vmul.f32 %v2218, %v2157
  %2222 = vrot.lane.b32.xlu0 %v2219, 32
  %v2223 = vpop.permute.xlu0 %2222
  %v2225 = vmul.f32 %v2218, %v2223
  %2227 = vrot.lane.b32.xlu0 %v2225, 32
  %v2228 = vpop.permute.xlu0 %2227
  %v2230 = vadd.f32 %v2220, %v2228
  %v2231 = vtanh.pop %v2230
  %2233 = vrot.lane.b32.xlu0 %v2231, 32
  %v2234 = vpop.permute.xlu0 %2233
  %v2236 = vmul.f32 %v2218, %v2234
  %v2237 = vpack.c.bf16 %v2236, %v2236
  %2239 = vrot.lane.b32.xlu0 %v2237, 64
  %v2240 = vpop.permute.xlu0 %2239
  %v2242 = vsel %vm102, %v2240, 0
  %2244 = vmatprep.subr.bf16.mxu0 0
  %2245 = vmatpush1.bf16.msra.mxu0 %v1948
  %2246 = vmatprep.subr.bf16.mxu0 0
  %2247 = vmatpush1.bf16.msra.mxu0 %v1949
  %2248 = vmatprep.subr.bf16.mxu0 0
  %2249 = vmatpush1.bf16.msra.mxu0 0
  %2250 = vmatprep.subr.bf16.mxu0 0
  %2251 = vmatpush1.bf16.msra.mxu0 0
  %2252 = vmatprep.subr.bf16.mxu0 0
  %2253 = vmatpush1.bf16.msra.mxu0 0
  %2254 = vmatprep.subr.bf16.mxu0 0
  %2255 = vmatpush1.bf16.msra.mxu0 0
  %2256 = vmatprep.subr.bf16.mxu0 0
  %2257 = vmatpush1.bf16.msra.mxu0 0
  %2258 = vmatprep.subr.bf16.mxu0 0
  %2259 = vmatpush1.bf16.msra.mxu0 0
  %2260 = vmatprep.subr.bf16.mxu0 0
  %2261 = vmatpush1.bf16.msra.mxu0 0
  %2262 = vmatprep.subr.bf16.mxu0 0
  %2263 = vmatpush1.bf16.msra.mxu0 0
  %2264 = vmatprep.subr.bf16.mxu0 0
  %2265 = vmatpush1.bf16.msra.mxu0 0
  %2266 = vmatprep.subr.bf16.mxu0 0
  %2267 = vmatpush1.bf16.msra.mxu0 0
  %2268 = vmatprep.subr.bf16.mxu0 0
  %2269 = vmatpush1.bf16.msra.mxu0 0
  %2270 = vmatprep.subr.bf16.mxu0 0
  %2271 = vmatpush1.bf16.msra.mxu0 0
  %2272 = vmatprep.subr.bf16.mxu0 0
  %2273 = vmatpush1.bf16.msra.mxu0 0
  %2274 = vmatprep.subr.bf16.mxu0 0
  %2275 = vmatpush1.bf16.msra.mxu0 0
  %2276 = vmatprep.mubr.bf16.mxu0 0
  %2277 = vmatmul.mubr.bf16.gmra.mrb[0].mxu0 %v2242
  %v2278 = vpop.f32.mrb[0].mxu0
  %v2279 = vadd.f32 0.0, %v2278
  %v2280 = vpop.f32.mrb[0].mxu0
  %v2281 = vpop.f32.mrb[0].mxu0
  %v2282 = vpop.f32.mrb[0].mxu0
  %2283 = vdwg.mxu0
  %v2284 = vld [vmem:[%s1166] sm:$0xff]
  %v2285 = vadd.f32 %v2284, %v2279
  %v2286 = vxor.u32 %v2285, 2147483648
  %v2287 = vmul.f32 %v2286, 1.442695
  %v2288 = vpow.pop %v2287
  %v2289 = vadd.f32 %v2288, 1.0
  %v2290 = vrcp.pop %v2289
  %v2291 = vmul.f32 1.0, %v2290
  %v2292 = vtanh.pop %v2285
  %v2293 = vmul.f32 %v2291, %v2230
  %2295 = vrot.lane.b32.xlu0 %v2292, 32
  %v2296 = vpop.permute.xlu0 %2295
  %v2298 = vmul.f32 %v2291, %v2296
  %2300 = vrot.lane.b32.xlu0 %v2298, 32
  %v2301 = vpop.permute.xlu0 %2300
  %v2303 = vadd.f32 %v2293, %v2301
  %v2304 = vtanh.pop %v2303
  %2306 = vrot.lane.b32.xlu0 %v2304, 32
  %v2307 = vpop.permute.xlu0 %2306
  %v2309 = vmul.f32 %v2291, %v2307
  %v2310 = vpack.c.bf16 %v2309, %v2309
  %2312 = vrot.lane.b32.xlu0 %v2310, 64
  %v2313 = vpop.permute.xlu0 %2312
  %v2315 = vsel %vm102, %v2313, 0
  %2317 = vmatprep.subr.bf16.mxu0 0
  %2318 = vmatpush1.bf16.msra.mxu0 %v1948
  %2319 = vmatprep.subr.bf16.mxu0 0
  %2320 = vmatpush1.bf16.msra.mxu0 %v1949
  %2321 = vmatprep.subr.bf16.mxu0 0
  %2322 = vmatpush1.bf16.msra.mxu0 0
  %2323 = vmatprep.subr.bf16.mxu0 0
  %2324 = vmatpush1.bf16.msra.mxu0 0
  %2325 = vmatprep.subr.bf16.mxu0 0
  %2326 = vmatpush1.bf16.msra.mxu0 0
  %2327 = vmatprep.subr.bf16.mxu0 0
  %2328 = vmatpush1.bf16.msra.mxu0 0
  %2329 = vmatprep.subr.bf16.mxu0 0
  %2330 = vmatpush1.bf16.msra.mxu0 0
  %2331 = vmatprep.subr.bf16.mxu0 0
  %2332 = vmatpush1.bf16.msra.mxu0 0
  %2333 = vmatprep.subr.bf16.mxu0 0
  %2334 = vmatpush1.bf16.msra.mxu0 0
  %2335 = vmatprep.subr.bf16.mxu0 0
  %2336 = vmatpush1.bf16.msra.mxu0 0
  %2337 = vmatprep.subr.bf16.mxu0 0
  %2338 = vmatpush1.bf16.msra.mxu0 0
  %2339 = vmatprep.subr.bf16.mxu0 0
  %2340 = vmatpush1.bf16.msra.mxu0 0
  %2341 = vmatprep.subr.bf16.mxu0 0
  %2342 = vmatpush1.bf16.msra.mxu0 0
  %2343 = vmatprep.subr.bf16.mxu0 0
  %2344 = vmatpush1.bf16.msra.mxu0 0
  %2345 = vmatprep.subr.bf16.mxu0 0
  %2346 = vmatpush1.bf16.msra.mxu0 0
  %2347 = vmatprep.subr.bf16.mxu0 0
  %2348 = vmatpush1.bf16.msra.mxu0 0
  %2349 = vmatprep.mubr.bf16.mxu0 0
  %2350 = vmatmul.mubr.bf16.gmra.mrb[0].mxu0 %v2315
  %v2351 = vpop.f32.mrb[0].mxu0
  %v2352 = vadd.f32 0.0, %v2351
  %v2353 = vpop.f32.mrb[0].mxu0
  %v2354 = vpop.f32.mrb[0].mxu0
  %v2355 = vpop.f32.mrb[0].mxu0
  %2356 = vdwg.mxu0
  %v2357 = vld [vmem:[%s1356] sm:$0xff]
  %v2358 = vadd.f32 %v2357, %v2352
  %v2359 = vxor.u32 %v2358, 2147483648
  %v2360 = vmul.f32 %v2359, 1.442695
  %v2361 = vpow.pop %v2360
  %v2362 = vadd.f32 %v2361, 1.0
  %v2363 = vrcp.pop %v2362
  %v2364 = vmul.f32 1.0, %v2363
  %v2365 = vtanh.pop %v2358
  %v2366 = vmul.f32 %v2364, %v2303
  %2368 = vrot.lane.b32.xlu0 %v2365, 32
  %v2369 = vpop.permute.xlu0 %2368
  %v2371 = vmul.f32 %v2364, %v2369
  %2373 = vrot.lane.b32.xlu0 %v2371, 32
  %v2374 = vpop.permute.xlu0 %2373
  %v2376 = vadd.f32 %v2366, %v2374
  %v2377 = vtanh.pop %v2376
  %2379 = vrot.lane.b32.xlu0 %v2377, 32
  %v2380 = vpop.permute.xlu0 %2379
  %v2382 = vmul.f32 %v2364, %v2380
  %v2383 = vpack.c.bf16 %v2382, %v2382
  %2385 = vrot.lane.b32.xlu0 %v2383, 64
  %v2386 = vpop.permute.xlu0 %2385
  %v2388 = vsel %vm102, %v2386, 0
  %2390 = vmatprep.subr.bf16.mxu0 0
  %2391 = vmatpush1.bf16.msra.mxu0 %v1948
  %2392 = vmatprep.subr.bf16.mxu0 0
  %2393 = vmatpush1.bf16.msra.mxu0 %v1949
  %2394 = vmatprep.subr.bf16.mxu0 0
  %2395 = vmatpush1.bf16.msra.mxu0 0
  %2396 = vmatprep.subr.bf16.mxu0 0
  %2397 = vmatpush1.bf16.msra.mxu0 0
  %2398 = vmatprep.subr.bf16.mxu0 0
  %2399 = vmatpush1.bf16.msra.mxu0 0
  %2400 = vmatprep.subr.bf16.mxu0 0
  %2401 = vmatpush1.bf16.msra.mxu0 0
  %2402 = vmatprep.subr.bf16.mxu0 0
  %2403 = vmatpush1.bf16.msra.mxu0 0
  %2404 = vmatprep.subr.bf16.mxu0 0
  %2405 = vmatpush1.bf16.msra.mxu0 0
  %2406 = vmatprep.subr.bf16.mxu0 0
  %2407 = vmatpush1.bf16.msra.mxu0 0
  %2408 = vmatprep.subr.bf16.mxu0 0
  %2409 = vmatpush1.bf16.msra.mxu0 0
  %2410 = vmatprep.subr.bf16.mxu0 0
  %2411 = vmatpush1.bf16.msra.mxu0 0
  %2412 = vmatprep.subr.bf16.mxu0 0
  %2413 = vmatpush1.bf16.msra.mxu0 0
  %2414 = vmatprep.subr.bf16.mxu0 0
  %2415 = vmatpush1.bf16.msra.mxu0 0
  %2416 = vmatprep.subr.bf16.mxu0 0
  %2417 = vmatpush1.bf16.msra.mxu0 0
  %2418 = vmatprep.subr.bf16.mxu0 0
  %2419 = vmatpush1.bf16.msra.mxu0 0
  %2420 = vmatprep.subr.bf16.mxu0 0
  %2421 = vmatpush1.bf16.msra.mxu0 0
  %2422 = vmatprep.mubr.bf16.mxu0 0
  %2423 = vmatmul.mubr.bf16.gmra.mrb[0].mxu0 %v2388
  %v2424 = vpop.f32.mrb[0].mxu0
  %v2425 = vadd.f32 0.0, %v2424
  %v2426 = vpop.f32.mrb[0].mxu0
  %v2427 = vpop.f32.mrb[0].mxu0
  %v2428 = vpop.f32.mrb[0].mxu0
  %2429 = vdwg.mxu0
  %v2430 = vld [vmem:[%s1546] sm:$0xff]
  %v2431 = vadd.f32 %v2430, %v2425
  %v2432 = vxor.u32 %v2431, 2147483648
  %v2433 = vmul.f32 %v2432, 1.442695
  %v2434 = vpow.pop %v2433
  %v2435 = vadd.f32 %v2434, 1.0
  %v2436 = vrcp.pop %v2435
  %v2437 = vmul.f32 1.0, %v2436
  %v2438 = vtanh.pop %v2431
  %v2439 = vmul.f32 %v2437, %v2376
  %2441 = vrot.lane.b32.xlu0 %v2438, 32
  %v2442 = vpop.permute.xlu0 %2441
  %v2444 = vmul.f32 %v2437, %v2442
  %2446 = vrot.lane.b32.xlu0 %v2444, 32
  %v2447 = vpop.permute.xlu0 %2446
  %v2449 = vadd.f32 %v2439, %v2447
  %v2450 = vtanh.pop %v2449
  %2452 = vrot.lane.b32.xlu0 %v2450, 32
  %v2453 = vpop.permute.xlu0 %2452
  %v2455 = vmul.f32 %v2437, %v2453
  %v2456 = vpack.c.bf16 %v2455, %v2455
  %2458 = vrot.lane.b32.xlu0 %v2456, 64
  %v2459 = vpop.permute.xlu0 %2458
  %v2461 = vsel %vm102, %v2459, 0
  %2463 = vmatprep.subr.bf16.mxu0 0
  %2464 = vmatpush1.bf16.msra.mxu0 %v1948
  %2465 = vmatprep.subr.bf16.mxu0 0
  %2466 = vmatpush1.bf16.msra.mxu0 %v1949
  %2467 = vmatprep.subr.bf16.mxu0 0
  %2468 = vmatpush1.bf16.msra.mxu0 0
  %2469 = vmatprep.subr.bf16.mxu0 0
  %2470 = vmatpush1.bf16.msra.mxu0 0
  %2471 = vmatprep.subr.bf16.mxu0 0
  %2472 = vmatpush1.bf16.msra.mxu0 0
  %2473 = vmatprep.subr.bf16.mxu0 0
  %2474 = vmatpush1.bf16.msra.mxu0 0
  %2475 = vmatprep.subr.bf16.mxu0 0
  %2476 = vmatpush1.bf16.msra.mxu0 0
  %2477 = vmatprep.subr.bf16.mxu0 0
  %2478 = vmatpush1.bf16.msra.mxu0 0
  %2479 = vmatprep.subr.bf16.mxu0 0
  %2480 = vmatpush1.bf16.msra.mxu0 0
  %2481 = vmatprep.subr.bf16.mxu0 0
  %2482 = vmatpush1.bf16.msra.mxu0 0
  %2483 = vmatprep.subr.bf16.mxu0 0
  %2484 = vmatpush1.bf16.msra.mxu0 0
  %2485 = vmatprep.subr.bf16.mxu0 0
  %2486 = vmatpush1.bf16.msra.mxu0 0
  %2487 = vmatprep.subr.bf16.mxu0 0
  %2488 = vmatpush1.bf16.msra.mxu0 0
  %2489 = vmatprep.subr.bf16.mxu0 0
  %2490 = vmatpush1.bf16.msra.mxu0 0
  %2491 = vmatprep.subr.bf16.mxu0 0
  %2492 = vmatpush1.bf16.msra.mxu0 0
  %2493 = vmatprep.subr.bf16.mxu0 0
  %2494 = vmatpush1.bf16.msra.mxu0 0
  %2495 = vmatprep.mubr.bf16.mxu0 0
  %2496 = vmatmul.mubr.bf16.gmra.mrb[0].mxu0 %v2461
  %v2497 = vpop.f32.mrb[0].mxu0
  %v2498 = vadd.f32 0.0, %v2497
  %v2499 = vpop.f32.mrb[0].mxu0
  %v2500 = vpop.f32.mrb[0].mxu0
  %v2501 = vpop.f32.mrb[0].mxu0
  %2502 = vdwg.mxu0
  %v2503 = vld [vmem:[%s1736] sm:$0xff]
  %v2504 = vadd.f32 %v2503, %v2498
  %v2505 = vxor.u32 %v2504, 2147483648
  %v2506 = vmul.f32 %v2505, 1.442695
  %v2507 = vpow.pop %v2506
  %v2508 = vadd.f32 %v2507, 1.0
  %v2509 = vrcp.pop %v2508
  %v2510 = vmul.f32 1.0, %v2509
  %v2511 = vtanh.pop %v2504
  %v2512 = vmul.f32 %v2510, %v2449
  %2514 = vrot.lane.b32.xlu0 %v2511, 32
  %v2515 = vpop.permute.xlu0 %2514
  %v2517 = vmul.f32 %v2510, %v2515
  %2519 = vrot.lane.b32.xlu0 %v2517, 32
  %v2520 = vpop.permute.xlu0 %2519
  %v2522 = vadd.f32 %v2512, %v2520
  %v2523 = vtanh.pop %v2522
  %2525 = vrot.lane.b32.xlu0 %v2523, 32
  %v2526 = vpop.permute.xlu0 %2525
  %v2528 = vmul.f32 %v2510, %v2526
  %v2529 = vld [vmem:[%s10] sm:$0xf]
  %v2530 = vld [vmem:[%s10 + $0x4] sm:$0xf]
  %v2531 = vld [vmem:[%s10 + $0x8] sm:$0xf]
  %v2532 = vld [vmem:[%s10 + $0xc] sm:$0xf]
  %v2533 = vld [vmem:[%s10 + $0x10] sm:$0xf]
  %v2534 = vld [vmem:[%s10 + $0x14] sm:$0xf]
  %v2535 = vld [vmem:[%s10 + $0x18] sm:$0xf]
  %v2536 = vld [vmem:[%s10 + $0x1c] sm:$0xf]
  %v2537 = vld [vmem:[%s11] sm:$0x1]
  %v2539 = vlaneseq
  %v2540 = vshrl.u32 %v2539, 7
  %v2541 = vsub.s32 0, %v2540
  %v2542 = vrot.slane %v2537, %v2541
  %v2545 = vrot.slane %v1810, 4
  %v2554 = vunpack.c.l.b16 %v2529
  %v2555 = vunpack.c.l.b16 %v2530
  %v2556 = vunpack.c.l.b16 %v2531
  %v2557 = vunpack.c.l.b16 %v2532
  %v2558 = vunpack.c.l.b16 %v2533
  %v2559 = vunpack.c.l.b16 %v2534
  %v2560 = vunpack.c.l.b16 %v2535
  %v2561 = vunpack.c.l.b16 %v2536
  %v2562 = vpack.c.b16 %v2555, %v2554
  %v2563 = vpack.c.b16 %v2557, %v2556
  %v2564 = vpack.c.b16 %v2559, %v2558
  %v2565 = vpack.c.b16 %v2561, %v2560
  %v2571 = vsel %vm1850, %v2545, 0
  %2573 = vmatprep.subr.bf16.mxu0 0
  %2574 = vmatpush1.bf16.msra.mxu0 %v2562
  %2575 = vmatprep.subr.bf16.mxu0 0
  %2576 = vmatpush1.bf16.msra.mxu0 %v2563
  %2577 = vmatprep.subr.bf16.mxu0 0
  %2578 = vmatpush1.bf16.msra.mxu0 %v2564
  %2579 = vmatprep.subr.bf16.mxu0 0
  %2580 = vmatpush1.bf16.msra.mxu0 %v2565
  %2581 = vmatprep.subr.bf16.mxu0 0
  %2582 = vmatpush1.bf16.msra.mxu0 0
  %2583 = vmatprep.subr.bf16.mxu0 0
  %2584 = vmatpush1.bf16.msra.mxu0 0
  %2585 = vmatprep.subr.bf16.mxu0 0
  %2586 = vmatpush1.bf16.msra.mxu0 0
  %2587 = vmatprep.subr.bf16.mxu0 0
  %2588 = vmatpush1.bf16.msra.mxu0 0
  %2589 = vmatprep.subr.bf16.mxu0 0
  %2590 = vmatpush1.bf16.msra.mxu0 0
  %2591 = vmatprep.subr.bf16.mxu0 0
  %2592 = vmatpush1.bf16.msra.mxu0 0
  %2593 = vmatprep.subr.bf16.mxu0 0
  %2594 = vmatpush1.bf16.msra.mxu0 0
  %2595 = vmatprep.subr.bf16.mxu0 0
  %2596 = vmatpush1.bf16.msra.mxu0 0
  %2597 = vmatprep.subr.bf16.mxu0 0
  %2598 = vmatpush1.bf16.msra.mxu0 0
  %2599 = vmatprep.subr.bf16.mxu0 0
  %2600 = vmatpush1.bf16.msra.mxu0 0
  %2601 = vmatprep.subr.bf16.mxu0 0
  %2602 = vmatpush1.bf16.msra.mxu0 0
  %2603 = vmatprep.subr.bf16.mxu0 0
  %2604 = vmatpush1.bf16.msra.mxu0 0
  %2605 = vmatprep.mubr.bf16.mxu0 0
  %2606 = vmatmul.mubr.bf16.gmra.mrb[0].mxu0 %v2571
  %v2607 = vpop.f32.mrb[0].mxu0
  %v2608 = vadd.f32 %v2542, %v2607
  %v2609 = vpop.f32.mrb[0].mxu0
  %v2610 = vpop.f32.mrb[0].mxu0
  %v2611 = vpop.f32.mrb[0].mxu0
  %2612 = vdwg.mxu0
  %v2613 = vxor.u32 %v2608, 2147483648
  %v2614 = vmul.f32 %v2613, 1.442695
  %v2615 = vpow.pop %v2614
  %v2616 = vadd.f32 %v2615, 1.0
  %v2617 = vrcp.pop %v2616
  %v2618 = vmul.f32 1.0, %v2617
  %v2619 = vtanh.pop %v2608
  %v2620 = vmul.f32 %v2618, 0.0
  %2622 = vrot.lane.b32.xlu0 %v2619, 32
  %v2623 = vpop.permute.xlu0 %2622
  %v2625 = vmul.f32 %v2618, %v2623
  %2627 = vrot.lane.b32.xlu0 %v2625, 32
  %v2628 = vpop.permute.xlu0 %2627
  %v2630 = vadd.f32 %v2620, %v2628
  %v2631 = vtanh.pop %v2630
  %2633 = vrot.lane.b32.xlu0 %v2631, 32
  %v2634 = vpop.permute.xlu0 %2633
  %v2636 = vmul.f32 %v2618, %v2634
  %v2637 = vld [vmem:[%s13] sm:$0xff]
  %v2638 = vld [vmem:[%s13 + $0x8] sm:$0xff]
  %v2639 = vld [vmem:[%s13 + $0x10] sm:$0xff]
  %v2640 = vld [vmem:[%s13 + $0x18] sm:$0xff]
  %v2641 = vld [vmem:[%s13 + $0x20] sm:$0xff]
  %v2642 = vld [vmem:[%s13 + $0x28] sm:$0xff]
  %v2643 = vld [vmem:[%s13 + $0x30] sm:$0xff]
  %v2644 = vld [vmem:[%s13 + $0x38] sm:$0xff]
  %2646 = vrot.lane.b32.xlu0 %v2636, 64
  %v2647 = vpop.permute.xlu0 %2646
  %v2648 = vsel %vm102, %v2647, 0
  %2650 = vmatprep.subr.mxu0 0.0
  %2651 = vmatpush1.msra.mxu0 %v2641
  %2652 = vmatprep.subr.mxu0 0.0
  %2653 = vmatpush1.msra.mxu0 %v2642
  %2654 = vmatprep.subr.mxu0 0.0
  %2655 = vmatpush1.msra.mxu0 %v2643
  %2656 = vmatprep.subr.mxu0 0.0
  %2657 = vmatpush1.msra.mxu0 %v2644
  %2658 = vmatprep.subr.mxu0 0.0
  %2659 = vmatpush1.msra.mxu0 0.0
  %2660 = vmatprep.subr.mxu0 0.0
  %2661 = vmatpush1.msra.mxu0 0.0
  %2662 = vmatprep.subr.mxu0 0.0
  %2663 = vmatpush1.msra.mxu0 0.0
  %2664 = vmatprep.subr.mxu0 0.0
  %2665 = vmatpush1.msra.mxu0 0.0
  %2666 = vmatprep.subr.mxu0 0.0
  %2667 = vmatpush1.msra.mxu0 0.0
  %2668 = vmatprep.subr.mxu0 0.0
  %2669 = vmatpush1.msra.mxu0 0.0
  %2670 = vmatprep.subr.mxu0 0.0
  %2671 = vmatpush1.msra.mxu0 0.0
  %2672 = vmatprep.subr.mxu0 0.0
  %2673 = vmatpush1.msra.mxu0 0.0
  %2674 = vmatprep.subr.mxu0 0.0
  %2675 = vmatpush1.msra.mxu0 0.0
  %2676 = vmatprep.subr.mxu0 0.0
  %2677 = vmatpush1.msra.mxu0 0.0
  %2678 = vmatprep.subr.mxu0 0.0
  %2679 = vmatpush1.msra.mxu0 0.0
  %2680 = vmatprep.subr.mxu0 0.0
  %2681 = vmatpush1.msra.mxu0 0.0
  %2682 = vmatprep.subr.mxu0 0.0
  %2683 = vmatpush1.msra.mxu0 0.0
  %2684 = vmatprep.subr.mxu0 0.0
  %2685 = vmatpush1.msra.mxu0 0.0
  %2686 = vmatprep.subr.mxu0 0.0
  %2687 = vmatpush1.msra.mxu0 0.0
  %2688 = vmatprep.subr.mxu0 0.0
  %2689 = vmatpush1.msra.mxu0 0.0
  %2690 = vmatprep.subr.mxu0 0.0
  %2691 = vmatpush1.msra.mxu0 0.0
  %2692 = vmatprep.subr.mxu0 0.0
  %2693 = vmatpush1.msra.mxu0 0.0
  %2694 = vmatprep.subr.mxu0 0.0
  %2695 = vmatpush1.msra.mxu0 0.0
  %2696 = vmatprep.subr.mxu0 0.0
  %2697 = vmatpush1.msra.mxu0 0.0
  %2698 = vmatprep.subr.mxu0 0.0
  %2699 = vmatpush1.msra.mxu0 0.0
  %2700 = vmatprep.subr.mxu0 0.0
  %2701 = vmatpush1.msra.mxu0 0.0
  %2702 = vmatprep.subr.mxu0 0.0
  %2703 = vmatpush1.msra.mxu0 0.0
  %2704 = vmatprep.subr.mxu0 0.0
  %2705 = vmatpush1.msra.mxu0 0.0
  %2706 = vmatprep.subr.mxu0 0.0
  %2707 = vmatpush1.msra.mxu0 0.0
  %2708 = vmatprep.subr.mxu0 0.0
  %2709 = vmatpush1.msra.mxu0 0.0
  %2710 = vmatprep.subr.mxu0 0.0
  %2711 = vmatpush1.msra.mxu0 0.0
  %2712 = vmatprep.subr.mxu0 0.0
  %2713 = vmatpush1.msra.mxu0 0.0
  %2714 = vmatprep.mubr.f32.mxu0 0.0
  %2715 = vmatmul.mubr.f32.gmra.mrb[0].mxu0 %v2648
  %v2716 = vpop.f32.mrb[0].mxu0
  %v2717 = vadd.f32 0.0, %v2716
  %v2718 = vpop.f32.mrb[0].mxu0
  %2719 = vdwg.mxu0
  %2721 = vrot.lane.b32.xlu0 %v2528, 64
  %v2722 = vpop.permute.xlu0 %2721
  %v2723 = vsel %vm102, %v2722, 0
  %2725 = vmatprep.subr.mxu0 0.0
  %2726 = vmatpush1.msra.mxu0 %v2637
  %2727 = vmatprep.subr.mxu0 0.0
  %2728 = vmatpush1.msra.mxu0 %v2638
  %2729 = vmatprep.subr.mxu0 0.0
  %2730 = vmatpush1.msra.mxu0 %v2639
  %2731 = vmatprep.subr.mxu0 0.0
  %2732 = vmatpush1.msra.mxu0 %v2640
  %2733 = vmatprep.subr.mxu0 0.0
  %2734 = vmatpush1.msra.mxu0 0.0
  %2735 = vmatprep.subr.mxu0 0.0
  %2736 = vmatpush1.msra.mxu0 0.0
  %2737 = vmatprep.subr.mxu0 0.0
  %2738 = vmatpush1.msra.mxu0 0.0
  %2739 = vmatprep.subr.mxu0 0.0
  %2740 = vmatpush1.msra.mxu0 0.0
  %2741 = vmatprep.subr.mxu0 0.0
  %2742 = vmatpush1.msra.mxu0 0.0
  %2743 = vmatprep.subr.mxu0 0.0
  %2744 = vmatpush1.msra.mxu0 0.0
  %2745 = vmatprep.subr.mxu0 0.0
  %2746 = vmatpush1.msra.mxu0 0.0
  %2747 = vmatprep.subr.mxu0 0.0
  %2748 = vmatpush1.msra.mxu0 0.0
  %2749 = vmatprep.subr.mxu0 0.0
  %2750 = vmatpush1.msra.mxu0 0.0
  %2751 = vmatprep.subr.mxu0 0.0
  %2752 = vmatpush1.msra.mxu0 0.0
  %2753 = vmatprep.subr.mxu0 0.0
  %2754 = vmatpush1.msra.mxu0 0.0
  %2755 = vmatprep.subr.mxu0 0.0
  %2756 = vmatpush1.msra.mxu0 0.0
  %2757 = vmatprep.subr.mxu0 0.0
  %2758 = vmatpush1.msra.mxu0 0.0
  %2759 = vmatprep.subr.mxu0 0.0
  %2760 = vmatpush1.msra.mxu0 0.0
  %2761 = vmatprep.subr.mxu0 0.0
  %2762 = vmatpush1.msra.mxu0 0.0
  %2763 = vmatprep.subr.mxu0 0.0
  %2764 = vmatpush1.msra.mxu0 0.0
  %2765 = vmatprep.subr.mxu0 0.0
  %2766 = vmatpush1.msra.mxu0 0.0
  %2767 = vmatprep.subr.mxu0 0.0
  %2768 = vmatpush1.msra.mxu0 0.0
  %2769 = vmatprep.subr.mxu0 0.0
  %2770 = vmatpush1.msra.mxu0 0.0
  %2771 = vmatprep.subr.mxu0 0.0
  %2772 = vmatpush1.msra.mxu0 0.0
  %2773 = vmatprep.subr.mxu0 0.0
  %2774 = vmatpush1.msra.mxu0 0.0
  %2775 = vmatprep.subr.mxu0 0.0
  %2776 = vmatpush1.msra.mxu0 0.0
  %2777 = vmatprep.subr.mxu0 0.0
  %2778 = vmatpush1.msra.mxu0 0.0
  %2779 = vmatprep.subr.mxu0 0.0
  %2780 = vmatpush1.msra.mxu0 0.0
  %2781 = vmatprep.subr.mxu0 0.0
  %2782 = vmatpush1.msra.mxu0 0.0
  %2783 = vmatprep.subr.mxu0 0.0
  %2784 = vmatpush1.msra.mxu0 0.0
  %2785 = vmatprep.subr.mxu0 0.0
  %2786 = vmatpush1.msra.mxu0 0.0
  %2787 = vmatprep.subr.mxu0 0.0
  %2788 = vmatpush1.msra.mxu0 0.0
  %2789 = vmatprep.mubr.f32.mxu0 0.0
  %2790 = vmatmul.mubr.f32.gmra.mrb[0].mxu0 %v2723
  %v2791 = vpop.f32.mrb[0].mxu0
  %v2792 = vadd.f32 %v2717, %v2791
  %v2793 = vpop.f32.mrb[0].mxu0
  %2794 = vdwg.mxu0
  %v2795 = vld [vmem:[%s14] sm:$0x1]
  %v2797 = vlaneseq
  %v2798 = vshrl.u32 %v2797, 7
  %v2799 = vsub.s32 0, %v2798
  %v2800 = vrot.slane %v2795, %v2799
  %v2802 = vadd.f32 %v2792, %v2800
  %vm2803 = vcmask 23552
  %2804 = vst.msk [vmem:[%s15] sm:$0xff] %vm2803, %v2802
  // Predicated region
  $region62: #{sentence_classifier_forward.1} parent=0 // pred_check
    _
  $region63: #{sentence_classifier_forward.1} parent=0 // pred_check_branch
    %2806 = sbr.rel (0) target = $region65
  $region64: #{sentence_classifier_forward.1} parent=0 // pred_region
    _
  $region65: #{sentence_classifier_forward.1} parent=0 // pred_fallthru
    _
  // Predicated region
  $region66: #{sentence_classifier_forward.1} parent=0 // pred_check
    _
  $region67: #{sentence_classifier_forward.1} parent=0 // pred_check_branch
    %2808 = sbr.rel (0) target = $region69
  $region68: #{sentence_classifier_forward.1} parent=0 // pred_region
    _
  $region69: #{sentence_classifier_forward.1} parent=0 // pred_fallthru
    _

</llo_original>
